<compile_context>
chip_gen: v7x
topology: tpu7x:2x2x1
jax: 0.10.0
libtpu: 0.0.40
codegen_flags: <defaults>
</compile_context>

<pallas_src>
import functools

import jax
import jax.numpy as jnp
from jax.experimental import pallas as pl
from jax.experimental.pallas import tpu as pltpu


def _round_up(x, m):
    return (x + m - 1) // m * m


# ----------------------------- Pallas kernel ------------------------------- #

def moe_expert_kernel(wt_ref, x_ref, w1_ref, b1_ref, w2_ref, b2_ref, o_ref):
    """Grid = (token_tiles,).  o[t] = sum_e w[t,e] * MLP_e(x[t]).

    All E experts' weights are resident in VMEM (constant index_map); the
    expert loop is fully unrolled in-kernel, accumulation is f32.
    """
    x = x_ref[...]                                               # [TN, Dp] bf16
    wt = wt_ref[...]                                             # [TN, E]  f32
    num_experts = w1_ref.shape[0]
    col = jax.lax.broadcasted_iota(jnp.int32, wt.shape, 1)

    def body(e, acc):
        h = jnp.dot(x, w1_ref[e], preferred_element_type=jnp.float32)
        h = jnp.maximum(h + b1_ref[e], 0.0)                      # [TN, Fp] f32
        y = jnp.dot(h.astype(w2_ref.dtype), w2_ref[e],
                    preferred_element_type=jnp.float32) + b2_ref[e]   # [TN, Dp]
        # Routing weight of expert e per token: lane mask + tiny lane reduce
        # (rides VPU/XLU slots, which have slack while the MXU is busy).
        w_e = jnp.sum(jnp.where(col == e, wt, 0.0), axis=-1, keepdims=True)
        return acc + w_e * y

    acc = jax.lax.fori_loop(0, num_experts, body,
                            jnp.zeros(o_ref.shape, jnp.float32), unroll=True)
    o_ref[...] = acc.astype(o_ref.dtype)


# ------------------------------ JAX wrapper -------------------------------- #

@functools.partial(jax.jit, static_argnums=(2, 3))
def moe_feedforward(x, params, top_k, token_tile=256):
    """Pallas implementation of MoEFeedForward.forward (bf16 output)."""
    wg_t, bg = params["wg_t"], params["bg"]
    w1, b1, w2, b2 = params["w1"], params["b1"], params["w2"], params["b2"]

    B, S, D = x.shape
    E, _, F = w1.shape
    N = B * S
    flat_x = x.reshape(N, D).astype(jnp.float32)

    # --- gating + top-k routing (tiny; plain XLA glue) ---
    gate_logits = flat_x @ wg_t + bg                             # [N, E]
    top_vals, top_idx = jax.lax.top_k(gate_logits, top_k)        # [N, K]
    top_w = jax.nn.softmax(top_vals, axis=-1)
    # One-hot contraction instead of scatter (scatter lowers poorly on TPU).
    dense_w = jnp.einsum(
        "nk,nke->ne", top_w,
        jax.nn.one_hot(top_idx, E, dtype=top_w.dtype))           # [N, E]

    # --- pad to MXU / lane-friendly shapes (128-aligned, TN-aligned tokens) ---
    TN = token_tile
    Np, Dp, Fp = _round_up(N, TN), _round_up(D, 128), _round_up(F, 128)

    def pad2(a, rows, cols):
        return jnp.pad(a, ((0, rows - a.shape[0]), (0, cols - a.shape[1])))

    x_p = pad2(flat_x, Np, Dp).astype(jnp.bfloat16)              # [Np, Dp]
    wt_p = pad2(dense_w, Np, E)                                  # [Np, E]
    w1_p = jnp.pad(w1, ((0, 0), (0, Dp - D), (0, Fp - F))).astype(jnp.bfloat16)
    w2_p = jnp.pad(w2, ((0, 0), (0, Fp - F), (0, Dp - D))).astype(jnp.bfloat16)
    b1_p = jnp.pad(b1, ((0, 0), (0, 0), (0, Fp - F))).astype(jnp.float32)
    b2_p = jnp.pad(b2, ((0, 0), (0, 0), (0, Dp - D))).astype(jnp.float32)

    grid = (Np // TN,)                      # token tiles only; experts in-kernel

    out_p = pl.pallas_call(
        moe_expert_kernel,
        out_shape=jax.ShapeDtypeStruct((Np, Dp), jnp.bfloat16),
        grid_spec=pltpu.PrefetchScalarGridSpec(
            num_scalar_prefetch=0,
            grid=grid,
            in_specs=[
                pl.BlockSpec((TN, E), lambda i: (i, 0)),           # routing w
                pl.BlockSpec((TN, Dp), lambda i: (i, 0)),          # x tile
                pl.BlockSpec((E, Dp, Fp), lambda i: (0, 0, 0)),    # W1 (resident)
                pl.BlockSpec((E, 1, Fp), lambda i: (0, 0, 0)),     # b1 (resident)
                pl.BlockSpec((E, Fp, Dp), lambda i: (0, 0, 0)),    # W2 (resident)
                pl.BlockSpec((E, 1, Dp), lambda i: (0, 0, 0)),     # b2 (resident)
            ],
            out_specs=pl.BlockSpec((TN, Dp), lambda i: (i, 0)),
        ),
        compiler_params=pltpu.CompilerParams(
            dimension_semantics=("parallel",),
        ),
    )(wt_p, x_p, w1_p, b1_p, w2_p, b2_p)

    return out_p[:N, :D].reshape(B, S, D)


# ------------------------- reference (same bf16 numerics) ------------------ #

def moe_reference(x, params, top_k, compute_dtype=jnp.bfloat16):
    wg_t, bg = params["wg_t"], params["bg"]
    w1, b1, w2, b2 = params["w1"], params["b1"], params["w2"], params["b2"]
    B, S, D = x.shape
    E = w1.shape[0]
    flat = x.reshape(-1, D).astype(jnp.float32)

    logits = flat @ wg_t + bg
    top_vals, top_idx = jax.lax.top_k(logits, top_k)
    top_w = jax.nn.softmax(top_vals, axis=-1)
    dense_w = jnp.einsum("nk,nke->ne", top_w,
                         jax.nn.one_hot(top_idx, E, dtype=top_w.dtype))

    xb = flat.astype(compute_dtype)
    out = jnp.zeros((flat.shape[0], D), jnp.float32)
    for e in range(E):
        h = jnp.dot(xb, w1[e].astype(compute_dtype),
                    preferred_element_type=jnp.float32) + b1[e]
        h = jnp.maximum(h, 0.0)
        y = jnp.dot(h.astype(compute_dtype), w2[e].astype(compute_dtype),
                    preferred_element_type=jnp.float32) + b2[e]
        out = out + dense_w[:, e:e + 1] * y
    return out.reshape(B, S, D)


# --------------------------------- main ------------------------------------ #

if __name__ == "__main__":
    # Small, MXU/lane-aligned config: N = 512 tokens -> two 256-token tiles
    # (keeps both v7x TensorCores busy under "parallel" semantics).
    model_dim = 128
    dim_feedforward = 256
    num_experts = 4
    top_k = 2
    batch, seq = 2, 256

    key = jax.random.PRNGKey(0)
    ks = jax.random.split(key, 7)

    params = {
        # gate: Linear(D -> E), stored pre-transposed as [D, E]
        "wg_t": 0.1 * jax.random.normal(ks[0], (model_dim, num_experts), jnp.float32),
        "bg":   0.1 * jax.random.normal(ks[1], (num_experts,), jnp.float32),
        # experts: Linear(D -> F) then Linear(F -> D), stacked over E
        "w1": 0.1 * jax.random.normal(ks[2], (num_experts, model_dim, dim_feedforward), jnp.float32),
        "b1": 0.1 * jax.random.normal(ks[3], (num_experts, 1, dim_feedforward), jnp.float32),
        "w2": 0.1 * jax.random.normal(ks[4], (num_experts, dim_feedforward, model_dim), jnp.float32),
        "b2": 0.1 * jax.random.normal(ks[5], (num_experts, 1, model_dim), jnp.float32),
    }
    x = jax.random.normal(ks[6], (batch, seq, model_dim), jnp.float32)

    out = jax.block_until_ready(moe_feedforward(x, params, top_k))
    ref = jax.block_until_ready(moe_reference(x, params, top_k))

    assert out.shape == (batch, seq, model_dim)
    out_f32 = out.astype(jnp.float32)
    assert jnp.allclose(out_f32, ref, atol=2e-2, rtol=2e-2), \
        float(jnp.max(jnp.abs(out_f32 - ref)))

    print("KERNEL_OK")
</pallas_src>

<mosaic_0001>
module attributes {stable_mosaic.version = 11 : i64} {
  func.func @moe_expert_kernel(%arg0: i32, %arg1: memref<256x4xf32, #tpu.memory_space<vmem>>, %arg2: memref<256x128xbf16, #tpu.memory_space<vmem>>, %arg3: memref<4x128x256xbf16, #tpu.memory_space<vmem>>, %arg4: memref<4x1x256xf32, #tpu.memory_space<vmem>>, %arg5: memref<4x256x128xbf16, #tpu.memory_space<vmem>>, %arg6: memref<4x1x128xf32, #tpu.memory_space<vmem>>, %arg7: memref<256x128xbf16, #tpu.memory_space<vmem>>) attributes {dimension_semantics = [#tpu.dimension_semantics<parallel>], iteration_bounds = array<i64: 2>, scalar_prefetch = 0 : i64, scratch_operands = 0 : i64, tpu.core_type = #tpu.core_type<tc>, window_params = [{transform_indices = @transform_0, window_bounds = array<i64: 256, 4>}, {transform_indices = @transform_1, window_bounds = array<i64: 256, 128>}, {pipeline_mode = #tpu.pipeline_mode<synchronous>, transform_indices = @transform_2, window_bounds = array<i64: 4, 128, 256>}, {pipeline_mode = #tpu.pipeline_mode<synchronous>, transform_indices = @transform_3, window_bounds = array<i64: 4, 1, 256>}, {pipeline_mode = #tpu.pipeline_mode<synchronous>, transform_indices = @transform_4, window_bounds = array<i64: 4, 256, 128>}, {pipeline_mode = #tpu.pipeline_mode<synchronous>, transform_indices = @transform_5, window_bounds = array<i64: 4, 1, 128>}, {transform_indices = @transform_6, window_bounds = array<i64: 256, 128>}]} {
    %c0 = arith.constant 0 : index
    %c0_0 = arith.constant 0 : index
    %0 = vector.load %arg2[%c0, %c0_0] : memref<256x128xbf16, #tpu.memory_space<vmem>>, vector<256x128xbf16>
    %c0_1 = arith.constant 0 : index
    %c0_2 = arith.constant 0 : index
    %1 = vector.load %arg1[%c0_1, %c0_2] : memref<256x4xf32, #tpu.memory_space<vmem>>, vector<256x4xf32>
    %2 = tpu.iota {dimensions = array<i32: 1>} : vector<256x4xi32>
    %cst = arith.constant 0.000000e+00 : f32
    %3 = vector.broadcast %cst : f32 to vector<256x128xf32>
    %c0_i32 = arith.constant 0 : i32
    %4 = arith.index_cast %c0_i32 : i32 to index
    %c0_3 = arith.constant 0 : index
    %c0_4 = arith.constant 0 : index
    %5 = vector.load %arg3[%4, %c0_3, %c0_4] : memref<4x128x256xbf16, #tpu.memory_space<vmem>>, vector<1x128x256xbf16>
    %6 = vector.shape_cast %5 : vector<1x128x256xbf16> to vector<128x256xbf16>
    %cst_5 = arith.constant dense<0.000000e+00> : vector<256x256xf32>
    %7 = tpu.matmul %0, %6, %cst_5 {dimension_numbers = #tpu.dot_dimension_numbers<[1], [0], [0], [1], [0, 0, 1, 1], [], []>} : vector<256x128xbf16>, vector<128x256xbf16>, vector<256x256xf32> -> vector<256x256xf32>
    %8 = arith.index_cast %c0_i32 : i32 to index
    %c0_6 = arith.constant 0 : index
    %c0_7 = arith.constant 0 : index
    %9 = vector.load %arg4[%8, %c0_6, %c0_7] : memref<4x1x256xf32, #tpu.memory_space<vmem>>, vector<1x1x256xf32>
    %10 = vector.shape_cast %9 : vector<1x1x256xf32> to vector<1x256xf32>
    %11 = vector.broadcast %10 : vector<1x256xf32> to vector<256x256xf32>
    %12 = arith.addf %7, %11 : vector<256x256xf32>
    %cst_8 = arith.constant 0.000000e+00 : f32
    %13 = vector.broadcast %cst_8 : f32 to vector<256x256xf32>
    %14 = arith.maximumf %12, %13 : vector<256x256xf32>
    %15 = arith.truncf %14 : vector<256x256xf32> to vector<256x256xbf16>
    %16 = arith.index_cast %c0_i32 : i32 to index
    %c0_9 = arith.constant 0 : index
    %c0_10 = arith.constant 0 : index
    %17 = vector.load %arg5[%16, %c0_9, %c0_10] : memref<4x256x128xbf16, #tpu.memory_space<vmem>>, vector<1x256x128xbf16>
    %18 = vector.shape_cast %17 : vector<1x256x128xbf16> to vector<256x128xbf16>
    %cst_11 = arith.constant dense<0.000000e+00> : vector<256x128xf32>
    %19 = tpu.matmul %15, %18, %cst_11 {dimension_numbers = #tpu.dot_dimension_numbers<[1], [0], [0], [1], [0, 0, 1, 1], [], []>} : vector<256x256xbf16>, vector<256x128xbf16>, vector<256x128xf32> -> vector<256x128xf32>
    %20 = arith.index_cast %c0_i32 : i32 to index
    %c0_12 = arith.constant 0 : index
    %c0_13 = arith.constant 0 : index
    %21 = vector.load %arg6[%20, %c0_12, %c0_13] : memref<4x1x128xf32, #tpu.memory_space<vmem>>, vector<1x1x128xf32>
    %22 = vector.shape_cast %21 : vector<1x1x128xf32> to vector<1x128xf32>
    %23 = vector.broadcast %22 : vector<1x128xf32> to vector<256x128xf32>
    %24 = arith.addf %19, %23 : vector<256x128xf32>
    %25 = vector.broadcast %c0_i32 : i32 to vector<256x4xi32>
    %26 = arith.cmpi eq, %2, %25 : vector<256x4xi32>
    %cst_14 = arith.constant 0.000000e+00 : f32
    %27 = vector.broadcast %cst_14 : f32 to vector<256x4xf32>
    %28 = arith.select %26, %1, %27 : vector<256x4xi1>, vector<256x4xf32>
    %cst_15 = arith.constant dense<0.000000e+00> : vector<256xf32>
    %29 = vector.multi_reduction <add>, %28, %cst_15 [1] : vector<256x4xf32> to vector<256xf32>
    %30 = vector.shape_cast %29 : vector<256xf32> to vector<256x1xf32>
    %31 = vector.broadcast %30 : vector<256x1xf32> to vector<256x128xf32>
    %32 = arith.mulf %31, %24 : vector<256x128xf32>
    %33 = arith.addf %3, %32 : vector<256x128xf32>
    %c1_i32 = arith.constant 1 : i32
    %34 = arith.index_cast %c1_i32 : i32 to index
    %c0_16 = arith.constant 0 : index
    %c0_17 = arith.constant 0 : index
    %35 = vector.load %arg3[%34, %c0_16, %c0_17] : memref<4x128x256xbf16, #tpu.memory_space<vmem>>, vector<1x128x256xbf16>
    %36 = vector.shape_cast %35 : vector<1x128x256xbf16> to vector<128x256xbf16>
    %cst_18 = arith.constant dense<0.000000e+00> : vector<256x256xf32>
    %37 = tpu.matmul %0, %36, %cst_18 {dimension_numbers = #tpu.dot_dimension_numbers<[1], [0], [0], [1], [0, 0, 1, 1], [], []>} : vector<256x128xbf16>, vector<128x256xbf16>, vector<256x256xf32> -> vector<256x256xf32>
    %38 = arith.index_cast %c1_i32 : i32 to index
    %c0_19 = arith.constant 0 : index
    %c0_20 = arith.constant 0 : index
    %39 = vector.load %arg4[%38, %c0_19, %c0_20] : memref<4x1x256xf32, #tpu.memory_space<vmem>>, vector<1x1x256xf32>
    %40 = vector.shape_cast %39 : vector<1x1x256xf32> to vector<1x256xf32>
    %41 = vector.broadcast %40 : vector<1x256xf32> to vector<256x256xf32>
    %42 = arith.addf %37, %41 : vector<256x256xf32>
    %cst_21 = arith.constant 0.000000e+00 : f32
    %43 = vector.broadcast %cst_21 : f32 to vector<256x256xf32>
    %44 = arith.maximumf %42, %43 : vector<256x256xf32>
    %45 = arith.truncf %44 : vector<256x256xf32> to vector<256x256xbf16>
    %46 = arith.index_cast %c1_i32 : i32 to index
    %c0_22 = arith.constant 0 : index
    %c0_23 = arith.constant 0 : index
    %47 = vector.load %arg5[%46, %c0_22, %c0_23] : memref<4x256x128xbf16, #tpu.memory_space<vmem>>, vector<1x256x128xbf16>
    %48 = vector.shape_cast %47 : vector<1x256x128xbf16> to vector<256x128xbf16>
    %cst_24 = arith.constant dense<0.000000e+00> : vector<256x128xf32>
    %49 = tpu.matmul %45, %48, %cst_24 {dimension_numbers = #tpu.dot_dimension_numbers<[1], [0], [0], [1], [0, 0, 1, 1], [], []>} : vector<256x256xbf16>, vector<256x128xbf16>, vector<256x128xf32> -> vector<256x128xf32>
    %50 = arith.index_cast %c1_i32 : i32 to index
    %c0_25 = arith.constant 0 : index
    %c0_26 = arith.constant 0 : index
    %51 = vector.load %arg6[%50, %c0_25, %c0_26] : memref<4x1x128xf32, #tpu.memory_space<vmem>>, vector<1x1x128xf32>
    %52 = vector.shape_cast %51 : vector<1x1x128xf32> to vector<1x128xf32>
    %53 = vector.broadcast %52 : vector<1x128xf32> to vector<256x128xf32>
    %54 = arith.addf %49, %53 : vector<256x128xf32>
    %55 = vector.broadcast %c1_i32 : i32 to vector<256x4xi32>
    %56 = arith.cmpi eq, %2, %55 : vector<256x4xi32>
    %cst_27 = arith.constant 0.000000e+00 : f32
    %57 = vector.broadcast %cst_27 : f32 to vector<256x4xf32>
    %58 = arith.select %56, %1, %57 : vector<256x4xi1>, vector<256x4xf32>
    %cst_28 = arith.constant dense<0.000000e+00> : vector<256xf32>
    %59 = vector.multi_reduction <add>, %58, %cst_28 [1] : vector<256x4xf32> to vector<256xf32>
    %60 = vector.shape_cast %59 : vector<256xf32> to vector<256x1xf32>
    %61 = vector.broadcast %60 : vector<256x1xf32> to vector<256x128xf32>
    %62 = arith.mulf %61, %54 : vector<256x128xf32>
    %63 = arith.addf %33, %62 : vector<256x128xf32>
    %c2_i32 = arith.constant 2 : i32
    %64 = arith.index_cast %c2_i32 : i32 to index
    %c0_29 = arith.constant 0 : index
    %c0_30 = arith.constant 0 : index
    %65 = vector.load %arg3[%64, %c0_29, %c0_30] : memref<4x128x256xbf16, #tpu.memory_space<vmem>>, vector<1x128x256xbf16>
    %66 = vector.shape_cast %65 : vector<1x128x256xbf16> to vector<128x256xbf16>
    %cst_31 = arith.constant dense<0.000000e+00> : vector<256x256xf32>
    %67 = tpu.matmul %0, %66, %cst_31 {dimension_numbers = #tpu.dot_dimension_numbers<[1], [0], [0], [1], [0, 0, 1, 1], [], []>} : vector<256x128xbf16>, vector<128x256xbf16>, vector<256x256xf32> -> vector<256x256xf32>
    %68 = arith.index_cast %c2_i32 : i32 to index
    %c0_32 = arith.constant 0 : index
    %c0_33 = arith.constant 0 : index
    %69 = vector.load %arg4[%68, %c0_32, %c0_33] : memref<4x1x256xf32, #tpu.memory_space<vmem>>, vector<1x1x256xf32>
    %70 = vector.shape_cast %69 : vector<1x1x256xf32> to vector<1x256xf32>
    %71 = vector.broadcast %70 : vector<1x256xf32> to vector<256x256xf32>
    %72 = arith.addf %67, %71 : vector<256x256xf32>
    %cst_34 = arith.constant 0.000000e+00 : f32
    %73 = vector.broadcast %cst_34 : f32 to vector<256x256xf32>
    %74 = arith.maximumf %72, %73 : vector<256x256xf32>
    %75 = arith.truncf %74 : vector<256x256xf32> to vector<256x256xbf16>
    %76 = arith.index_cast %c2_i32 : i32 to index
    %c0_35 = arith.constant 0 : index
    %c0_36 = arith.constant 0 : index
    %77 = vector.load %arg5[%76, %c0_35, %c0_36] : memref<4x256x128xbf16, #tpu.memory_space<vmem>>, vector<1x256x128xbf16>
    %78 = vector.shape_cast %77 : vector<1x256x128xbf16> to vector<256x128xbf16>
    %cst_37 = arith.constant dense<0.000000e+00> : vector<256x128xf32>
    %79 = tpu.matmul %75, %78, %cst_37 {dimension_numbers = #tpu.dot_dimension_numbers<[1], [0], [0], [1], [0, 0, 1, 1], [], []>} : vector<256x256xbf16>, vector<256x128xbf16>, vector<256x128xf32> -> vector<256x128xf32>
    %80 = arith.index_cast %c2_i32 : i32 to index
    %c0_38 = arith.constant 0 : index
    %c0_39 = arith.constant 0 : index
    %81 = vector.load %arg6[%80, %c0_38, %c0_39] : memref<4x1x128xf32, #tpu.memory_space<vmem>>, vector<1x1x128xf32>
    %82 = vector.shape_cast %81 : vector<1x1x128xf32> to vector<1x128xf32>
    %83 = vector.broadcast %82 : vector<1x128xf32> to vector<256x128xf32>
    %84 = arith.addf %79, %83 : vector<256x128xf32>
    %85 = vector.broadcast %c2_i32 : i32 to vector<256x4xi32>
    %86 = arith.cmpi eq, %2, %85 : vector<256x4xi32>
    %cst_40 = arith.constant 0.000000e+00 : f32
    %87 = vector.broadcast %cst_40 : f32 to vector<256x4xf32>
    %88 = arith.select %86, %1, %87 : vector<256x4xi1>, vector<256x4xf32>
    %cst_41 = arith.constant dense<0.000000e+00> : vector<256xf32>
    %89 = vector.multi_reduction <add>, %88, %cst_41 [1] : vector<256x4xf32> to vector<256xf32>
    %90 = vector.shape_cast %89 : vector<256xf32> to vector<256x1xf32>
    %91 = vector.broadcast %90 : vector<256x1xf32> to vector<256x128xf32>
    %92 = arith.mulf %91, %84 : vector<256x128xf32>
    %93 = arith.addf %63, %92 : vector<256x128xf32>
    %c3_i32 = arith.constant 3 : i32
    %94 = arith.index_cast %c3_i32 : i32 to index
    %c0_42 = arith.constant 0 : index
    %c0_43 = arith.constant 0 : index
    %95 = vector.load %arg3[%94, %c0_42, %c0_43] : memref<4x128x256xbf16, #tpu.memory_space<vmem>>, vector<1x128x256xbf16>
    %96 = vector.shape_cast %95 : vector<1x128x256xbf16> to vector<128x256xbf16>
    %cst_44 = arith.constant dense<0.000000e+00> : vector<256x256xf32>
    %97 = tpu.matmul %0, %96, %cst_44 {dimension_numbers = #tpu.dot_dimension_numbers<[1], [0], [0], [1], [0, 0, 1, 1], [], []>} : vector<256x128xbf16>, vector<128x256xbf16>, vector<256x256xf32> -> vector<256x256xf32>
    %98 = arith.index_cast %c3_i32 : i32 to index
    %c0_45 = arith.constant 0 : index
    %c0_46 = arith.constant 0 : index
    %99 = vector.load %arg4[%98, %c0_45, %c0_46] : memref<4x1x256xf32, #tpu.memory_space<vmem>>, vector<1x1x256xf32>
    %100 = vector.shape_cast %99 : vector<1x1x256xf32> to vector<1x256xf32>
    %101 = vector.broadcast %100 : vector<1x256xf32> to vector<256x256xf32>
    %102 = arith.addf %97, %101 : vector<256x256xf32>
    %cst_47 = arith.constant 0.000000e+00 : f32
    %103 = vector.broadcast %cst_47 : f32 to vector<256x256xf32>
    %104 = arith.maximumf %102, %103 : vector<256x256xf32>
    %105 = arith.truncf %104 : vector<256x256xf32> to vector<256x256xbf16>
    %106 = arith.index_cast %c3_i32 : i32 to index
    %c0_48 = arith.constant 0 : index
    %c0_49 = arith.constant 0 : index
    %107 = vector.load %arg5[%106, %c0_48, %c0_49] : memref<4x256x128xbf16, #tpu.memory_space<vmem>>, vector<1x256x128xbf16>
    %108 = vector.shape_cast %107 : vector<1x256x128xbf16> to vector<256x128xbf16>
    %cst_50 = arith.constant dense<0.000000e+00> : vector<256x128xf32>
    %109 = tpu.matmul %105, %108, %cst_50 {dimension_numbers = #tpu.dot_dimension_numbers<[1], [0], [0], [1], [0, 0, 1, 1], [], []>} : vector<256x256xbf16>, vector<256x128xbf16>, vector<256x128xf32> -> vector<256x128xf32>
    %110 = arith.index_cast %c3_i32 : i32 to index
    %c0_51 = arith.constant 0 : index
    %c0_52 = arith.constant 0 : index
    %111 = vector.load %arg6[%110, %c0_51, %c0_52] : memref<4x1x128xf32, #tpu.memory_space<vmem>>, vector<1x1x128xf32>
    %112 = vector.shape_cast %111 : vector<1x1x128xf32> to vector<1x128xf32>
    %113 = vector.broadcast %112 : vector<1x128xf32> to vector<256x128xf32>
    %114 = arith.addf %109, %113 : vector<256x128xf32>
    %115 = vector.broadcast %c3_i32 : i32 to vector<256x4xi32>
    %116 = arith.cmpi eq, %2, %115 : vector<256x4xi32>
    %cst_53 = arith.constant 0.000000e+00 : f32
    %117 = vector.broadcast %cst_53 : f32 to vector<256x4xf32>
    %118 = arith.select %116, %1, %117 : vector<256x4xi1>, vector<256x4xf32>
    %cst_54 = arith.constant dense<0.000000e+00> : vector<256xf32>
    %119 = vector.multi_reduction <add>, %118, %cst_54 [1] : vector<256x4xf32> to vector<256xf32>
    %120 = vector.shape_cast %119 : vector<256xf32> to vector<256x1xf32>
    %121 = vector.broadcast %120 : vector<256x1xf32> to vector<256x128xf32>
    %122 = arith.mulf %121, %114 : vector<256x128xf32>
    %123 = arith.addf %93, %122 : vector<256x128xf32>
    %c4_i32 = arith.constant 4 : i32
    %124 = arith.truncf %123 : vector<256x128xf32> to vector<256x128xbf16>
    %c0_55 = arith.constant 0 : index
    %c0_56 = arith.constant 0 : index
    %125 = vector.load %arg7[%c0_55, %c0_56] : memref<256x128xbf16, #tpu.memory_space<vmem>>, vector<256x128xbf16>
    tpu.vector_store %arg7[%c0_55, %c0_56], %124 {strides = array<i32>} : memref<256x128xbf16, #tpu.memory_space<vmem>>, vector<256x128xbf16>,
    return
  }
  func.func @transform_0(%arg0: i32) -> (i32, i32) {
    %c0_i32 = arith.constant 0 : i32
    %c0_i32_0 = arith.constant 0 : i32
    return %arg0, %c0_i32 : i32, i32
  }
  func.func @transform_1(%arg0: i32) -> (i32, i32) {
    %c0_i32 = arith.constant 0 : i32
    %c0_i32_0 = arith.constant 0 : i32
    return %arg0, %c0_i32 : i32, i32
  }
  func.func @transform_2(%arg0: i32) -> (i32, i32, i32) {
    %c0_i32 = arith.constant 0 : i32
    %c0_i32_0 = arith.constant 0 : i32
    %c0_i32_1 = arith.constant 0 : i32
    %c0_i32_2 = arith.constant 0 : i32
    return %c0_i32, %c0_i32_0, %c0_i32_1 : i32, i32, i32
  }
  func.func @transform_3(%arg0: i32) -> (i32, i32, i32) {
    %c0_i32 = arith.constant 0 : i32
    %c0_i32_0 = arith.constant 0 : i32
    %c0_i32_1 = arith.constant 0 : i32
    %c0_i32_2 = arith.constant 0 : i32
    return %c0_i32, %c0_i32_0, %c0_i32_1 : i32, i32, i32
  }
  func.func @transform_4(%arg0: i32) -> (i32, i32, i32) {
    %c0_i32 = arith.constant 0 : i32
    %c0_i32_0 = arith.constant 0 : i32
    %c0_i32_1 = arith.constant 0 : i32
    %c0_i32_2 = arith.constant 0 : i32
    return %c0_i32, %c0_i32_0, %c0_i32_1 : i32, i32, i32
  }
  func.func @transform_5(%arg0: i32) -> (i32, i32, i32) {
    %c0_i32 = arith.constant 0 : i32
    %c0_i32_0 = arith.constant 0 : i32
    %c0_i32_1 = arith.constant 0 : i32
    %c0_i32_2 = arith.constant 0 : i32
    return %c0_i32, %c0_i32_0, %c0_i32_1 : i32, i32, i32
  }
  func.func @transform_6(%arg0: i32) -> (i32, i32) {
    %c0_i32 = arith.constant 0 : i32
    %c0_i32_0 = arith.constant 0 : i32
    return %arg0, %c0_i32 : i32, i32
  }
}

</mosaic_0001>

<llo_original>
// kernel: moe_feedforward.1
$region0: #{moe_feedforward.1}
  #allocation0 [shape = 'u32[]', space=smem, size = 0x4, offset = 0x4, fixed_abs, tag = 'smem constant byte address 0x4 - core index']
  #allocation1 [shape = 'u32[144,128]{1,0:T(1,128)}', space=vmem, size = 0x12000, scoped, tag = 'internal scratch']
  %s0 = inlined_call_operand.vmem [shape: f32[512,4], index: 0, kind: input, shape index: {}]
  %s1 = inlined_call_operand.vmem [shape: bf16[512,128], index: 1, kind: input, shape index: {}]
  %s2 = inlined_call_operand.vmem [shape: bf16[4,128,256], index: 2, kind: input, shape index: {}]
  %s3 = inlined_call_operand.vmem [shape: f32[4,1,256], index: 3, kind: input, shape index: {}]
  %s4 = inlined_call_operand.vmem [shape: bf16[4,256,128], index: 4, kind: input, shape index: {}]
  %s5 = inlined_call_operand.vmem [shape: f32[4,1,128], index: 5, kind: input, shape index: {}]
  %s6 = inlined_call_operand.hbm [shape: bf16[512,128], index: 6, kind: output, shape index: {}]
  %s7 = sld [smem:[#allocation0]]
  $region57: #{moe_feedforward.1} parent=0
    _
  %s9 = ssub.s32 1, %s7
  %s10 = scalar_select 0, %s9, %s7
  $region1: #{moe_feedforward.1} parent=0
    #allocation2 [shape = 'u8[131072]{0}', space=vmem, size = 0x20000, scoped, tag = 'output window, operand 0']
    #allocation3 [shape = 's32[2]{0}', space=sflag, size = 0x8, scoped, tag = 'scoped memory for moe_feedforward.1']
    %11 = vsyncpa [#allocation3], 0
    %s12 = scalar_lea.sflag [#allocation3], 1
    %13 = vsyncpa %s12, 0
    loop: start=0, step=1, limit=4
    $region2: #{moe_feedforward.1} parent=1 // loop_pre_header
      _
    $region3: #{moe_feedforward.1} parent=1 // loop_header
      %s15 = sphi 0, %s19
      %p16 = scmp.ge.s32.totalorder %s15, 4
      %s25 = sphi 0, %s27
      %s28 = sphi 0, %s25
      %s29 = sphi 0, %s28
      %s45 = sphi 0, %s29
      %s51 = sphi 0, %s53
      %s54 = sphi 0, %s51
      %s55 = sphi 0, %s54
      %s71 = sphi 0, %s55
      %s75 = sphi 0, %s75
      %s77 = sphi 0, %s75
      %s78 = sphi 0, %s77
      %s92 = sphi 0, %s78
      %s96 = sphi 0, %s96
      %s98 = sphi 0, %s96
      %s99 = sphi 0, %s98
      %s113 = sphi 0, %s99
      %s117 = sphi 0, %s117
      %s119 = sphi 0, %s117
      %s120 = sphi 0, %s119
      %s134 = sphi 0, %s120
      %s138 = sphi 0, %s138
      %s140 = sphi 0, %s138
      %s141 = sphi 0, %s140
      %s155 = sphi 0, %s141
      %s161 = sphi 0, %s163
      %s164 = sphi 0, %s161
      %s165 = sphi 0, %s164
      %s181 = sphi 0, %s165
    $region4: #{moe_feedforward.1} parent=1 // loop_header_branch
      %18 = sbr.rel (%p16) target = $region8
    $region5: #{moe_feedforward.1} parent=1 // loop_body
      %s20 = ssub.s32 %s15, 1
      %s21 = ssub.s32 %s15, 2
      %s22 = sadd.s32 %s15, 1
      %s23 = ssub.s32 %s15, %s22
      %p24 = scmp.eq.s32.totalorder %s23, 0
      %s26 = sadd.s32 %s25, 1
      %s27 = scalar_select %p24, %s25, %s26
      %p30 = pneg %p24
      %p31 = scmp.eq.s32.totalorder %s15, 1
      %p32 = por %p30, %p31
      %p33 = scmp.ne.s32.totalorder %s25, %s28
      %p34 = scmp.eq.s32.totalorder %s15, 0
      %p35 = por %p33, %p34
      %p36 = scmp.ne.s32.totalorder %s25, %s28
      %p37 = scmp.eq.s32.totalorder %s20, 1
      %p38 = por %p36, %p37
      %p39 = scmp.ne.s32.totalorder %s28, %s29
      %p40 = scmp.eq.s32.totalorder %s20, 0
      %p41 = por %p39, %p40
      %p42 = scmp.ne.s32.totalorder %s28, %s29
      %p43 = scmp.eq.s32.totalorder %s21, 1
      %p44 = por %p42, %p43
      %p46 = scmp.ne.s32.totalorder %s29, %s45
      %p47 = scmp.eq.s32.totalorder %s21, 0
      %p48 = por %p46, %p47
      %s49 = ssub.s32 %s15, %s22
      %p50 = scmp.eq.s32.totalorder %s49, 0
      %s52 = sadd.s32 %s51, 1
      %s53 = scalar_select %p50, %s51, %s52
      %p56 = pneg %p50
      %p57 = scmp.eq.s32.totalorder %s15, 1
      %p58 = por %p56, %p57
      %p59 = scmp.ne.s32.totalorder %s51, %s54
      %p60 = scmp.eq.s32.totalorder %s15, 0
      %p61 = por %p59, %p60
      %p62 = scmp.ne.s32.totalorder %s51, %s54
      %p63 = scmp.eq.s32.totalorder %s20, 1
      %p64 = por %p62, %p63
      %p65 = scmp.ne.s32.totalorder %s54, %s55
      %p66 = scmp.eq.s32.totalorder %s20, 0
      %p67 = por %p65, %p66
      %p68 = scmp.ne.s32.totalorder %s54, %s55
      %p69 = scmp.eq.s32.totalorder %s21, 1
      %p70 = por %p68, %p69
      %p72 = scmp.ne.s32.totalorder %s55, %s71
      %p73 = scmp.eq.s32.totalorder %s21, 0
      %p74 = por %p72, %p73
      %s76 = sadd.s32 %s75, 1
      %p79 = scmp.eq.s32.totalorder %s15, 1
      %p80 = scmp.ne.s32.totalorder %s75, %s77
      %p81 = scmp.eq.s32.totalorder %s15, 0
      %p82 = por %p80, %p81
      %p83 = scmp.ne.s32.totalorder %s75, %s77
      %p84 = scmp.eq.s32.totalorder %s20, 1
      %p85 = por %p83, %p84
      %p86 = scmp.ne.s32.totalorder %s77, %s78
      %p87 = scmp.eq.s32.totalorder %s20, 0
      %p88 = por %p86, %p87
      %p89 = scmp.ne.s32.totalorder %s77, %s78
      %p90 = scmp.eq.s32.totalorder %s21, 1
      %p91 = por %p89, %p90
      %p93 = scmp.ne.s32.totalorder %s78, %s92
      %p94 = scmp.eq.s32.totalorder %s21, 0
      %p95 = por %p93, %p94
      %s97 = sadd.s32 %s96, 1
      %p100 = scmp.eq.s32.totalorder %s15, 1
      %p101 = scmp.ne.s32.totalorder %s96, %s98
      %p102 = scmp.eq.s32.totalorder %s15, 0
      %p103 = por %p101, %p102
      %p104 = scmp.ne.s32.totalorder %s96, %s98
      %p105 = scmp.eq.s32.totalorder %s20, 1
      %p106 = por %p104, %p105
      %p107 = scmp.ne.s32.totalorder %s98, %s99
      %p108 = scmp.eq.s32.totalorder %s20, 0
      %p109 = por %p107, %p108
      %p110 = scmp.ne.s32.totalorder %s98, %s99
      %p111 = scmp.eq.s32.totalorder %s21, 1
      %p112 = por %p110, %p111
      %p114 = scmp.ne.s32.totalorder %s99, %s113
      %p115 = scmp.eq.s32.totalorder %s21, 0
      %p116 = por %p114, %p115
      %s118 = sadd.s32 %s117, 1
      %p121 = scmp.eq.s32.totalorder %s15, 1
      %p122 = scmp.ne.s32.totalorder %s117, %s119
      %p123 = scmp.eq.s32.totalorder %s15, 0
      %p124 = por %p122, %p123
      %p125 = scmp.ne.s32.totalorder %s117, %s119
      %p126 = scmp.eq.s32.totalorder %s20, 1
      %p127 = por %p125, %p126
      %p128 = scmp.ne.s32.totalorder %s119, %s120
      %p129 = scmp.eq.s32.totalorder %s20, 0
      %p130 = por %p128, %p129
      %p131 = scmp.ne.s32.totalorder %s119, %s120
      %p132 = scmp.eq.s32.totalorder %s21, 1
      %p133 = por %p131, %p132
      %p135 = scmp.ne.s32.totalorder %s120, %s134
      %p136 = scmp.eq.s32.totalorder %s21, 0
      %p137 = por %p135, %p136
      %s139 = sadd.s32 %s138, 1
      %p142 = scmp.eq.s32.totalorder %s15, 1
      %p143 = scmp.ne.s32.totalorder %s138, %s140
      %p144 = scmp.eq.s32.totalorder %s15, 0
      %p145 = por %p143, %p144
      %p146 = scmp.ne.s32.totalorder %s138, %s140
      %p147 = scmp.eq.s32.totalorder %s20, 1
      %p148 = por %p146, %p147
      %p149 = scmp.ne.s32.totalorder %s140, %s141
      %p150 = scmp.eq.s32.totalorder %s20, 0
      %p151 = por %p149, %p150
      %p152 = scmp.ne.s32.totalorder %s140, %s141
      %p153 = scmp.eq.s32.totalorder %s21, 1
      %p154 = por %p152, %p153
      %p156 = scmp.ne.s32.totalorder %s141, %s155
      %p157 = scmp.eq.s32.totalorder %s21, 0
      %p158 = por %p156, %p157
      %s159 = ssub.s32 %s15, %s22
      %p160 = scmp.eq.s32.totalorder %s159, 0
      %s162 = sadd.s32 %s161, 1
      %s163 = scalar_select %p160, %s161, %s162
      %p166 = pneg %p160
      %p167 = scmp.eq.s32.totalorder %s15, 1
      %p168 = por %p166, %p167
      %p169 = scmp.ne.s32.totalorder %s161, %s164
      %p170 = scmp.eq.s32.totalorder %s15, 0
      %p171 = por %p169, %p170
      %p172 = scmp.ne.s32.totalorder %s161, %s164
      %p173 = scmp.eq.s32.totalorder %s20, 1
      %p174 = por %p172, %p173
      %p175 = scmp.ne.s32.totalorder %s164, %s165
      %p176 = scmp.eq.s32.totalorder %s20, 0
      %p177 = por %p175, %p176
      %p178 = scmp.ne.s32.totalorder %s164, %s165
      %p179 = scmp.eq.s32.totalorder %s21, 1
      %p180 = por %p178, %p179
      %p182 = scmp.ne.s32.totalorder %s165, %s181
      %p183 = scmp.eq.s32.totalorder %s21, 0
      %p184 = por %p182, %p183
      %p185 = scmp.le.s32.totalorder 1, %s15
      %p186 = scmp.lt.s32.totalorder %s15, 3
      %p187 = pnand %p185, %p186
      %p188 = pneg %p187
      // Predicated region
      $region9: #{moe_feedforward.1} parent=5 // pred_check
        _
      $region10: #{moe_feedforward.1} parent=5 // pred_check_branch
        %190 = sbr.rel (%p187) target = $region12
      $region11: #{moe_feedforward.1} parent=5 // pred_region
        %s191 = ssub.s32 %s15, 1
        // Predicated region
        $region13: #{moe_feedforward.1} parent=11 // pred_check
          %p192 = pneg %p88
        $region14: #{moe_feedforward.1} parent=11 // pred_check_branch
          %194 = sbr.rel (%p192) target = $region16
        $region15: #{moe_feedforward.1} parent=11 // pred_region
          _
        $region16: #{moe_feedforward.1} parent=11 // pred_fallthru
          _
        // Predicated region
        $region17: #{moe_feedforward.1} parent=11 // pred_check
          %p195 = pneg %p109
        $region18: #{moe_feedforward.1} parent=11 // pred_check_branch
          %197 = sbr.rel (%p195) target = $region20
        $region19: #{moe_feedforward.1} parent=11 // pred_region
          _
        $region20: #{moe_feedforward.1} parent=11 // pred_fallthru
          _
        // Predicated region
        $region21: #{moe_feedforward.1} parent=11 // pred_check
          %p198 = pneg %p130
        $region22: #{moe_feedforward.1} parent=11 // pred_check_branch
          %200 = sbr.rel (%p198) target = $region24
        $region23: #{moe_feedforward.1} parent=11 // pred_region
          _
        $region24: #{moe_feedforward.1} parent=11 // pred_fallthru
          _
        // Predicated region
        $region25: #{moe_feedforward.1} parent=11 // pred_check
          %p201 = pneg %p151
        $region26: #{moe_feedforward.1} parent=11 // pred_check_branch
          %203 = sbr.rel (%p201) target = $region28
        $region27: #{moe_feedforward.1} parent=11 // pred_region
          _
        $region28: #{moe_feedforward.1} parent=11 // pred_fallthru
          _
      $region12: #{moe_feedforward.1} parent=5 // pred_fallthru
        _
      %p204 = scmp.lt.s32.totalorder %s15, 2
      // Predicated region
      $region29: #{moe_feedforward.1} parent=5 // pred_check
        %p205 = pneg %p204
      $region30: #{moe_feedforward.1} parent=5 // pred_check_branch
        %207 = sbr.rel (%p205) target = $region32
      $region31: #{moe_feedforward.1} parent=5 // pred_region
        // Predicated region
        $region33: #{moe_feedforward.1} parent=31 // pred_check
          %p208 = pneg %p35
        $region34: #{moe_feedforward.1} parent=31 // pred_check_branch
          %210 = sbr.rel (%p208) target = $region36
        $region35: #{moe_feedforward.1} parent=31 // pred_region
          %s211 = smul.u32 32, %s15
          %p212 = scmp.lt.s32.totalorder %s211, 63
          %s213 = scalar_select %p212, %s211, 63
          %s214 = smul.addr %s213, 8
          %s215 = scalar_lea.vmem %s0, %s214
          %s216 = smul.u32 32, %s15
        $region36: #{moe_feedforward.1} parent=31 // pred_fallthru
          _
        // Predicated region
        $region37: #{moe_feedforward.1} parent=31 // pred_check
          %p217 = pneg %p61
        $region38: #{moe_feedforward.1} parent=31 // pred_check_branch
          %219 = sbr.rel (%p217) target = $region40
        $region39: #{moe_feedforward.1} parent=31 // pred_region
          %s220 = smul.u32 32, %s15
          %p221 = scmp.lt.s32.totalorder %s220, 63
          %s222 = scalar_select %p221, %s220, 63
          %s223 = smul.addr %s222, 4
          %s224 = scalar_lea.vmem %s1, %s223
          %s225 = smul.u32 32, %s15
        $region40: #{moe_feedforward.1} parent=31 // pred_fallthru
          _
      $region32: #{moe_feedforward.1} parent=5 // pred_fallthru
        _
      %p226 = scmp.le.s32.totalorder 1, %s15
      %p227 = scmp.lt.s32.totalorder %s15, 3
      %p228 = pnand %p226, %p227
      %p229 = pneg %p228
      // Predicated region
      $region41: #{moe_feedforward.1} parent=5 // pred_check
        _
      $region42: #{moe_feedforward.1} parent=5 // pred_check_branch
        %231 = sbr.rel (%p228) target = $region44
      $region43: #{moe_feedforward.1} parent=5 // pred_region
        %s232 = ssub.s32 %s15, 1
        %s233 = smul.u32 32, %s20
        %p234 = scmp.lt.s32.totalorder %s233, 63
        %s235 = scalar_select %p234, %s233, 63
        %s236 = smul.addr %s235, 8
        %s237 = scalar_lea.vmem %s0, %s236
        %p238 = pneg %p41
        %p239 = pneg %p38
        %s240 = smul.u32 32, %s20
        %p241 = scmp.lt.s32.totalorder %s240, 63
        %s242 = scalar_select %p241, %s240, 63
        %s243 = smul.addr %s242, 4
        %s244 = scalar_lea.vmem %s1, %s243
        %p245 = pneg %p67
        %p246 = pneg %p64
        %p247 = pneg %p88
        %p248 = pneg %p85
        %p249 = pneg %p109
        %p250 = pneg %p106
        %p251 = pneg %p130
        %p252 = pneg %p127
        %p253 = pneg %p151
        %p254 = pneg %p148
        %p255 = pneg %p177
        %p256 = pneg %p174
        %s257 = sand.u32 %s164, 1
        %s258 = scalar_lea.sflag [#allocation3], %s257
        %s259 = sand.u32 %s164, 1
        %s260 = smul.addr %s259, 128
        %s261 = scalar_lea.vmem [#allocation2], %s260
        %s262 = smul.u32 32, %s20
        %p263 = scmp.lt.s32.totalorder %s262, 63
        %s264 = scalar_select %p263, %s262, 63
        %s265 = smul.addr %s264, 8
        %s266 = scalar_lea.vmem %s0, %s265
        %s267 = smul.u32 32, %s20
        %s268 = smul.u32 32, %s20
        %p269 = scmp.lt.s32.totalorder %s268, 63
        %s270 = scalar_select %p269, %s268, 63
        %s271 = smul.addr %s270, 4
        %s272 = scalar_lea.vmem %s1, %s271
        %s273 = smul.u32 32, %s20
        %s274 = smul.u32 32, %s20
        %v276 = vld [vmem:[%s272] sm:$0xf]
        %v277 = vld [vmem:[%s272 + $0x4] sm:$0xf]
        %v278 = vld [vmem:[%s272 + $0x8] sm:$0xf]
        %v279 = vld [vmem:[%s272 + $0xc] sm:$0xf]
        %v280 = vld [vmem:[%s272 + $0x10] sm:$0xf]
        %v281 = vld [vmem:[%s272 + $0x14] sm:$0xf]
        %v282 = vld [vmem:[%s272 + $0x18] sm:$0xf]
        %v283 = vld [vmem:[%s272 + $0x1c] sm:$0xf]
        %v284 = vld [vmem:[%s272 + $0x20] sm:$0xf]
        %v285 = vld [vmem:[%s272 + $0x24] sm:$0xf]
        %v286 = vld [vmem:[%s272 + $0x28] sm:$0xf]
        %v287 = vld [vmem:[%s272 + $0x2c] sm:$0xf]
        %v288 = vld [vmem:[%s272 + $0x30] sm:$0xf]
        %v289 = vld [vmem:[%s272 + $0x34] sm:$0xf]
        %v290 = vld [vmem:[%s272 + $0x38] sm:$0xf]
        %v291 = vld [vmem:[%s272 + $0x3c] sm:$0xf]
        %v292 = vld [vmem:[%s272 + $0x40] sm:$0xf]
        %v293 = vld [vmem:[%s272 + $0x44] sm:$0xf]
        %v294 = vld [vmem:[%s272 + $0x48] sm:$0xf]
        %v295 = vld [vmem:[%s272 + $0x4c] sm:$0xf]
        %v296 = vld [vmem:[%s272 + $0x50] sm:$0xf]
        %v297 = vld [vmem:[%s272 + $0x54] sm:$0xf]
        %v298 = vld [vmem:[%s272 + $0x58] sm:$0xf]
        %v299 = vld [vmem:[%s272 + $0x5c] sm:$0xf]
        %v300 = vld [vmem:[%s272 + $0x60] sm:$0xf]
        %v301 = vld [vmem:[%s272 + $0x64] sm:$0xf]
        %v302 = vld [vmem:[%s272 + $0x68] sm:$0xf]
        %v303 = vld [vmem:[%s272 + $0x6c] sm:$0xf]
        %v304 = vld [vmem:[%s272 + $0x70] sm:$0xf]
        %v305 = vld [vmem:[%s272 + $0x74] sm:$0xf]
        %v306 = vld [vmem:[%s272 + $0x78] sm:$0xf]
        %v307 = vld [vmem:[%s272 + $0x7c] sm:$0xf]
        %v308 = vld [vmem:[%s266] sm:$0xff]
        %v309 = vld [vmem:[%s266 + $0x8] sm:$0xff]
        %v310 = vld [vmem:[%s266 + $0x10] sm:$0xff]
        %v311 = vld [vmem:[%s266 + $0x18] sm:$0xff]
        %v312 = vld [vmem:[%s266 + $0x20] sm:$0xff]
        %v313 = vld [vmem:[%s266 + $0x28] sm:$0xff]
        %v314 = vld [vmem:[%s266 + $0x30] sm:$0xff]
        %v315 = vld [vmem:[%s266 + $0x38] sm:$0xff]
        %v316 = vld [vmem:[%s266 + $0x40] sm:$0xff]
        %v317 = vld [vmem:[%s266 + $0x48] sm:$0xff]
        %v318 = vld [vmem:[%s266 + $0x50] sm:$0xff]
        %v319 = vld [vmem:[%s266 + $0x58] sm:$0xff]
        %v320 = vld [vmem:[%s266 + $0x60] sm:$0xff]
        %v321 = vld [vmem:[%s266 + $0x68] sm:$0xff]
        %v322 = vld [vmem:[%s266 + $0x70] sm:$0xff]
        %v323 = vld [vmem:[%s266 + $0x78] sm:$0xff]
        %v324 = vld [vmem:[%s266 + $0x80] sm:$0xff]
        %v325 = vld [vmem:[%s266 + $0x88] sm:$0xff]
        %v326 = vld [vmem:[%s266 + $0x90] sm:$0xff]
        %v327 = vld [vmem:[%s266 + $0x98] sm:$0xff]
        %v328 = vld [vmem:[%s266 + $0xa0] sm:$0xff]
        %v329 = vld [vmem:[%s266 + $0xa8] sm:$0xff]
        %v330 = vld [vmem:[%s266 + $0xb0] sm:$0xff]
        %v331 = vld [vmem:[%s266 + $0xb8] sm:$0xff]
        %v332 = vld [vmem:[%s266 + $0xc0] sm:$0xff]
        %v333 = vld [vmem:[%s266 + $0xc8] sm:$0xff]
        %v334 = vld [vmem:[%s266 + $0xd0] sm:$0xff]
        %v335 = vld [vmem:[%s266 + $0xd8] sm:$0xff]
        %v336 = vld [vmem:[%s266 + $0xe0] sm:$0xff]
        %v337 = vld [vmem:[%s266 + $0xe8] sm:$0xff]
        %v338 = vld [vmem:[%s266 + $0xf0] sm:$0xff]
        %v339 = vld [vmem:[%s266 + $0xf8] sm:$0xff]
        %v340 = vlaneseq
        %v341 = vand.u32 %v340, 127
        %v342 = vld [vmem:[%s2] sm:$0xff]
        %v343 = vld [vmem:[%s2 + $0x8] sm:$0xff]
        %v344 = vld [vmem:[%s2 + $0x10] sm:$0xff]
        %v345 = vld [vmem:[%s2 + $0x18] sm:$0xff]
        %v346 = vld [vmem:[%s2 + $0x20] sm:$0xff]
        %v347 = vld [vmem:[%s2 + $0x28] sm:$0xff]
        %v348 = vld [vmem:[%s2 + $0x30] sm:$0xff]
        %v349 = vld [vmem:[%s2 + $0x38] sm:$0xff]
        %v350 = vld [vmem:[%s2 + $0x40] sm:$0xff]
        %v351 = vld [vmem:[%s2 + $0x48] sm:$0xff]
        %v352 = vld [vmem:[%s2 + $0x50] sm:$0xff]
        %v353 = vld [vmem:[%s2 + $0x58] sm:$0xff]
        %v354 = vld [vmem:[%s2 + $0x60] sm:$0xff]
        %v355 = vld [vmem:[%s2 + $0x68] sm:$0xff]
        %v356 = vld [vmem:[%s2 + $0x70] sm:$0xff]
        %v357 = vld [vmem:[%s2 + $0x78] sm:$0xff]
        %v358 = vld [vmem:[%s3] sm:$0x3]
        %v360 = vlaneseq
        %v361 = vshrl.u32 %v360, 7
        %v362 = vsub.s32 0, %v361
        %v363 = vrot.slane %v358, %v362
        %v364 = vlaneseq
        %v365 = vshrl.u32 %v364, 7
        %v366 = vsub.s32 1, %v365
        %v367 = vrot.slane %v358, %v366
        %v402 = vunpack.c.l.b16 %v276
        %v403 = vunpack.c.l.b16 %v277
        %v404 = vunpack.c.l.b16 %v278
        %v405 = vunpack.c.l.b16 %v279
        %v406 = vunpack.c.l.b16 %v280
        %v407 = vunpack.c.l.b16 %v281
        %v408 = vunpack.c.l.b16 %v282
        %v409 = vunpack.c.l.b16 %v283
        %v410 = vunpack.c.l.b16 %v284
        %v411 = vunpack.c.l.b16 %v285
        %v412 = vunpack.c.l.b16 %v286
        %v413 = vunpack.c.l.b16 %v287
        %v414 = vunpack.c.l.b16 %v288
        %v415 = vunpack.c.l.b16 %v289
        %v416 = vunpack.c.l.b16 %v290
        %v417 = vunpack.c.l.b16 %v291
        %v418 = vunpack.c.l.b16 %v292
        %v419 = vunpack.c.l.b16 %v293
        %v420 = vunpack.c.l.b16 %v294
        %v421 = vunpack.c.l.b16 %v295
        %v422 = vunpack.c.l.b16 %v296
        %v423 = vunpack.c.l.b16 %v297
        %v424 = vunpack.c.l.b16 %v298
        %v425 = vunpack.c.l.b16 %v299
        %v426 = vunpack.c.l.b16 %v300
        %v427 = vunpack.c.l.b16 %v301
        %v428 = vunpack.c.l.b16 %v302
        %v429 = vunpack.c.l.b16 %v303
        %v430 = vunpack.c.l.b16 %v304
        %v431 = vunpack.c.l.b16 %v305
        %v432 = vunpack.c.l.b16 %v306
        %v433 = vunpack.c.l.b16 %v307
        %v434 = vpack.c.b16 %v403, %v402
        %v435 = vpack.c.b16 %v405, %v404
        %v436 = vpack.c.b16 %v407, %v406
        %v437 = vpack.c.b16 %v409, %v408
        %v438 = vpack.c.b16 %v411, %v410
        %v439 = vpack.c.b16 %v413, %v412
        %v440 = vpack.c.b16 %v415, %v414
        %v441 = vpack.c.b16 %v417, %v416
        %v442 = vpack.c.b16 %v419, %v418
        %v443 = vpack.c.b16 %v421, %v420
        %v444 = vpack.c.b16 %v423, %v422
        %v445 = vpack.c.b16 %v425, %v424
        %v446 = vpack.c.b16 %v427, %v426
        %v447 = vpack.c.b16 %v429, %v428
        %v448 = vpack.c.b16 %v431, %v430
        %v449 = vpack.c.b16 %v433, %v432
        %v482 = vunpack.c.l.b16 %v342
        %v483 = vunpack.c.h.b16 %v342
        %v484 = vunpack.c.l.b16 %v343
        %v485 = vunpack.c.h.b16 %v343
        %v486 = vunpack.c.l.b16 %v344
        %v487 = vunpack.c.h.b16 %v344
        %v488 = vunpack.c.l.b16 %v345
        %v489 = vunpack.c.h.b16 %v345
        %v490 = vunpack.c.l.b16 %v346
        %v491 = vunpack.c.h.b16 %v346
        %v492 = vunpack.c.l.b16 %v347
        %v493 = vunpack.c.h.b16 %v347
        %v494 = vunpack.c.l.b16 %v348
        %v495 = vunpack.c.h.b16 %v348
        %v496 = vunpack.c.l.b16 %v349
        %v497 = vunpack.c.h.b16 %v349
        %v498 = vunpack.c.l.b16 %v350
        %v499 = vunpack.c.h.b16 %v350
        %v500 = vunpack.c.l.b16 %v351
        %v501 = vunpack.c.h.b16 %v351
        %v502 = vunpack.c.l.b16 %v352
        %v503 = vunpack.c.h.b16 %v352
        %v504 = vunpack.c.l.b16 %v353
        %v505 = vunpack.c.h.b16 %v353
        %v506 = vunpack.c.l.b16 %v354
        %v507 = vunpack.c.h.b16 %v354
        %v508 = vunpack.c.l.b16 %v355
        %v509 = vunpack.c.h.b16 %v355
        %v510 = vunpack.c.l.b16 %v356
        %v511 = vunpack.c.h.b16 %v356
        %v512 = vunpack.c.l.b16 %v357
        %v513 = vunpack.c.h.b16 %v357
        %v514 = vpack.c.b16 %v484, %v482
        %v515 = vpack.c.b16 %v485, %v483
        %v516 = vpack.c.b16 %v488, %v486
        %v517 = vpack.c.b16 %v489, %v487
        %v518 = vpack.c.b16 %v492, %v490
        %v519 = vpack.c.b16 %v493, %v491
        %v520 = vpack.c.b16 %v496, %v494
        %v521 = vpack.c.b16 %v497, %v495
        %v522 = vpack.c.b16 %v500, %v498
        %v523 = vpack.c.b16 %v501, %v499
        %v524 = vpack.c.b16 %v504, %v502
        %v525 = vpack.c.b16 %v505, %v503
        %v526 = vpack.c.b16 %v508, %v506
        %v527 = vpack.c.b16 %v509, %v507
        %v528 = vpack.c.b16 %v512, %v510
        %v529 = vpack.c.b16 %v513, %v511
        %546 = vmatprep.subr.bf16.mxu0 %v515
        %547 = vmatpush1.bf16.msra.mxu0 %v514
        %548 = vmatprep.subr.bf16.mxu0 %v517
        %549 = vmatpush1.bf16.msra.mxu0 %v516
        %550 = vmatprep.subr.bf16.mxu0 %v519
        %551 = vmatpush1.bf16.msra.mxu0 %v518
        %552 = vmatprep.subr.bf16.mxu0 %v521
        %553 = vmatpush1.bf16.msra.mxu0 %v520
        %554 = vmatprep.subr.bf16.mxu0 %v523
        %555 = vmatpush1.bf16.msra.mxu0 %v522
        %556 = vmatprep.subr.bf16.mxu0 %v525
        %557 = vmatpush1.bf16.msra.mxu0 %v524
        %558 = vmatprep.subr.bf16.mxu0 %v527
        %559 = vmatpush1.bf16.msra.mxu0 %v526
        %560 = vmatprep.subr.bf16.mxu0 %v529
        %561 = vmatpush1.bf16.msra.mxu0 %v528
        %562 = vmatprep.subr.bf16.mxu0 0
        %563 = vmatpush1.bf16.msra.mxu0 0
        %564 = vmatprep.subr.bf16.mxu0 0
        %565 = vmatpush1.bf16.msra.mxu0 0
        %566 = vmatprep.subr.bf16.mxu0 0
        %567 = vmatpush1.bf16.msra.mxu0 0
        %568 = vmatprep.subr.bf16.mxu0 0
        %569 = vmatpush1.bf16.msra.mxu0 0
        %570 = vmatprep.subr.bf16.mxu0 0
        %571 = vmatpush1.bf16.msra.mxu0 0
        %572 = vmatprep.subr.bf16.mxu0 0
        %573 = vmatpush1.bf16.msra.mxu0 0
        %574 = vmatprep.subr.bf16.mxu0 0
        %575 = vmatpush1.bf16.msra.mxu0 0
        %576 = vmatprep.subr.bf16.mxu0 0
        %577 = vmatpush1.bf16.msra.mxu0 0
        %578 = vmatprep.mubr.bf16.mxu0 0
        %579 = vmatmul.mubr.bf16.gmra.mrb[0].mxu0 %v434
        %v580 = vpop.f32.mrb[0].mxu0
        %v581 = vadd.f32 %v363, %v580
        %v582 = vpop.f32.mrb[0].mxu0
        %v583 = vadd.f32 %v367, %v582
        %v584 = vpop.f32.mrb[0].mxu0
        %v585 = vadd.f32 %v363, %v584
        %v586 = vpop.f32.mrb[0].mxu0
        %v587 = vadd.f32 %v367, %v586
        %588 = vmatprep.mubr.bf16.mxu0 0
        %589 = vmatmul.mubr.bf16.gmra.mrb[0].mxu0 %v435
        %v590 = vpop.f32.mrb[0].mxu0
        %v591 = vadd.f32 %v363, %v590
        %v592 = vpop.f32.mrb[0].mxu0
        %v593 = vadd.f32 %v367, %v592
        %v594 = vpop.f32.mrb[0].mxu0
        %v595 = vadd.f32 %v363, %v594
        %v596 = vpop.f32.mrb[0].mxu0
        %v597 = vadd.f32 %v367, %v596
        %598 = vmatprep.mubr.bf16.mxu0 0
        %599 = vmatmul.mubr.bf16.gmra.mrb[0].mxu0 %v436
        %v600 = vpop.f32.mrb[0].mxu0
        %v601 = vadd.f32 %v363, %v600
        %v602 = vpop.f32.mrb[0].mxu0
        %v603 = vadd.f32 %v367, %v602
        %v604 = vpop.f32.mrb[0].mxu0
        %v605 = vadd.f32 %v363, %v604
        %v606 = vpop.f32.mrb[0].mxu0
        %v607 = vadd.f32 %v367, %v606
        %608 = vmatprep.mubr.bf16.mxu0 0
        %609 = vmatmul.mubr.bf16.gmra.mrb[0].mxu0 %v437
        %v610 = vpop.f32.mrb[0].mxu0
        %v611 = vadd.f32 %v363, %v610
        %v612 = vpop.f32.mrb[0].mxu0
        %v613 = vadd.f32 %v367, %v612
        %v614 = vpop.f32.mrb[0].mxu0
        %v615 = vadd.f32 %v363, %v614
        %v616 = vpop.f32.mrb[0].mxu0
        %v617 = vadd.f32 %v367, %v616
        %618 = vmatprep.mubr.bf16.mxu0 0
        %619 = vmatmul.mubr.bf16.gmra.mrb[0].mxu0 %v438
        %v620 = vpop.f32.mrb[0].mxu0
        %v621 = vadd.f32 %v363, %v620
        %v622 = vpop.f32.mrb[0].mxu0
        %v623 = vadd.f32 %v367, %v622
        %v624 = vpop.f32.mrb[0].mxu0
        %v625 = vadd.f32 %v363, %v624
        %v626 = vpop.f32.mrb[0].mxu0
        %v627 = vadd.f32 %v367, %v626
        %628 = vmatprep.mubr.bf16.mxu0 0
        %629 = vmatmul.mubr.bf16.gmra.mrb[0].mxu0 %v439
        %v630 = vpop.f32.mrb[0].mxu0
        %v631 = vadd.f32 %v363, %v630
        %v632 = vpop.f32.mrb[0].mxu0
        %v633 = vadd.f32 %v367, %v632
        %v634 = vpop.f32.mrb[0].mxu0
        %v635 = vadd.f32 %v363, %v634
        %v636 = vpop.f32.mrb[0].mxu0
        %v637 = vadd.f32 %v367, %v636
        %638 = vmatprep.mubr.bf16.mxu0 0
        %639 = vmatmul.mubr.bf16.gmra.mrb[0].mxu0 %v440
        %v640 = vpop.f32.mrb[0].mxu0
        %v641 = vadd.f32 %v363, %v640
        %v642 = vpop.f32.mrb[0].mxu0
        %v643 = vadd.f32 %v367, %v642
        %v644 = vpop.f32.mrb[0].mxu0
        %v645 = vadd.f32 %v363, %v644
        %v646 = vpop.f32.mrb[0].mxu0
        %v647 = vadd.f32 %v367, %v646
        %648 = vmatprep.mubr.bf16.mxu0 0
        %649 = vmatmul.mubr.bf16.gmra.mrb[0].mxu0 %v441
        %v650 = vpop.f32.mrb[0].mxu0
        %v651 = vadd.f32 %v363, %v650
        %v652 = vpop.f32.mrb[0].mxu0
        %v653 = vadd.f32 %v367, %v652
        %v654 = vpop.f32.mrb[0].mxu0
        %v655 = vadd.f32 %v363, %v654
        %v656 = vpop.f32.mrb[0].mxu0
        %v657 = vadd.f32 %v367, %v656
        %658 = vmatprep.mubr.bf16.mxu0 0
        %659 = vmatmul.mubr.bf16.gmra.mrb[0].mxu0 %v442
        %v660 = vpop.f32.mrb[0].mxu0
        %v661 = vadd.f32 %v363, %v660
        %v662 = vpop.f32.mrb[0].mxu0
        %v663 = vadd.f32 %v367, %v662
        %v664 = vpop.f32.mrb[0].mxu0
        %v665 = vadd.f32 %v363, %v664
        %v666 = vpop.f32.mrb[0].mxu0
        %v667 = vadd.f32 %v367, %v666
        %668 = vmatprep.mubr.bf16.mxu0 0
        %669 = vmatmul.mubr.bf16.gmra.mrb[0].mxu0 %v443
        %v670 = vpop.f32.mrb[0].mxu0
        %v671 = vadd.f32 %v363, %v670
        %v672 = vpop.f32.mrb[0].mxu0
        %v673 = vadd.f32 %v367, %v672
        %v674 = vpop.f32.mrb[0].mxu0
        %v675 = vadd.f32 %v363, %v674
        %v676 = vpop.f32.mrb[0].mxu0
        %v677 = vadd.f32 %v367, %v676
        %678 = vmatprep.mubr.bf16.mxu0 0
        %679 = vmatmul.mubr.bf16.gmra.mrb[0].mxu0 %v444
        %v680 = vpop.f32.mrb[0].mxu0
        %v681 = vadd.f32 %v363, %v680
        %v682 = vpop.f32.mrb[0].mxu0
        %v683 = vadd.f32 %v367, %v682
        %v684 = vpop.f32.mrb[0].mxu0
        %v685 = vadd.f32 %v363, %v684
        %v686 = vpop.f32.mrb[0].mxu0
        %v687 = vadd.f32 %v367, %v686
        %688 = vmatprep.mubr.bf16.mxu0 0
        %689 = vmatmul.mubr.bf16.gmra.mrb[0].mxu0 %v445
        %v690 = vpop.f32.mrb[0].mxu0
        %v691 = vadd.f32 %v363, %v690
        %v692 = vpop.f32.mrb[0].mxu0
        %v693 = vadd.f32 %v367, %v692
        %v694 = vpop.f32.mrb[0].mxu0
        %v695 = vadd.f32 %v363, %v694
        %v696 = vpop.f32.mrb[0].mxu0
        %v697 = vadd.f32 %v367, %v696
        %698 = vmatprep.mubr.bf16.mxu0 0
        %699 = vmatmul.mubr.bf16.gmra.mrb[0].mxu0 %v446
        %v700 = vpop.f32.mrb[0].mxu0
        %v701 = vadd.f32 %v363, %v700
        %v702 = vpop.f32.mrb[0].mxu0
        %v703 = vadd.f32 %v367, %v702
        %v704 = vpop.f32.mrb[0].mxu0
        %v705 = vadd.f32 %v363, %v704
        %v706 = vpop.f32.mrb[0].mxu0
        %v707 = vadd.f32 %v367, %v706
        %708 = vmatprep.mubr.bf16.mxu0 0
        %709 = vmatmul.mubr.bf16.gmra.mrb[0].mxu0 %v447
        %v710 = vpop.f32.mrb[0].mxu0
        %v711 = vadd.f32 %v363, %v710
        %v712 = vpop.f32.mrb[0].mxu0
        %v713 = vadd.f32 %v367, %v712
        %v714 = vpop.f32.mrb[0].mxu0
        %v715 = vadd.f32 %v363, %v714
        %v716 = vpop.f32.mrb[0].mxu0
        %v717 = vadd.f32 %v367, %v716
        %718 = vmatprep.mubr.bf16.mxu0 0
        %719 = vmatmul.mubr.bf16.gmra.mrb[0].mxu0 %v448
        %v720 = vpop.f32.mrb[0].mxu0
        %v721 = vadd.f32 %v363, %v720
        %v722 = vpop.f32.mrb[0].mxu0
        %v723 = vadd.f32 %v367, %v722
        %v724 = vpop.f32.mrb[0].mxu0
        %v725 = vadd.f32 %v363, %v724
        %v726 = vpop.f32.mrb[0].mxu0
        %v727 = vadd.f32 %v367, %v726
        %728 = vmatprep.mubr.bf16.mxu0 0
        %729 = vmatmul.mubr.bf16.gmra.mrb[0].mxu0 %v449
        %v730 = vpop.f32.mrb[0].mxu0
        %v731 = vadd.f32 %v363, %v730
        %v732 = vpop.f32.mrb[0].mxu0
        %v733 = vadd.f32 %v367, %v732
        %v734 = vpop.f32.mrb[0].mxu0
        %v735 = vadd.f32 %v363, %v734
        %v736 = vpop.f32.mrb[0].mxu0
        %v737 = vadd.f32 %v367, %v736
        %738 = vdwg.mxu0
        %v739 = vmax.f32 %v581, 0.0
        %v740 = vmax.f32 %v583, 0.0
        %v741 = vmax.f32 %v585, 0.0
        %v742 = vmax.f32 %v587, 0.0
        %v743 = vmax.f32 %v591, 0.0
        %v744 = vmax.f32 %v593, 0.0
        %v745 = vmax.f32 %v595, 0.0
        %v746 = vmax.f32 %v597, 0.0
        %v747 = vmax.f32 %v601, 0.0
        %v748 = vmax.f32 %v603, 0.0
        %v749 = vmax.f32 %v605, 0.0
        %v750 = vmax.f32 %v607, 0.0
        %v751 = vmax.f32 %v611, 0.0
        %v752 = vmax.f32 %v613, 0.0
        %v753 = vmax.f32 %v615, 0.0
        %v754 = vmax.f32 %v617, 0.0
        %v755 = vmax.f32 %v621, 0.0
        %v756 = vmax.f32 %v623, 0.0
        %v757 = vmax.f32 %v625, 0.0
        %v758 = vmax.f32 %v627, 0.0
        %v759 = vmax.f32 %v631, 0.0
        %v760 = vmax.f32 %v633, 0.0
        %v761 = vmax.f32 %v635, 0.0
        %v762 = vmax.f32 %v637, 0.0
        %v763 = vmax.f32 %v641, 0.0
        %v764 = vmax.f32 %v643, 0.0
        %v765 = vmax.f32 %v645, 0.0
        %v766 = vmax.f32 %v647, 0.0
        %v767 = vmax.f32 %v651, 0.0
        %v768 = vmax.f32 %v653, 0.0
        %v769 = vmax.f32 %v655, 0.0
        %v770 = vmax.f32 %v657, 0.0
        %v771 = vmax.f32 %v661, 0.0
        %v772 = vmax.f32 %v663, 0.0
        %v773 = vmax.f32 %v665, 0.0
        %v774 = vmax.f32 %v667, 0.0
        %v775 = vmax.f32 %v671, 0.0
        %v776 = vmax.f32 %v673, 0.0
        %v777 = vmax.f32 %v675, 0.0
        %v778 = vmax.f32 %v677, 0.0
        %v779 = vmax.f32 %v681, 0.0
        %v780 = vmax.f32 %v683, 0.0
        %v781 = vmax.f32 %v685, 0.0
        %v782 = vmax.f32 %v687, 0.0
        %v783 = vmax.f32 %v691, 0.0
        %v784 = vmax.f32 %v693, 0.0
        %v785 = vmax.f32 %v695, 0.0
        %v786 = vmax.f32 %v697, 0.0
        %v787 = vmax.f32 %v701, 0.0
        %v788 = vmax.f32 %v703, 0.0
        %v789 = vmax.f32 %v705, 0.0
        %v790 = vmax.f32 %v707, 0.0
        %v791 = vmax.f32 %v711, 0.0
        %v792 = vmax.f32 %v713, 0.0
        %v793 = vmax.f32 %v715, 0.0
        %v794 = vmax.f32 %v717, 0.0
        %v795 = vmax.f32 %v721, 0.0
        %v796 = vmax.f32 %v723, 0.0
        %v797 = vmax.f32 %v725, 0.0
        %v798 = vmax.f32 %v727, 0.0
        %v799 = vmax.f32 %v731, 0.0
        %v800 = vmax.f32 %v733, 0.0
        %v801 = vmax.f32 %v735, 0.0
        %v802 = vmax.f32 %v737, 0.0
        %v803 = vpack.c.bf16 %v741, %v739
        %v804 = vpack.c.bf16 %v742, %v740
        %v805 = vpack.c.bf16 %v745, %v743
        %v806 = vpack.c.bf16 %v746, %v744
        %v807 = vpack.c.bf16 %v749, %v747
        %v808 = vpack.c.bf16 %v750, %v748
        %v809 = vpack.c.bf16 %v753, %v751
        %v810 = vpack.c.bf16 %v754, %v752
        %v811 = vpack.c.bf16 %v757, %v755
        %v812 = vpack.c.bf16 %v758, %v756
        %v813 = vpack.c.bf16 %v761, %v759
        %v814 = vpack.c.bf16 %v762, %v760
        %v815 = vpack.c.bf16 %v765, %v763
        %v816 = vpack.c.bf16 %v766, %v764
        %v817 = vpack.c.bf16 %v769, %v767
        %v818 = vpack.c.bf16 %v770, %v768
        %v819 = vpack.c.bf16 %v773, %v771
        %v820 = vpack.c.bf16 %v774, %v772
        %v821 = vpack.c.bf16 %v777, %v775
        %v822 = vpack.c.bf16 %v778, %v776
        %v823 = vpack.c.bf16 %v781, %v779
        %v824 = vpack.c.bf16 %v782, %v780
        %v825 = vpack.c.bf16 %v785, %v783
        %v826 = vpack.c.bf16 %v786, %v784
        %v827 = vpack.c.bf16 %v789, %v787
        %v828 = vpack.c.bf16 %v790, %v788
        %v829 = vpack.c.bf16 %v793, %v791
        %v830 = vpack.c.bf16 %v794, %v792
        %v831 = vpack.c.bf16 %v797, %v795
        %v832 = vpack.c.bf16 %v798, %v796
        %v833 = vpack.c.bf16 %v801, %v799
        %v834 = vpack.c.bf16 %v802, %v800
        %v835 = vld [vmem:[%s4] sm:$0xf]
        %v836 = vld [vmem:[%s4 + $0x4] sm:$0xf]
        %v837 = vld [vmem:[%s4 + $0x8] sm:$0xf]
        %v838 = vld [vmem:[%s4 + $0xc] sm:$0xf]
        %v839 = vld [vmem:[%s4 + $0x10] sm:$0xf]
        %v840 = vld [vmem:[%s4 + $0x14] sm:$0xf]
        %v841 = vld [vmem:[%s4 + $0x18] sm:$0xf]
        %v842 = vld [vmem:[%s4 + $0x1c] sm:$0xf]
        %v843 = vld [vmem:[%s4 + $0x20] sm:$0xf]
        %v844 = vld [vmem:[%s4 + $0x24] sm:$0xf]
        %v845 = vld [vmem:[%s4 + $0x28] sm:$0xf]
        %v846 = vld [vmem:[%s4 + $0x2c] sm:$0xf]
        %v847 = vld [vmem:[%s4 + $0x30] sm:$0xf]
        %v848 = vld [vmem:[%s4 + $0x34] sm:$0xf]
        %v849 = vld [vmem:[%s4 + $0x38] sm:$0xf]
        %v850 = vld [vmem:[%s4 + $0x3c] sm:$0xf]
        %v851 = vld [vmem:[%s4 + $0x40] sm:$0xf]
        %v852 = vld [vmem:[%s4 + $0x44] sm:$0xf]
        %v853 = vld [vmem:[%s4 + $0x48] sm:$0xf]
        %v854 = vld [vmem:[%s4 + $0x4c] sm:$0xf]
        %v855 = vld [vmem:[%s4 + $0x50] sm:$0xf]
        %v856 = vld [vmem:[%s4 + $0x54] sm:$0xf]
        %v857 = vld [vmem:[%s4 + $0x58] sm:$0xf]
        %v858 = vld [vmem:[%s4 + $0x5c] sm:$0xf]
        %v859 = vld [vmem:[%s4 + $0x60] sm:$0xf]
        %v860 = vld [vmem:[%s4 + $0x64] sm:$0xf]
        %v861 = vld [vmem:[%s4 + $0x68] sm:$0xf]
        %v862 = vld [vmem:[%s4 + $0x6c] sm:$0xf]
        %v863 = vld [vmem:[%s4 + $0x70] sm:$0xf]
        %v864 = vld [vmem:[%s4 + $0x74] sm:$0xf]
        %v865 = vld [vmem:[%s4 + $0x78] sm:$0xf]
        %v866 = vld [vmem:[%s4 + $0x7c] sm:$0xf]
        %v867 = vld [vmem:[%s5] sm:$0x1]
        %v869 = vlaneseq
        %v870 = vshrl.u32 %v869, 7
        %v871 = vsub.s32 0, %v870
        %v872 = vrot.slane %v867, %v871
        %v906 = vunpack.c.l.b16 %v835
        %v907 = vunpack.c.l.b16 %v836
        %v908 = vunpack.c.l.b16 %v837
        %v909 = vunpack.c.l.b16 %v838
        %v910 = vunpack.c.l.b16 %v839
        %v911 = vunpack.c.l.b16 %v840
        %v912 = vunpack.c.l.b16 %v841
        %v913 = vunpack.c.l.b16 %v842
        %v914 = vunpack.c.l.b16 %v843
        %v915 = vunpack.c.l.b16 %v844
        %v916 = vunpack.c.l.b16 %v845
        %v917 = vunpack.c.l.b16 %v846
        %v918 = vunpack.c.l.b16 %v847
        %v919 = vunpack.c.l.b16 %v848
        %v920 = vunpack.c.l.b16 %v849
        %v921 = vunpack.c.l.b16 %v850
        %v922 = vunpack.c.l.b16 %v851
        %v923 = vunpack.c.l.b16 %v852
        %v924 = vunpack.c.l.b16 %v853
        %v925 = vunpack.c.l.b16 %v854
        %v926 = vunpack.c.l.b16 %v855
        %v927 = vunpack.c.l.b16 %v856
        %v928 = vunpack.c.l.b16 %v857
        %v929 = vunpack.c.l.b16 %v858
        %v930 = vunpack.c.l.b16 %v859
        %v931 = vunpack.c.l.b16 %v860
        %v932 = vunpack.c.l.b16 %v861
        %v933 = vunpack.c.l.b16 %v862
        %v934 = vunpack.c.l.b16 %v863
        %v935 = vunpack.c.l.b16 %v864
        %v936 = vunpack.c.l.b16 %v865
        %v937 = vunpack.c.l.b16 %v866
        %v938 = vpack.c.b16 %v907, %v906
        %v939 = vpack.c.b16 %v909, %v908
        %v940 = vpack.c.b16 %v911, %v910
        %v941 = vpack.c.b16 %v913, %v912
        %v942 = vpack.c.b16 %v915, %v914
        %v943 = vpack.c.b16 %v917, %v916
        %v944 = vpack.c.b16 %v919, %v918
        %v945 = vpack.c.b16 %v921, %v920
        %v946 = vpack.c.b16 %v923, %v922
        %v947 = vpack.c.b16 %v925, %v924
        %v948 = vpack.c.b16 %v927, %v926
        %v949 = vpack.c.b16 %v929, %v928
        %v950 = vpack.c.b16 %v931, %v930
        %v951 = vpack.c.b16 %v933, %v932
        %v952 = vpack.c.b16 %v935, %v934
        %v953 = vpack.c.b16 %v937, %v936
        %970 = vmatprep.subr.bf16.mxu0 0
        %971 = vmatpush1.bf16.msra.mxu0 %v938
        %972 = vmatprep.subr.bf16.mxu0 0
        %973 = vmatpush1.bf16.msra.mxu0 %v939
        %974 = vmatprep.subr.bf16.mxu0 0
        %975 = vmatpush1.bf16.msra.mxu0 %v940
        %976 = vmatprep.subr.bf16.mxu0 0
        %977 = vmatpush1.bf16.msra.mxu0 %v941
        %978 = vmatprep.subr.bf16.mxu0 0
        %979 = vmatpush1.bf16.msra.mxu0 %v942
        %980 = vmatprep.subr.bf16.mxu0 0
        %981 = vmatpush1.bf16.msra.mxu0 %v943
        %982 = vmatprep.subr.bf16.mxu0 0
        %983 = vmatpush1.bf16.msra.mxu0 %v944
        %984 = vmatprep.subr.bf16.mxu0 0
        %985 = vmatpush1.bf16.msra.mxu0 %v945
        %986 = vmatprep.subr.bf16.mxu0 0
        %987 = vmatpush1.bf16.msra.mxu0 %v946
        %988 = vmatprep.subr.bf16.mxu0 0
        %989 = vmatpush1.bf16.msra.mxu0 %v947
        %990 = vmatprep.subr.bf16.mxu0 0
        %991 = vmatpush1.bf16.msra.mxu0 %v948
        %992 = vmatprep.subr.bf16.mxu0 0
        %993 = vmatpush1.bf16.msra.mxu0 %v949
        %994 = vmatprep.subr.bf16.mxu0 0
        %995 = vmatpush1.bf16.msra.mxu0 %v950
        %996 = vmatprep.subr.bf16.mxu0 0
        %997 = vmatpush1.bf16.msra.mxu0 %v951
        %998 = vmatprep.subr.bf16.mxu0 0
        %999 = vmatpush1.bf16.msra.mxu0 %v952
        %1000 = vmatprep.subr.bf16.mxu0 0
        %1001 = vmatpush1.bf16.msra.mxu0 %v953
        %1002 = vmatprep.mubr.bf16.mxu0 %v804
        %1003 = vmatmul.mubr.bf16.gmra.mrb[0].mxu0 %v803
        %v1004 = vpop.f32.mrb[0].mxu0
        %v1005 = vadd.f32 %v872, %v1004
        %v1006 = vpop.f32.mrb[0].mxu0
        %v1007 = vpop.f32.mrb[0].mxu0
        %v1008 = vadd.f32 %v872, %v1007
        %v1009 = vpop.f32.mrb[0].mxu0
        %1010 = vmatprep.mubr.bf16.mxu0 %v806
        %1011 = vmatmul.mubr.bf16.gmra.mrb[0].mxu0 %v805
        %v1012 = vpop.f32.mrb[0].mxu0
        %v1013 = vadd.f32 %v872, %v1012
        %v1014 = vpop.f32.mrb[0].mxu0
        %v1015 = vpop.f32.mrb[0].mxu0
        %v1016 = vadd.f32 %v872, %v1015
        %v1017 = vpop.f32.mrb[0].mxu0
        %1018 = vmatprep.mubr.bf16.mxu0 %v808
        %1019 = vmatmul.mubr.bf16.gmra.mrb[0].mxu0 %v807
        %v1020 = vpop.f32.mrb[0].mxu0
        %v1021 = vadd.f32 %v872, %v1020
        %v1022 = vpop.f32.mrb[0].mxu0
        %v1023 = vpop.f32.mrb[0].mxu0
        %v1024 = vadd.f32 %v872, %v1023
        %v1025 = vpop.f32.mrb[0].mxu0
        %1026 = vmatprep.mubr.bf16.mxu0 %v810
        %1027 = vmatmul.mubr.bf16.gmra.mrb[0].mxu0 %v809
        %v1028 = vpop.f32.mrb[0].mxu0
        %v1029 = vadd.f32 %v872, %v1028
        %v1030 = vpop.f32.mrb[0].mxu0
        %v1031 = vpop.f32.mrb[0].mxu0
        %v1032 = vadd.f32 %v872, %v1031
        %v1033 = vpop.f32.mrb[0].mxu0
        %1034 = vmatprep.mubr.bf16.mxu0 %v812
        %1035 = vmatmul.mubr.bf16.gmra.mrb[0].mxu0 %v811
        %v1036 = vpop.f32.mrb[0].mxu0
        %v1037 = vadd.f32 %v872, %v1036
        %v1038 = vpop.f32.mrb[0].mxu0
        %v1039 = vpop.f32.mrb[0].mxu0
        %v1040 = vadd.f32 %v872, %v1039
        %v1041 = vpop.f32.mrb[0].mxu0
        %1042 = vmatprep.mubr.bf16.mxu0 %v814
        %1043 = vmatmul.mubr.bf16.gmra.mrb[0].mxu0 %v813
        %v1044 = vpop.f32.mrb[0].mxu0
        %v1045 = vadd.f32 %v872, %v1044
        %v1046 = vpop.f32.mrb[0].mxu0
        %v1047 = vpop.f32.mrb[0].mxu0
        %v1048 = vadd.f32 %v872, %v1047
        %v1049 = vpop.f32.mrb[0].mxu0
        %1050 = vmatprep.mubr.bf16.mxu0 %v816
        %1051 = vmatmul.mubr.bf16.gmra.mrb[0].mxu0 %v815
        %v1052 = vpop.f32.mrb[0].mxu0
        %v1053 = vadd.f32 %v872, %v1052
        %v1054 = vpop.f32.mrb[0].mxu0
        %v1055 = vpop.f32.mrb[0].mxu0
        %v1056 = vadd.f32 %v872, %v1055
        %v1057 = vpop.f32.mrb[0].mxu0
        %1058 = vmatprep.mubr.bf16.mxu0 %v818
        %1059 = vmatmul.mubr.bf16.gmra.mrb[0].mxu0 %v817
        %v1060 = vpop.f32.mrb[0].mxu0
        %v1061 = vadd.f32 %v872, %v1060
        %v1062 = vpop.f32.mrb[0].mxu0
        %v1063 = vpop.f32.mrb[0].mxu0
        %v1064 = vadd.f32 %v872, %v1063
        %v1065 = vpop.f32.mrb[0].mxu0
        %1066 = vmatprep.mubr.bf16.mxu0 %v820
        %1067 = vmatmul.mubr.bf16.gmra.mrb[0].mxu0 %v819
        %v1068 = vpop.f32.mrb[0].mxu0
        %v1069 = vadd.f32 %v872, %v1068
        %v1070 = vpop.f32.mrb[0].mxu0
        %v1071 = vpop.f32.mrb[0].mxu0
        %v1072 = vadd.f32 %v872, %v1071
        %v1073 = vpop.f32.mrb[0].mxu0
        %1074 = vmatprep.mubr.bf16.mxu0 %v822
        %1075 = vmatmul.mubr.bf16.gmra.mrb[0].mxu0 %v821
        %v1076 = vpop.f32.mrb[0].mxu0
        %v1077 = vadd.f32 %v872, %v1076
        %v1078 = vpop.f32.mrb[0].mxu0
        %v1079 = vpop.f32.mrb[0].mxu0
        %v1080 = vadd.f32 %v872, %v1079
        %v1081 = vpop.f32.mrb[0].mxu0
        %1082 = vmatprep.mubr.bf16.mxu0 %v824
        %1083 = vmatmul.mubr.bf16.gmra.mrb[0].mxu0 %v823
        %v1084 = vpop.f32.mrb[0].mxu0
        %v1085 = vadd.f32 %v872, %v1084
        %v1086 = vpop.f32.mrb[0].mxu0
        %v1087 = vpop.f32.mrb[0].mxu0
        %v1088 = vadd.f32 %v872, %v1087
        %v1089 = vpop.f32.mrb[0].mxu0
        %1090 = vmatprep.mubr.bf16.mxu0 %v826
        %1091 = vmatmul.mubr.bf16.gmra.mrb[0].mxu0 %v825
        %v1092 = vpop.f32.mrb[0].mxu0
        %v1093 = vadd.f32 %v872, %v1092
        %v1094 = vpop.f32.mrb[0].mxu0
        %v1095 = vpop.f32.mrb[0].mxu0
        %v1096 = vadd.f32 %v872, %v1095
        %v1097 = vpop.f32.mrb[0].mxu0
        %1098 = vmatprep.mubr.bf16.mxu0 %v828
        %1099 = vmatmul.mubr.bf16.gmra.mrb[0].mxu0 %v827
        %v1100 = vpop.f32.mrb[0].mxu0
        %v1101 = vadd.f32 %v872, %v1100
        %v1102 = vpop.f32.mrb[0].mxu0
        %v1103 = vpop.f32.mrb[0].mxu0
        %v1104 = vadd.f32 %v872, %v1103
        %v1105 = vpop.f32.mrb[0].mxu0
        %1106 = vmatprep.mubr.bf16.mxu0 %v830
        %1107 = vmatmul.mubr.bf16.gmra.mrb[0].mxu0 %v829
        %v1108 = vpop.f32.mrb[0].mxu0
        %v1109 = vadd.f32 %v872, %v1108
        %v1110 = vpop.f32.mrb[0].mxu0
        %v1111 = vpop.f32.mrb[0].mxu0
        %v1112 = vadd.f32 %v872, %v1111
        %v1113 = vpop.f32.mrb[0].mxu0
        %1114 = vmatprep.mubr.bf16.mxu0 %v832
        %1115 = vmatmul.mubr.bf16.gmra.mrb[0].mxu0 %v831
        %v1116 = vpop.f32.mrb[0].mxu0
        %v1117 = vadd.f32 %v872, %v1116
        %v1118 = vpop.f32.mrb[0].mxu0
        %v1119 = vpop.f32.mrb[0].mxu0
        %v1120 = vadd.f32 %v872, %v1119
        %v1121 = vpop.f32.mrb[0].mxu0
        %1122 = vmatprep.mubr.bf16.mxu0 %v834
        %1123 = vmatmul.mubr.bf16.gmra.mrb[0].mxu0 %v833
        %v1124 = vpop.f32.mrb[0].mxu0
        %v1125 = vadd.f32 %v872, %v1124
        %v1126 = vpop.f32.mrb[0].mxu0
        %v1127 = vpop.f32.mrb[0].mxu0
        %v1128 = vadd.f32 %v872, %v1127
        %v1129 = vpop.f32.mrb[0].mxu0
        %1130 = vdwg.mxu0
        %vm1131 = vcmp.eq.s32.totalorder %v341, 0
        %v1132 = vsel %vm1131, %v308, 0.0
        %v1133 = vsel %vm1131, %v309, 0.0
        %v1134 = vsel %vm1131, %v310, 0.0
        %v1135 = vsel %vm1131, %v311, 0.0
        %v1136 = vsel %vm1131, %v312, 0.0
        %v1137 = vsel %vm1131, %v313, 0.0
        %v1138 = vsel %vm1131, %v314, 0.0
        %v1139 = vsel %vm1131, %v315, 0.0
        %v1140 = vsel %vm1131, %v316, 0.0
        %v1141 = vsel %vm1131, %v317, 0.0
        %v1142 = vsel %vm1131, %v318, 0.0
        %v1143 = vsel %vm1131, %v319, 0.0
        %v1144 = vsel %vm1131, %v320, 0.0
        %v1145 = vsel %vm1131, %v321, 0.0
        %v1146 = vsel %vm1131, %v322, 0.0
        %v1147 = vsel %vm1131, %v323, 0.0
        %v1148 = vsel %vm1131, %v324, 0.0
        %v1149 = vsel %vm1131, %v325, 0.0
        %v1150 = vsel %vm1131, %v326, 0.0
        %v1151 = vsel %vm1131, %v327, 0.0
        %v1152 = vsel %vm1131, %v328, 0.0
        %v1153 = vsel %vm1131, %v329, 0.0
        %v1154 = vsel %vm1131, %v330, 0.0
        %v1155 = vsel %vm1131, %v331, 0.0
        %v1156 = vsel %vm1131, %v332, 0.0
        %v1157 = vsel %vm1131, %v333, 0.0
        %v1158 = vsel %vm1131, %v334, 0.0
        %v1159 = vsel %vm1131, %v335, 0.0
        %v1160 = vsel %vm1131, %v336, 0.0
        %v1161 = vsel %vm1131, %v337, 0.0
        %v1162 = vsel %vm1131, %v338, 0.0
        %v1163 = vsel %vm1131, %v339, 0.0
        %vm1164 = vcmask 31744
        %v1165 = vsel %vm1164, %v1132, 0.0
        %1166 = vadd.xlane.f32.xlu0 %v1165
        %v1167 = vpop.xlane.xlu0 %1166
        %v1168 = vsel %vm1164, %v1133, 0.0
        %1169 = vadd.xlane.f32.xlu0 %v1168
        %v1170 = vpop.xlane.xlu0 %1169
        %v1171 = vsel %vm1164, %v1134, 0.0
        %1172 = vadd.xlane.f32.xlu0 %v1171
        %v1173 = vpop.xlane.xlu0 %1172
        %v1174 = vsel %vm1164, %v1135, 0.0
        %1175 = vadd.xlane.f32.xlu0 %v1174
        %v1176 = vpop.xlane.xlu0 %1175
        %v1177 = vsel %vm1164, %v1136, 0.0
        %1178 = vadd.xlane.f32.xlu0 %v1177
        %v1179 = vpop.xlane.xlu0 %1178
        %v1180 = vsel %vm1164, %v1137, 0.0
        %1181 = vadd.xlane.f32.xlu0 %v1180
        %v1182 = vpop.xlane.xlu0 %1181
        %v1183 = vsel %vm1164, %v1138, 0.0
        %1184 = vadd.xlane.f32.xlu0 %v1183
        %v1185 = vpop.xlane.xlu0 %1184
        %v1186 = vsel %vm1164, %v1139, 0.0
        %1187 = vadd.xlane.f32.xlu0 %v1186
        %v1188 = vpop.xlane.xlu0 %1187
        %v1189 = vsel %vm1164, %v1140, 0.0
        %1190 = vadd.xlane.f32.xlu0 %v1189
        %v1191 = vpop.xlane.xlu0 %1190
        %v1192 = vsel %vm1164, %v1141, 0.0
        %1193 = vadd.xlane.f32.xlu0 %v1192
        %v1194 = vpop.xlane.xlu0 %1193
        %v1195 = vsel %vm1164, %v1142, 0.0
        %1196 = vadd.xlane.f32.xlu0 %v1195
        %v1197 = vpop.xlane.xlu0 %1196
        %v1198 = vsel %vm1164, %v1143, 0.0
        %1199 = vadd.xlane.f32.xlu0 %v1198
        %v1200 = vpop.xlane.xlu0 %1199
        %v1201 = vsel %vm1164, %v1144, 0.0
        %1202 = vadd.xlane.f32.xlu0 %v1201
        %v1203 = vpop.xlane.xlu0 %1202
        %v1204 = vsel %vm1164, %v1145, 0.0
        %1205 = vadd.xlane.f32.xlu0 %v1204
        %v1206 = vpop.xlane.xlu0 %1205
        %v1207 = vsel %vm1164, %v1146, 0.0
        %1208 = vadd.xlane.f32.xlu0 %v1207
        %v1209 = vpop.xlane.xlu0 %1208
        %v1210 = vsel %vm1164, %v1147, 0.0
        %1211 = vadd.xlane.f32.xlu0 %v1210
        %v1212 = vpop.xlane.xlu0 %1211
        %v1213 = vsel %vm1164, %v1148, 0.0
        %1214 = vadd.xlane.f32.xlu0 %v1213
        %v1215 = vpop.xlane.xlu0 %1214
        %v1216 = vsel %vm1164, %v1149, 0.0
        %1217 = vadd.xlane.f32.xlu0 %v1216
        %v1218 = vpop.xlane.xlu0 %1217
        %v1219 = vsel %vm1164, %v1150, 0.0
        %1220 = vadd.xlane.f32.xlu0 %v1219
        %v1221 = vpop.xlane.xlu0 %1220
        %v1222 = vsel %vm1164, %v1151, 0.0
        %1223 = vadd.xlane.f32.xlu0 %v1222
        %v1224 = vpop.xlane.xlu0 %1223
        %v1225 = vsel %vm1164, %v1152, 0.0
        %1226 = vadd.xlane.f32.xlu0 %v1225
        %v1227 = vpop.xlane.xlu0 %1226
        %v1228 = vsel %vm1164, %v1153, 0.0
        %1229 = vadd.xlane.f32.xlu0 %v1228
        %v1230 = vpop.xlane.xlu0 %1229
        %v1231 = vsel %vm1164, %v1154, 0.0
        %1232 = vadd.xlane.f32.xlu0 %v1231
        %v1233 = vpop.xlane.xlu0 %1232
        %v1234 = vsel %vm1164, %v1155, 0.0
        %1235 = vadd.xlane.f32.xlu0 %v1234
        %v1236 = vpop.xlane.xlu0 %1235
        %v1237 = vsel %vm1164, %v1156, 0.0
        %1238 = vadd.xlane.f32.xlu0 %v1237
        %v1239 = vpop.xlane.xlu0 %1238
        %v1240 = vsel %vm1164, %v1157, 0.0
        %1241 = vadd.xlane.f32.xlu0 %v1240
        %v1242 = vpop.xlane.xlu0 %1241
        %v1243 = vsel %vm1164, %v1158, 0.0
        %1244 = vadd.xlane.f32.xlu0 %v1243
        %v1245 = vpop.xlane.xlu0 %1244
        %v1246 = vsel %vm1164, %v1159, 0.0
        %1247 = vadd.xlane.f32.xlu0 %v1246
        %v1248 = vpop.xlane.xlu0 %1247
        %v1249 = vsel %vm1164, %v1160, 0.0
        %1250 = vadd.xlane.f32.xlu0 %v1249
        %v1251 = vpop.xlane.xlu0 %1250
        %v1252 = vsel %vm1164, %v1161, 0.0
        %1253 = vadd.xlane.f32.xlu0 %v1252
        %v1254 = vpop.xlane.xlu0 %1253
        %v1255 = vsel %vm1164, %v1162, 0.0
        %1256 = vadd.xlane.f32.xlu0 %v1255
        %v1257 = vpop.xlane.xlu0 %1256
        %v1258 = vsel %vm1164, %v1163, 0.0
        %1259 = vadd.xlane.f32.xlu0 %v1258
        %v1260 = vpop.xlane.xlu0 %1259
        %v1261 = vmul.f32 %v1167, %v1005
        %v1262 = vmul.f32 %v1170, %v1008
        %v1263 = vmul.f32 %v1173, %v1013
        %v1264 = vmul.f32 %v1176, %v1016
        %v1265 = vmul.f32 %v1179, %v1021
        %v1266 = vmul.f32 %v1182, %v1024
        %v1267 = vmul.f32 %v1185, %v1029
        %v1268 = vmul.f32 %v1188, %v1032
        %v1269 = vmul.f32 %v1191, %v1037
        %v1270 = vmul.f32 %v1194, %v1040
        %v1271 = vmul.f32 %v1197, %v1045
        %v1272 = vmul.f32 %v1200, %v1048
        %v1273 = vmul.f32 %v1203, %v1053
        %v1274 = vmul.f32 %v1206, %v1056
        %v1275 = vmul.f32 %v1209, %v1061
        %v1276 = vmul.f32 %v1212, %v1064
        %v1277 = vmul.f32 %v1215, %v1069
        %v1278 = vmul.f32 %v1218, %v1072
        %v1279 = vmul.f32 %v1221, %v1077
        %v1280 = vmul.f32 %v1224, %v1080
        %v1281 = vmul.f32 %v1227, %v1085
        %v1282 = vmul.f32 %v1230, %v1088
        %v1283 = vmul.f32 %v1233, %v1093
        %v1284 = vmul.f32 %v1236, %v1096
        %v1285 = vmul.f32 %v1239, %v1101
        %v1286 = vmul.f32 %v1242, %v1104
        %v1287 = vmul.f32 %v1245, %v1109
        %v1288 = vmul.f32 %v1248, %v1112
        %v1289 = vmul.f32 %v1251, %v1117
        %v1290 = vmul.f32 %v1254, %v1120
        %v1291 = vmul.f32 %v1257, %v1125
        %v1292 = vmul.f32 %v1260, %v1128
        %v1293 = vadd.f32 %v1261, 0.0
        %v1294 = vadd.f32 %v1262, 0.0
        %v1295 = vadd.f32 %v1263, 0.0
        %v1296 = vadd.f32 %v1264, 0.0
        %v1297 = vadd.f32 %v1265, 0.0
        %v1298 = vadd.f32 %v1266, 0.0
        %v1299 = vadd.f32 %v1267, 0.0
        %v1300 = vadd.f32 %v1268, 0.0
        %v1301 = vadd.f32 %v1269, 0.0
        %v1302 = vadd.f32 %v1270, 0.0
        %v1303 = vadd.f32 %v1271, 0.0
        %v1304 = vadd.f32 %v1272, 0.0
        %v1305 = vadd.f32 %v1273, 0.0
        %v1306 = vadd.f32 %v1274, 0.0
        %v1307 = vadd.f32 %v1275, 0.0
        %v1308 = vadd.f32 %v1276, 0.0
        %v1309 = vadd.f32 %v1277, 0.0
        %v1310 = vadd.f32 %v1278, 0.0
        %v1311 = vadd.f32 %v1279, 0.0
        %v1312 = vadd.f32 %v1280, 0.0
        %v1313 = vadd.f32 %v1281, 0.0
        %v1314 = vadd.f32 %v1282, 0.0
        %v1315 = vadd.f32 %v1283, 0.0
        %v1316 = vadd.f32 %v1284, 0.0
        %v1317 = vadd.f32 %v1285, 0.0
        %v1318 = vadd.f32 %v1286, 0.0
        %v1319 = vadd.f32 %v1287, 0.0
        %v1320 = vadd.f32 %v1288, 0.0
        %v1321 = vadd.f32 %v1289, 0.0
        %v1322 = vadd.f32 %v1290, 0.0
        %v1323 = vadd.f32 %v1291, 0.0
        %v1324 = vadd.f32 %v1292, 0.0
        %s1325 = scalar_lea.vmem %s2, 128
        %v1326 = vld [vmem:[%s1325] sm:$0xff]
        %v1327 = vld [vmem:[%s1325 + $0x8] sm:$0xff]
        %v1328 = vld [vmem:[%s1325 + $0x10] sm:$0xff]
        %v1329 = vld [vmem:[%s1325 + $0x18] sm:$0xff]
        %v1330 = vld [vmem:[%s1325 + $0x20] sm:$0xff]
        %v1331 = vld [vmem:[%s1325 + $0x28] sm:$0xff]
        %v1332 = vld [vmem:[%s1325 + $0x30] sm:$0xff]
        %v1333 = vld [vmem:[%s1325 + $0x38] sm:$0xff]
        %v1334 = vld [vmem:[%s1325 + $0x40] sm:$0xff]
        %v1335 = vld [vmem:[%s1325 + $0x48] sm:$0xff]
        %v1336 = vld [vmem:[%s1325 + $0x50] sm:$0xff]
        %v1337 = vld [vmem:[%s1325 + $0x58] sm:$0xff]
        %v1338 = vld [vmem:[%s1325 + $0x60] sm:$0xff]
        %v1339 = vld [vmem:[%s1325 + $0x68] sm:$0xff]
        %v1340 = vld [vmem:[%s1325 + $0x70] sm:$0xff]
        %v1341 = vld [vmem:[%s1325 + $0x78] sm:$0xff]
        %s1342 = scalar_lea.vmem %s3, 2
        %v1343 = vld [vmem:[%s1342] sm:$0x3]
        %v1345 = vlaneseq
        %v1346 = vshrl.u32 %v1345, 7
        %v1347 = vsub.s32 0, %v1346
        %v1348 = vrot.slane %v1343, %v1347
        %v1349 = vlaneseq
        %v1350 = vshrl.u32 %v1349, 7
        %v1351 = vsub.s32 1, %v1350
        %v1352 = vrot.slane %v1343, %v1351
        %v1371 = vunpack.c.l.b16 %v1326
        %v1372 = vunpack.c.h.b16 %v1326
        %v1373 = vunpack.c.l.b16 %v1327
        %v1374 = vunpack.c.h.b16 %v1327
        %v1375 = vunpack.c.l.b16 %v1328
        %v1376 = vunpack.c.h.b16 %v1328
        %v1377 = vunpack.c.l.b16 %v1329
        %v1378 = vunpack.c.h.b16 %v1329
        %v1379 = vunpack.c.l.b16 %v1330
        %v1380 = vunpack.c.h.b16 %v1330
        %v1381 = vunpack.c.l.b16 %v1331
        %v1382 = vunpack.c.h.b16 %v1331
        %v1383 = vunpack.c.l.b16 %v1332
        %v1384 = vunpack.c.h.b16 %v1332
        %v1385 = vunpack.c.l.b16 %v1333
        %v1386 = vunpack.c.h.b16 %v1333
        %v1387 = vunpack.c.l.b16 %v1334
        %v1388 = vunpack.c.h.b16 %v1334
        %v1389 = vunpack.c.l.b16 %v1335
        %v1390 = vunpack.c.h.b16 %v1335
        %v1391 = vunpack.c.l.b16 %v1336
        %v1392 = vunpack.c.h.b16 %v1336
        %v1393 = vunpack.c.l.b16 %v1337
        %v1394 = vunpack.c.h.b16 %v1337
        %v1395 = vunpack.c.l.b16 %v1338
        %v1396 = vunpack.c.h.b16 %v1338
        %v1397 = vunpack.c.l.b16 %v1339
        %v1398 = vunpack.c.h.b16 %v1339
        %v1399 = vunpack.c.l.b16 %v1340
        %v1400 = vunpack.c.h.b16 %v1340
        %v1401 = vunpack.c.l.b16 %v1341
        %v1402 = vunpack.c.h.b16 %v1341
        %v1403 = vpack.c.b16 %v1373, %v1371
        %v1404 = vpack.c.b16 %v1374, %v1372
        %v1405 = vpack.c.b16 %v1377, %v1375
        %v1406 = vpack.c.b16 %v1378, %v1376
        %v1407 = vpack.c.b16 %v1381, %v1379
        %v1408 = vpack.c.b16 %v1382, %v1380
        %v1409 = vpack.c.b16 %v1385, %v1383
        %v1410 = vpack.c.b16 %v1386, %v1384
        %v1411 = vpack.c.b16 %v1389, %v1387
        %v1412 = vpack.c.b16 %v1390, %v1388
        %v1413 = vpack.c.b16 %v1393, %v1391
        %v1414 = vpack.c.b16 %v1394, %v1392
        %v1415 = vpack.c.b16 %v1397, %v1395
        %v1416 = vpack.c.b16 %v1398, %v1396
        %v1417 = vpack.c.b16 %v1401, %v1399
        %v1418 = vpack.c.b16 %v1402, %v1400
        %1435 = vmatprep.subr.bf16.mxu0 %v1404
        %1436 = vmatpush1.bf16.msra.mxu0 %v1403
        %1437 = vmatprep.subr.bf16.mxu0 %v1406
        %1438 = vmatpush1.bf16.msra.mxu0 %v1405
        %1439 = vmatprep.subr.bf16.mxu0 %v1408
        %1440 = vmatpush1.bf16.msra.mxu0 %v1407
        %1441 = vmatprep.subr.bf16.mxu0 %v1410
        %1442 = vmatpush1.bf16.msra.mxu0 %v1409
        %1443 = vmatprep.subr.bf16.mxu0 %v1412
        %1444 = vmatpush1.bf16.msra.mxu0 %v1411
        %1445 = vmatprep.subr.bf16.mxu0 %v1414
        %1446 = vmatpush1.bf16.msra.mxu0 %v1413
        %1447 = vmatprep.subr.bf16.mxu0 %v1416
        %1448 = vmatpush1.bf16.msra.mxu0 %v1415
        %1449 = vmatprep.subr.bf16.mxu0 %v1418
        %1450 = vmatpush1.bf16.msra.mxu0 %v1417
        %1451 = vmatprep.subr.bf16.mxu0 0
        %1452 = vmatpush1.bf16.msra.mxu0 0
        %1453 = vmatprep.subr.bf16.mxu0 0
        %1454 = vmatpush1.bf16.msra.mxu0 0
        %1455 = vmatprep.subr.bf16.mxu0 0
        %1456 = vmatpush1.bf16.msra.mxu0 0
        %1457 = vmatprep.subr.bf16.mxu0 0
        %1458 = vmatpush1.bf16.msra.mxu0 0
        %1459 = vmatprep.subr.bf16.mxu0 0
        %1460 = vmatpush1.bf16.msra.mxu0 0
        %1461 = vmatprep.subr.bf16.mxu0 0
        %1462 = vmatpush1.bf16.msra.mxu0 0
        %1463 = vmatprep.subr.bf16.mxu0 0
        %1464 = vmatpush1.bf16.msra.mxu0 0
        %1465 = vmatprep.subr.bf16.mxu0 0
        %1466 = vmatpush1.bf16.msra.mxu0 0
        %1467 = vmatprep.mubr.bf16.mxu0 0
        %1468 = vmatmul.mubr.bf16.gmra.mrb[0].mxu0 %v434
        %v1469 = vpop.f32.mrb[0].mxu0
        %v1470 = vadd.f32 %v1348, %v1469
        %v1471 = vpop.f32.mrb[0].mxu0
        %v1472 = vadd.f32 %v1352, %v1471
        %v1473 = vpop.f32.mrb[0].mxu0
        %v1474 = vadd.f32 %v1348, %v1473
        %v1475 = vpop.f32.mrb[0].mxu0
        %v1476 = vadd.f32 %v1352, %v1475
        %1477 = vmatprep.mubr.bf16.mxu0 0
        %1478 = vmatmul.mubr.bf16.gmra.mrb[0].mxu0 %v435
        %v1479 = vpop.f32.mrb[0].mxu0
        %v1480 = vadd.f32 %v1348, %v1479
        %v1481 = vpop.f32.mrb[0].mxu0
        %v1482 = vadd.f32 %v1352, %v1481
        %v1483 = vpop.f32.mrb[0].mxu0
        %v1484 = vadd.f32 %v1348, %v1483
        %v1485 = vpop.f32.mrb[0].mxu0
        %v1486 = vadd.f32 %v1352, %v1485
        %1487 = vmatprep.mubr.bf16.mxu0 0
        %1488 = vmatmul.mubr.bf16.gmra.mrb[0].mxu0 %v436
        %v1489 = vpop.f32.mrb[0].mxu0
        %v1490 = vadd.f32 %v1348, %v1489
        %v1491 = vpop.f32.mrb[0].mxu0
        %v1492 = vadd.f32 %v1352, %v1491
        %v1493 = vpop.f32.mrb[0].mxu0
        %v1494 = vadd.f32 %v1348, %v1493
        %v1495 = vpop.f32.mrb[0].mxu0
        %v1496 = vadd.f32 %v1352, %v1495
        %1497 = vmatprep.mubr.bf16.mxu0 0
        %1498 = vmatmul.mubr.bf16.gmra.mrb[0].mxu0 %v437
        %v1499 = vpop.f32.mrb[0].mxu0
        %v1500 = vadd.f32 %v1348, %v1499
        %v1501 = vpop.f32.mrb[0].mxu0
        %v1502 = vadd.f32 %v1352, %v1501
        %v1503 = vpop.f32.mrb[0].mxu0
        %v1504 = vadd.f32 %v1348, %v1503
        %v1505 = vpop.f32.mrb[0].mxu0
        %v1506 = vadd.f32 %v1352, %v1505
        %1507 = vmatprep.mubr.bf16.mxu0 0
        %1508 = vmatmul.mubr.bf16.gmra.mrb[0].mxu0 %v438
        %v1509 = vpop.f32.mrb[0].mxu0
        %v1510 = vadd.f32 %v1348, %v1509
        %v1511 = vpop.f32.mrb[0].mxu0
        %v1512 = vadd.f32 %v1352, %v1511
        %v1513 = vpop.f32.mrb[0].mxu0
        %v1514 = vadd.f32 %v1348, %v1513
        %v1515 = vpop.f32.mrb[0].mxu0
        %v1516 = vadd.f32 %v1352, %v1515
        %1517 = vmatprep.mubr.bf16.mxu0 0
        %1518 = vmatmul.mubr.bf16.gmra.mrb[0].mxu0 %v439
        %v1519 = vpop.f32.mrb[0].mxu0
        %v1520 = vadd.f32 %v1348, %v1519
        %v1521 = vpop.f32.mrb[0].mxu0
        %v1522 = vadd.f32 %v1352, %v1521
        %v1523 = vpop.f32.mrb[0].mxu0
        %v1524 = vadd.f32 %v1348, %v1523
        %v1525 = vpop.f32.mrb[0].mxu0
        %v1526 = vadd.f32 %v1352, %v1525
        %1527 = vmatprep.mubr.bf16.mxu0 0
        %1528 = vmatmul.mubr.bf16.gmra.mrb[0].mxu0 %v440
        %v1529 = vpop.f32.mrb[0].mxu0
        %v1530 = vadd.f32 %v1348, %v1529
        %v1531 = vpop.f32.mrb[0].mxu0
        %v1532 = vadd.f32 %v1352, %v1531
        %v1533 = vpop.f32.mrb[0].mxu0
        %v1534 = vadd.f32 %v1348, %v1533
        %v1535 = vpop.f32.mrb[0].mxu0
        %v1536 = vadd.f32 %v1352, %v1535
        %1537 = vmatprep.mubr.bf16.mxu0 0
        %1538 = vmatmul.mubr.bf16.gmra.mrb[0].mxu0 %v441
        %v1539 = vpop.f32.mrb[0].mxu0
        %v1540 = vadd.f32 %v1348, %v1539
        %v1541 = vpop.f32.mrb[0].mxu0
        %v1542 = vadd.f32 %v1352, %v1541
        %v1543 = vpop.f32.mrb[0].mxu0
        %v1544 = vadd.f32 %v1348, %v1543
        %v1545 = vpop.f32.mrb[0].mxu0
        %v1546 = vadd.f32 %v1352, %v1545
        %1547 = vmatprep.mubr.bf16.mxu0 0
        %1548 = vmatmul.mubr.bf16.gmra.mrb[0].mxu0 %v442
        %v1549 = vpop.f32.mrb[0].mxu0
        %v1550 = vadd.f32 %v1348, %v1549
        %v1551 = vpop.f32.mrb[0].mxu0
        %v1552 = vadd.f32 %v1352, %v1551
        %v1553 = vpop.f32.mrb[0].mxu0
        %v1554 = vadd.f32 %v1348, %v1553
        %v1555 = vpop.f32.mrb[0].mxu0
        %v1556 = vadd.f32 %v1352, %v1555
        %1557 = vmatprep.mubr.bf16.mxu0 0
        %1558 = vmatmul.mubr.bf16.gmra.mrb[0].mxu0 %v443
        %v1559 = vpop.f32.mrb[0].mxu0
        %v1560 = vadd.f32 %v1348, %v1559
        %v1561 = vpop.f32.mrb[0].mxu0
        %v1562 = vadd.f32 %v1352, %v1561
        %v1563 = vpop.f32.mrb[0].mxu0
        %v1564 = vadd.f32 %v1348, %v1563
        %v1565 = vpop.f32.mrb[0].mxu0
        %v1566 = vadd.f32 %v1352, %v1565
        %1567 = vmatprep.mubr.bf16.mxu0 0
        %1568 = vmatmul.mubr.bf16.gmra.mrb[0].mxu0 %v444
        %v1569 = vpop.f32.mrb[0].mxu0
        %v1570 = vadd.f32 %v1348, %v1569
        %v1571 = vpop.f32.mrb[0].mxu0
        %v1572 = vadd.f32 %v1352, %v1571
        %v1573 = vpop.f32.mrb[0].mxu0
        %v1574 = vadd.f32 %v1348, %v1573
        %v1575 = vpop.f32.mrb[0].mxu0
        %v1576 = vadd.f32 %v1352, %v1575
        %1577 = vmatprep.mubr.bf16.mxu0 0
        %1578 = vmatmul.mubr.bf16.gmra.mrb[0].mxu0 %v445
        %v1579 = vpop.f32.mrb[0].mxu0
        %v1580 = vadd.f32 %v1348, %v1579
        %v1581 = vpop.f32.mrb[0].mxu0
        %v1582 = vadd.f32 %v1352, %v1581
        %v1583 = vpop.f32.mrb[0].mxu0
        %v1584 = vadd.f32 %v1348, %v1583
        %v1585 = vpop.f32.mrb[0].mxu0
        %v1586 = vadd.f32 %v1352, %v1585
        %1587 = vmatprep.mubr.bf16.mxu0 0
        %1588 = vmatmul.mubr.bf16.gmra.mrb[0].mxu0 %v446
        %v1589 = vpop.f32.mrb[0].mxu0
        %v1590 = vadd.f32 %v1348, %v1589
        %v1591 = vpop.f32.mrb[0].mxu0
        %v1592 = vadd.f32 %v1352, %v1591
        %v1593 = vpop.f32.mrb[0].mxu0
        %v1594 = vadd.f32 %v1348, %v1593
        %v1595 = vpop.f32.mrb[0].mxu0
        %v1596 = vadd.f32 %v1352, %v1595
        %1597 = vmatprep.mubr.bf16.mxu0 0
        %1598 = vmatmul.mubr.bf16.gmra.mrb[0].mxu0 %v447
        %v1599 = vpop.f32.mrb[0].mxu0
        %v1600 = vadd.f32 %v1348, %v1599
        %v1601 = vpop.f32.mrb[0].mxu0
        %v1602 = vadd.f32 %v1352, %v1601
        %v1603 = vpop.f32.mrb[0].mxu0
        %v1604 = vadd.f32 %v1348, %v1603
        %v1605 = vpop.f32.mrb[0].mxu0
        %v1606 = vadd.f32 %v1352, %v1605
        %1607 = vmatprep.mubr.bf16.mxu0 0
        %1608 = vmatmul.mubr.bf16.gmra.mrb[0].mxu0 %v448
        %v1609 = vpop.f32.mrb[0].mxu0
        %v1610 = vadd.f32 %v1348, %v1609
        %v1611 = vpop.f32.mrb[0].mxu0
        %v1612 = vadd.f32 %v1352, %v1611
        %v1613 = vpop.f32.mrb[0].mxu0
        %v1614 = vadd.f32 %v1348, %v1613
        %v1615 = vpop.f32.mrb[0].mxu0
        %v1616 = vadd.f32 %v1352, %v1615
        %1617 = vmatprep.mubr.bf16.mxu0 0
        %1618 = vmatmul.mubr.bf16.gmra.mrb[0].mxu0 %v449
        %v1619 = vpop.f32.mrb[0].mxu0
        %v1620 = vadd.f32 %v1348, %v1619
        %v1621 = vpop.f32.mrb[0].mxu0
        %v1622 = vadd.f32 %v1352, %v1621
        %v1623 = vpop.f32.mrb[0].mxu0
        %v1624 = vadd.f32 %v1348, %v1623
        %v1625 = vpop.f32.mrb[0].mxu0
        %v1626 = vadd.f32 %v1352, %v1625
        %1627 = vdwg.mxu0
        %v1628 = vmax.f32 %v1470, 0.0
        %v1629 = vmax.f32 %v1472, 0.0
        %v1630 = vmax.f32 %v1474, 0.0
        %v1631 = vmax.f32 %v1476, 0.0
        %v1632 = vmax.f32 %v1480, 0.0
        %v1633 = vmax.f32 %v1482, 0.0
        %v1634 = vmax.f32 %v1484, 0.0
        %v1635 = vmax.f32 %v1486, 0.0
        %v1636 = vmax.f32 %v1490, 0.0
        %v1637 = vmax.f32 %v1492, 0.0
        %v1638 = vmax.f32 %v1494, 0.0
        %v1639 = vmax.f32 %v1496, 0.0
        %v1640 = vmax.f32 %v1500, 0.0
        %v1641 = vmax.f32 %v1502, 0.0
        %v1642 = vmax.f32 %v1504, 0.0
        %v1643 = vmax.f32 %v1506, 0.0
        %v1644 = vmax.f32 %v1510, 0.0
        %v1645 = vmax.f32 %v1512, 0.0
        %v1646 = vmax.f32 %v1514, 0.0
        %v1647 = vmax.f32 %v1516, 0.0
        %v1648 = vmax.f32 %v1520, 0.0
        %v1649 = vmax.f32 %v1522, 0.0
        %v1650 = vmax.f32 %v1524, 0.0
        %v1651 = vmax.f32 %v1526, 0.0
        %v1652 = vmax.f32 %v1530, 0.0
        %v1653 = vmax.f32 %v1532, 0.0
        %v1654 = vmax.f32 %v1534, 0.0
        %v1655 = vmax.f32 %v1536, 0.0
        %v1656 = vmax.f32 %v1540, 0.0
        %v1657 = vmax.f32 %v1542, 0.0
        %v1658 = vmax.f32 %v1544, 0.0
        %v1659 = vmax.f32 %v1546, 0.0
        %v1660 = vmax.f32 %v1550, 0.0
        %v1661 = vmax.f32 %v1552, 0.0
        %v1662 = vmax.f32 %v1554, 0.0
        %v1663 = vmax.f32 %v1556, 0.0
        %v1664 = vmax.f32 %v1560, 0.0
        %v1665 = vmax.f32 %v1562, 0.0
        %v1666 = vmax.f32 %v1564, 0.0
        %v1667 = vmax.f32 %v1566, 0.0
        %v1668 = vmax.f32 %v1570, 0.0
        %v1669 = vmax.f32 %v1572, 0.0
        %v1670 = vmax.f32 %v1574, 0.0
        %v1671 = vmax.f32 %v1576, 0.0
        %v1672 = vmax.f32 %v1580, 0.0
        %v1673 = vmax.f32 %v1582, 0.0
        %v1674 = vmax.f32 %v1584, 0.0
        %v1675 = vmax.f32 %v1586, 0.0
        %v1676 = vmax.f32 %v1590, 0.0
        %v1677 = vmax.f32 %v1592, 0.0
        %v1678 = vmax.f32 %v1594, 0.0
        %v1679 = vmax.f32 %v1596, 0.0
        %v1680 = vmax.f32 %v1600, 0.0
        %v1681 = vmax.f32 %v1602, 0.0
        %v1682 = vmax.f32 %v1604, 0.0
        %v1683 = vmax.f32 %v1606, 0.0
        %v1684 = vmax.f32 %v1610, 0.0
        %v1685 = vmax.f32 %v1612, 0.0
        %v1686 = vmax.f32 %v1614, 0.0
        %v1687 = vmax.f32 %v1616, 0.0
        %v1688 = vmax.f32 %v1620, 0.0
        %v1689 = vmax.f32 %v1622, 0.0
        %v1690 = vmax.f32 %v1624, 0.0
        %v1691 = vmax.f32 %v1626, 0.0
        %v1692 = vpack.c.bf16 %v1630, %v1628
        %v1693 = vpack.c.bf16 %v1631, %v1629
        %v1694 = vpack.c.bf16 %v1634, %v1632
        %v1695 = vpack.c.bf16 %v1635, %v1633
        %v1696 = vpack.c.bf16 %v1638, %v1636
        %v1697 = vpack.c.bf16 %v1639, %v1637
        %v1698 = vpack.c.bf16 %v1642, %v1640
        %v1699 = vpack.c.bf16 %v1643, %v1641
        %v1700 = vpack.c.bf16 %v1646, %v1644
        %v1701 = vpack.c.bf16 %v1647, %v1645
        %v1702 = vpack.c.bf16 %v1650, %v1648
        %v1703 = vpack.c.bf16 %v1651, %v1649
        %v1704 = vpack.c.bf16 %v1654, %v1652
        %v1705 = vpack.c.bf16 %v1655, %v1653
        %v1706 = vpack.c.bf16 %v1658, %v1656
        %v1707 = vpack.c.bf16 %v1659, %v1657
        %v1708 = vpack.c.bf16 %v1662, %v1660
        %v1709 = vpack.c.bf16 %v1663, %v1661
        %v1710 = vpack.c.bf16 %v1666, %v1664
        %v1711 = vpack.c.bf16 %v1667, %v1665
        %v1712 = vpack.c.bf16 %v1670, %v1668
        %v1713 = vpack.c.bf16 %v1671, %v1669
        %v1714 = vpack.c.bf16 %v1674, %v1672
        %v1715 = vpack.c.bf16 %v1675, %v1673
        %v1716 = vpack.c.bf16 %v1678, %v1676
        %v1717 = vpack.c.bf16 %v1679, %v1677
        %v1718 = vpack.c.bf16 %v1682, %v1680
        %v1719 = vpack.c.bf16 %v1683, %v1681
        %v1720 = vpack.c.bf16 %v1686, %v1684
        %v1721 = vpack.c.bf16 %v1687, %v1685
        %v1722 = vpack.c.bf16 %v1690, %v1688
        %v1723 = vpack.c.bf16 %v1691, %v1689
        %s1724 = scalar_lea.vmem %s4, 128
        %v1725 = vld [vmem:[%s1724] sm:$0xf]
        %v1726 = vld [vmem:[%s1724 + $0x4] sm:$0xf]
        %v1727 = vld [vmem:[%s1724 + $0x8] sm:$0xf]
        %v1728 = vld [vmem:[%s1724 + $0xc] sm:$0xf]
        %v1729 = vld [vmem:[%s1724 + $0x10] sm:$0xf]
        %v1730 = vld [vmem:[%s1724 + $0x14] sm:$0xf]
        %v1731 = vld [vmem:[%s1724 + $0x18] sm:$0xf]
        %v1732 = vld [vmem:[%s1724 + $0x1c] sm:$0xf]
        %v1733 = vld [vmem:[%s1724 + $0x20] sm:$0xf]
        %v1734 = vld [vmem:[%s1724 + $0x24] sm:$0xf]
        %v1735 = vld [vmem:[%s1724 + $0x28] sm:$0xf]
        %v1736 = vld [vmem:[%s1724 + $0x2c] sm:$0xf]
        %v1737 = vld [vmem:[%s1724 + $0x30] sm:$0xf]
        %v1738 = vld [vmem:[%s1724 + $0x34] sm:$0xf]
        %v1739 = vld [vmem:[%s1724 + $0x38] sm:$0xf]
        %v1740 = vld [vmem:[%s1724 + $0x3c] sm:$0xf]
        %v1741 = vld [vmem:[%s1724 + $0x40] sm:$0xf]
        %v1742 = vld [vmem:[%s1724 + $0x44] sm:$0xf]
        %v1743 = vld [vmem:[%s1724 + $0x48] sm:$0xf]
        %v1744 = vld [vmem:[%s1724 + $0x4c] sm:$0xf]
        %v1745 = vld [vmem:[%s1724 + $0x50] sm:$0xf]
        %v1746 = vld [vmem:[%s1724 + $0x54] sm:$0xf]
        %v1747 = vld [vmem:[%s1724 + $0x58] sm:$0xf]
        %v1748 = vld [vmem:[%s1724 + $0x5c] sm:$0xf]
        %v1749 = vld [vmem:[%s1724 + $0x60] sm:$0xf]
        %v1750 = vld [vmem:[%s1724 + $0x64] sm:$0xf]
        %v1751 = vld [vmem:[%s1724 + $0x68] sm:$0xf]
        %v1752 = vld [vmem:[%s1724 + $0x6c] sm:$0xf]
        %v1753 = vld [vmem:[%s1724 + $0x70] sm:$0xf]
        %v1754 = vld [vmem:[%s1724 + $0x74] sm:$0xf]
        %v1755 = vld [vmem:[%s1724 + $0x78] sm:$0xf]
        %v1756 = vld [vmem:[%s1724 + $0x7c] sm:$0xf]
        %s1757 = scalar_lea.vmem %s5, 1
        %v1758 = vld [vmem:[%s1757] sm:$0x1]
        %v1760 = vlaneseq
        %v1761 = vshrl.u32 %v1760, 7
        %v1762 = vsub.s32 0, %v1761
        %v1763 = vrot.slane %v1758, %v1762
        %v1797 = vunpack.c.l.b16 %v1725
        %v1798 = vunpack.c.l.b16 %v1726
        %v1799 = vunpack.c.l.b16 %v1727
        %v1800 = vunpack.c.l.b16 %v1728
        %v1801 = vunpack.c.l.b16 %v1729
        %v1802 = vunpack.c.l.b16 %v1730
        %v1803 = vunpack.c.l.b16 %v1731
        %v1804 = vunpack.c.l.b16 %v1732
        %v1805 = vunpack.c.l.b16 %v1733
        %v1806 = vunpack.c.l.b16 %v1734
        %v1807 = vunpack.c.l.b16 %v1735
        %v1808 = vunpack.c.l.b16 %v1736
        %v1809 = vunpack.c.l.b16 %v1737
        %v1810 = vunpack.c.l.b16 %v1738
        %v1811 = vunpack.c.l.b16 %v1739
        %v1812 = vunpack.c.l.b16 %v1740
        %v1813 = vunpack.c.l.b16 %v1741
        %v1814 = vunpack.c.l.b16 %v1742
        %v1815 = vunpack.c.l.b16 %v1743
        %v1816 = vunpack.c.l.b16 %v1744
        %v1817 = vunpack.c.l.b16 %v1745
        %v1818 = vunpack.c.l.b16 %v1746
        %v1819 = vunpack.c.l.b16 %v1747
        %v1820 = vunpack.c.l.b16 %v1748
        %v1821 = vunpack.c.l.b16 %v1749
        %v1822 = vunpack.c.l.b16 %v1750
        %v1823 = vunpack.c.l.b16 %v1751
        %v1824 = vunpack.c.l.b16 %v1752
        %v1825 = vunpack.c.l.b16 %v1753
        %v1826 = vunpack.c.l.b16 %v1754
        %v1827 = vunpack.c.l.b16 %v1755
        %v1828 = vunpack.c.l.b16 %v1756
        %v1829 = vpack.c.b16 %v1798, %v1797
        %v1830 = vpack.c.b16 %v1800, %v1799
        %v1831 = vpack.c.b16 %v1802, %v1801
        %v1832 = vpack.c.b16 %v1804, %v1803
        %v1833 = vpack.c.b16 %v1806, %v1805
        %v1834 = vpack.c.b16 %v1808, %v1807
        %v1835 = vpack.c.b16 %v1810, %v1809
        %v1836 = vpack.c.b16 %v1812, %v1811
        %v1837 = vpack.c.b16 %v1814, %v1813
        %v1838 = vpack.c.b16 %v1816, %v1815
        %v1839 = vpack.c.b16 %v1818, %v1817
        %v1840 = vpack.c.b16 %v1820, %v1819
        %v1841 = vpack.c.b16 %v1822, %v1821
        %v1842 = vpack.c.b16 %v1824, %v1823
        %v1843 = vpack.c.b16 %v1826, %v1825
        %v1844 = vpack.c.b16 %v1828, %v1827
        %1861 = vmatprep.subr.bf16.mxu0 0
        %1862 = vmatpush1.bf16.msra.mxu0 %v1829
        %1863 = vmatprep.subr.bf16.mxu0 0
        %1864 = vmatpush1.bf16.msra.mxu0 %v1830
        %1865 = vmatprep.subr.bf16.mxu0 0
        %1866 = vmatpush1.bf16.msra.mxu0 %v1831
        %1867 = vmatprep.subr.bf16.mxu0 0
        %1868 = vmatpush1.bf16.msra.mxu0 %v1832
        %1869 = vmatprep.subr.bf16.mxu0 0
        %1870 = vmatpush1.bf16.msra.mxu0 %v1833
        %1871 = vmatprep.subr.bf16.mxu0 0
        %1872 = vmatpush1.bf16.msra.mxu0 %v1834
        %1873 = vmatprep.subr.bf16.mxu0 0
        %1874 = vmatpush1.bf16.msra.mxu0 %v1835
        %1875 = vmatprep.subr.bf16.mxu0 0
        %1876 = vmatpush1.bf16.msra.mxu0 %v1836
        %1877 = vmatprep.subr.bf16.mxu0 0
        %1878 = vmatpush1.bf16.msra.mxu0 %v1837
        %1879 = vmatprep.subr.bf16.mxu0 0
        %1880 = vmatpush1.bf16.msra.mxu0 %v1838
        %1881 = vmatprep.subr.bf16.mxu0 0
        %1882 = vmatpush1.bf16.msra.mxu0 %v1839
        %1883 = vmatprep.subr.bf16.mxu0 0
        %1884 = vmatpush1.bf16.msra.mxu0 %v1840
        %1885 = vmatprep.subr.bf16.mxu0 0
        %1886 = vmatpush1.bf16.msra.mxu0 %v1841
        %1887 = vmatprep.subr.bf16.mxu0 0
        %1888 = vmatpush1.bf16.msra.mxu0 %v1842
        %1889 = vmatprep.subr.bf16.mxu0 0
        %1890 = vmatpush1.bf16.msra.mxu0 %v1843
        %1891 = vmatprep.subr.bf16.mxu0 0
        %1892 = vmatpush1.bf16.msra.mxu0 %v1844
        %1893 = vmatprep.mubr.bf16.mxu0 %v1693
        %1894 = vmatmul.mubr.bf16.gmra.mrb[0].mxu0 %v1692
        %v1895 = vpop.f32.mrb[0].mxu0
        %v1896 = vadd.f32 %v1763, %v1895
        %v1897 = vpop.f32.mrb[0].mxu0
        %v1898 = vpop.f32.mrb[0].mxu0
        %v1899 = vadd.f32 %v1763, %v1898
        %v1900 = vpop.f32.mrb[0].mxu0
        %1901 = vmatprep.mubr.bf16.mxu0 %v1695
        %1902 = vmatmul.mubr.bf16.gmra.mrb[0].mxu0 %v1694
        %v1903 = vpop.f32.mrb[0].mxu0
        %v1904 = vadd.f32 %v1763, %v1903
        %v1905 = vpop.f32.mrb[0].mxu0
        %v1906 = vpop.f32.mrb[0].mxu0
        %v1907 = vadd.f32 %v1763, %v1906
        %v1908 = vpop.f32.mrb[0].mxu0
        %1909 = vmatprep.mubr.bf16.mxu0 %v1697
        %1910 = vmatmul.mubr.bf16.gmra.mrb[0].mxu0 %v1696
        %v1911 = vpop.f32.mrb[0].mxu0
        %v1912 = vadd.f32 %v1763, %v1911
        %v1913 = vpop.f32.mrb[0].mxu0
        %v1914 = vpop.f32.mrb[0].mxu0
        %v1915 = vadd.f32 %v1763, %v1914
        %v1916 = vpop.f32.mrb[0].mxu0
        %1917 = vmatprep.mubr.bf16.mxu0 %v1699
        %1918 = vmatmul.mubr.bf16.gmra.mrb[0].mxu0 %v1698
        %v1919 = vpop.f32.mrb[0].mxu0
        %v1920 = vadd.f32 %v1763, %v1919
        %v1921 = vpop.f32.mrb[0].mxu0
        %v1922 = vpop.f32.mrb[0].mxu0
        %v1923 = vadd.f32 %v1763, %v1922
        %v1924 = vpop.f32.mrb[0].mxu0
        %1925 = vmatprep.mubr.bf16.mxu0 %v1701
        %1926 = vmatmul.mubr.bf16.gmra.mrb[0].mxu0 %v1700
        %v1927 = vpop.f32.mrb[0].mxu0
        %v1928 = vadd.f32 %v1763, %v1927
        %v1929 = vpop.f32.mrb[0].mxu0
        %v1930 = vpop.f32.mrb[0].mxu0
        %v1931 = vadd.f32 %v1763, %v1930
        %v1932 = vpop.f32.mrb[0].mxu0
        %1933 = vmatprep.mubr.bf16.mxu0 %v1703
        %1934 = vmatmul.mubr.bf16.gmra.mrb[0].mxu0 %v1702
        %v1935 = vpop.f32.mrb[0].mxu0
        %v1936 = vadd.f32 %v1763, %v1935
        %v1937 = vpop.f32.mrb[0].mxu0
        %v1938 = vpop.f32.mrb[0].mxu0
        %v1939 = vadd.f32 %v1763, %v1938
        %v1940 = vpop.f32.mrb[0].mxu0
        %1941 = vmatprep.mubr.bf16.mxu0 %v1705
        %1942 = vmatmul.mubr.bf16.gmra.mrb[0].mxu0 %v1704
        %v1943 = vpop.f32.mrb[0].mxu0
        %v1944 = vadd.f32 %v1763, %v1943
        %v1945 = vpop.f32.mrb[0].mxu0
        %v1946 = vpop.f32.mrb[0].mxu0
        %v1947 = vadd.f32 %v1763, %v1946
        %v1948 = vpop.f32.mrb[0].mxu0
        %1949 = vmatprep.mubr.bf16.mxu0 %v1707
        %1950 = vmatmul.mubr.bf16.gmra.mrb[0].mxu0 %v1706
        %v1951 = vpop.f32.mrb[0].mxu0
        %v1952 = vadd.f32 %v1763, %v1951
        %v1953 = vpop.f32.mrb[0].mxu0
        %v1954 = vpop.f32.mrb[0].mxu0
        %v1955 = vadd.f32 %v1763, %v1954
        %v1956 = vpop.f32.mrb[0].mxu0
        %1957 = vmatprep.mubr.bf16.mxu0 %v1709
        %1958 = vmatmul.mubr.bf16.gmra.mrb[0].mxu0 %v1708
        %v1959 = vpop.f32.mrb[0].mxu0
        %v1960 = vadd.f32 %v1763, %v1959
        %v1961 = vpop.f32.mrb[0].mxu0
        %v1962 = vpop.f32.mrb[0].mxu0
        %v1963 = vadd.f32 %v1763, %v1962
        %v1964 = vpop.f32.mrb[0].mxu0
        %1965 = vmatprep.mubr.bf16.mxu0 %v1711
        %1966 = vmatmul.mubr.bf16.gmra.mrb[0].mxu0 %v1710
        %v1967 = vpop.f32.mrb[0].mxu0
        %v1968 = vadd.f32 %v1763, %v1967
        %v1969 = vpop.f32.mrb[0].mxu0
        %v1970 = vpop.f32.mrb[0].mxu0
        %v1971 = vadd.f32 %v1763, %v1970
        %v1972 = vpop.f32.mrb[0].mxu0
        %1973 = vmatprep.mubr.bf16.mxu0 %v1713
        %1974 = vmatmul.mubr.bf16.gmra.mrb[0].mxu0 %v1712
        %v1975 = vpop.f32.mrb[0].mxu0
        %v1976 = vadd.f32 %v1763, %v1975
        %v1977 = vpop.f32.mrb[0].mxu0
        %v1978 = vpop.f32.mrb[0].mxu0
        %v1979 = vadd.f32 %v1763, %v1978
        %v1980 = vpop.f32.mrb[0].mxu0
        %1981 = vmatprep.mubr.bf16.mxu0 %v1715
        %1982 = vmatmul.mubr.bf16.gmra.mrb[0].mxu0 %v1714
        %v1983 = vpop.f32.mrb[0].mxu0
        %v1984 = vadd.f32 %v1763, %v1983
        %v1985 = vpop.f32.mrb[0].mxu0
        %v1986 = vpop.f32.mrb[0].mxu0
        %v1987 = vadd.f32 %v1763, %v1986
        %v1988 = vpop.f32.mrb[0].mxu0
        %1989 = vmatprep.mubr.bf16.mxu0 %v1717
        %1990 = vmatmul.mubr.bf16.gmra.mrb[0].mxu0 %v1716
        %v1991 = vpop.f32.mrb[0].mxu0
        %v1992 = vadd.f32 %v1763, %v1991
        %v1993 = vpop.f32.mrb[0].mxu0
        %v1994 = vpop.f32.mrb[0].mxu0
        %v1995 = vadd.f32 %v1763, %v1994
        %v1996 = vpop.f32.mrb[0].mxu0
        %1997 = vmatprep.mubr.bf16.mxu0 %v1719
        %1998 = vmatmul.mubr.bf16.gmra.mrb[0].mxu0 %v1718
        %v1999 = vpop.f32.mrb[0].mxu0
        %v2000 = vadd.f32 %v1763, %v1999
        %v2001 = vpop.f32.mrb[0].mxu0
        %v2002 = vpop.f32.mrb[0].mxu0
        %v2003 = vadd.f32 %v1763, %v2002
        %v2004 = vpop.f32.mrb[0].mxu0
        %2005 = vmatprep.mubr.bf16.mxu0 %v1721
        %2006 = vmatmul.mubr.bf16.gmra.mrb[0].mxu0 %v1720
        %v2007 = vpop.f32.mrb[0].mxu0
        %v2008 = vadd.f32 %v1763, %v2007
        %v2009 = vpop.f32.mrb[0].mxu0
        %v2010 = vpop.f32.mrb[0].mxu0
        %v2011 = vadd.f32 %v1763, %v2010
        %v2012 = vpop.f32.mrb[0].mxu0
        %2013 = vmatprep.mubr.bf16.mxu0 %v1723
        %2014 = vmatmul.mubr.bf16.gmra.mrb[0].mxu0 %v1722
        %v2015 = vpop.f32.mrb[0].mxu0
        %v2016 = vadd.f32 %v1763, %v2015
        %v2017 = vpop.f32.mrb[0].mxu0
        %v2018 = vpop.f32.mrb[0].mxu0
        %v2019 = vadd.f32 %v1763, %v2018
        %v2020 = vpop.f32.mrb[0].mxu0
        %2021 = vdwg.mxu0
        %vm2022 = vcmp.eq.s32.totalorder %v341, 1
        %v2023 = vsel %vm2022, %v308, 0.0
        %v2024 = vsel %vm2022, %v309, 0.0
        %v2025 = vsel %vm2022, %v310, 0.0
        %v2026 = vsel %vm2022, %v311, 0.0
        %v2027 = vsel %vm2022, %v312, 0.0
        %v2028 = vsel %vm2022, %v313, 0.0
        %v2029 = vsel %vm2022, %v314, 0.0
        %v2030 = vsel %vm2022, %v315, 0.0
        %v2031 = vsel %vm2022, %v316, 0.0
        %v2032 = vsel %vm2022, %v317, 0.0
        %v2033 = vsel %vm2022, %v318, 0.0
        %v2034 = vsel %vm2022, %v319, 0.0
        %v2035 = vsel %vm2022, %v320, 0.0
        %v2036 = vsel %vm2022, %v321, 0.0
        %v2037 = vsel %vm2022, %v322, 0.0
        %v2038 = vsel %vm2022, %v323, 0.0
        %v2039 = vsel %vm2022, %v324, 0.0
        %v2040 = vsel %vm2022, %v325, 0.0
        %v2041 = vsel %vm2022, %v326, 0.0
        %v2042 = vsel %vm2022, %v327, 0.0
        %v2043 = vsel %vm2022, %v328, 0.0
        %v2044 = vsel %vm2022, %v329, 0.0
        %v2045 = vsel %vm2022, %v330, 0.0
        %v2046 = vsel %vm2022, %v331, 0.0
        %v2047 = vsel %vm2022, %v332, 0.0
        %v2048 = vsel %vm2022, %v333, 0.0
        %v2049 = vsel %vm2022, %v334, 0.0
        %v2050 = vsel %vm2022, %v335, 0.0
        %v2051 = vsel %vm2022, %v336, 0.0
        %v2052 = vsel %vm2022, %v337, 0.0
        %v2053 = vsel %vm2022, %v338, 0.0
        %v2054 = vsel %vm2022, %v339, 0.0
        %v2055 = vsel %vm1164, %v2023, 0.0
        %2056 = vadd.xlane.f32.xlu0 %v2055
        %v2057 = vpop.xlane.xlu0 %2056
        %v2058 = vsel %vm1164, %v2024, 0.0
        %2059 = vadd.xlane.f32.xlu0 %v2058
        %v2060 = vpop.xlane.xlu0 %2059
        %v2061 = vsel %vm1164, %v2025, 0.0
        %2062 = vadd.xlane.f32.xlu0 %v2061
        %v2063 = vpop.xlane.xlu0 %2062
        %v2064 = vsel %vm1164, %v2026, 0.0
        %2065 = vadd.xlane.f32.xlu0 %v2064
        %v2066 = vpop.xlane.xlu0 %2065
        %v2067 = vsel %vm1164, %v2027, 0.0
        %2068 = vadd.xlane.f32.xlu0 %v2067
        %v2069 = vpop.xlane.xlu0 %2068
        %v2070 = vsel %vm1164, %v2028, 0.0
        %2071 = vadd.xlane.f32.xlu0 %v2070
        %v2072 = vpop.xlane.xlu0 %2071
        %v2073 = vsel %vm1164, %v2029, 0.0
        %2074 = vadd.xlane.f32.xlu0 %v2073
        %v2075 = vpop.xlane.xlu0 %2074
        %v2076 = vsel %vm1164, %v2030, 0.0
        %2077 = vadd.xlane.f32.xlu0 %v2076
        %v2078 = vpop.xlane.xlu0 %2077
        %v2079 = vsel %vm1164, %v2031, 0.0
        %2080 = vadd.xlane.f32.xlu0 %v2079
        %v2081 = vpop.xlane.xlu0 %2080
        %v2082 = vsel %vm1164, %v2032, 0.0
        %2083 = vadd.xlane.f32.xlu0 %v2082
        %v2084 = vpop.xlane.xlu0 %2083
        %v2085 = vsel %vm1164, %v2033, 0.0
        %2086 = vadd.xlane.f32.xlu0 %v2085
        %v2087 = vpop.xlane.xlu0 %2086
        %v2088 = vsel %vm1164, %v2034, 0.0
        %2089 = vadd.xlane.f32.xlu0 %v2088
        %v2090 = vpop.xlane.xlu0 %2089
        %v2091 = vsel %vm1164, %v2035, 0.0
        %2092 = vadd.xlane.f32.xlu0 %v2091
        %v2093 = vpop.xlane.xlu0 %2092
        %v2094 = vsel %vm1164, %v2036, 0.0
        %2095 = vadd.xlane.f32.xlu0 %v2094
        %v2096 = vpop.xlane.xlu0 %2095
        %v2097 = vsel %vm1164, %v2037, 0.0
        %2098 = vadd.xlane.f32.xlu0 %v2097
        %v2099 = vpop.xlane.xlu0 %2098
        %v2100 = vsel %vm1164, %v2038, 0.0
        %2101 = vadd.xlane.f32.xlu0 %v2100
        %v2102 = vpop.xlane.xlu0 %2101
        %v2103 = vsel %vm1164, %v2039, 0.0
        %2104 = vadd.xlane.f32.xlu0 %v2103
        %v2105 = vpop.xlane.xlu0 %2104
        %v2106 = vsel %vm1164, %v2040, 0.0
        %2107 = vadd.xlane.f32.xlu0 %v2106
        %v2108 = vpop.xlane.xlu0 %2107
        %v2109 = vsel %vm1164, %v2041, 0.0
        %2110 = vadd.xlane.f32.xlu0 %v2109
        %v2111 = vpop.xlane.xlu0 %2110
        %v2112 = vsel %vm1164, %v2042, 0.0
        %2113 = vadd.xlane.f32.xlu0 %v2112
        %v2114 = vpop.xlane.xlu0 %2113
        %v2115 = vsel %vm1164, %v2043, 0.0
        %2116 = vadd.xlane.f32.xlu0 %v2115
        %v2117 = vpop.xlane.xlu0 %2116
        %v2118 = vsel %vm1164, %v2044, 0.0
        %2119 = vadd.xlane.f32.xlu0 %v2118
        %v2120 = vpop.xlane.xlu0 %2119
        %v2121 = vsel %vm1164, %v2045, 0.0
        %2122 = vadd.xlane.f32.xlu0 %v2121
        %v2123 = vpop.xlane.xlu0 %2122
        %v2124 = vsel %vm1164, %v2046, 0.0
        %2125 = vadd.xlane.f32.xlu0 %v2124
        %v2126 = vpop.xlane.xlu0 %2125
        %v2127 = vsel %vm1164, %v2047, 0.0
        %2128 = vadd.xlane.f32.xlu0 %v2127
        %v2129 = vpop.xlane.xlu0 %2128
        %v2130 = vsel %vm1164, %v2048, 0.0
        %2131 = vadd.xlane.f32.xlu0 %v2130
        %v2132 = vpop.xlane.xlu0 %2131
        %v2133 = vsel %vm1164, %v2049, 0.0
        %2134 = vadd.xlane.f32.xlu0 %v2133
        %v2135 = vpop.xlane.xlu0 %2134
        %v2136 = vsel %vm1164, %v2050, 0.0
        %2137 = vadd.xlane.f32.xlu0 %v2136
        %v2138 = vpop.xlane.xlu0 %2137
        %v2139 = vsel %vm1164, %v2051, 0.0
        %2140 = vadd.xlane.f32.xlu0 %v2139
        %v2141 = vpop.xlane.xlu0 %2140
        %v2142 = vsel %vm1164, %v2052, 0.0
        %2143 = vadd.xlane.f32.xlu0 %v2142
        %v2144 = vpop.xlane.xlu0 %2143
        %v2145 = vsel %vm1164, %v2053, 0.0
        %2146 = vadd.xlane.f32.xlu0 %v2145
        %v2147 = vpop.xlane.xlu0 %2146
        %v2148 = vsel %vm1164, %v2054, 0.0
        %2149 = vadd.xlane.f32.xlu0 %v2148
        %v2150 = vpop.xlane.xlu0 %2149
        %v2151 = vmul.f32 %v2057, %v1896
        %v2152 = vmul.f32 %v2060, %v1899
        %v2153 = vmul.f32 %v2063, %v1904
        %v2154 = vmul.f32 %v2066, %v1907
        %v2155 = vmul.f32 %v2069, %v1912
        %v2156 = vmul.f32 %v2072, %v1915
        %v2157 = vmul.f32 %v2075, %v1920
        %v2158 = vmul.f32 %v2078, %v1923
        %v2159 = vmul.f32 %v2081, %v1928
        %v2160 = vmul.f32 %v2084, %v1931
        %v2161 = vmul.f32 %v2087, %v1936
        %v2162 = vmul.f32 %v2090, %v1939
        %v2163 = vmul.f32 %v2093, %v1944
        %v2164 = vmul.f32 %v2096, %v1947
        %v2165 = vmul.f32 %v2099, %v1952
        %v2166 = vmul.f32 %v2102, %v1955
        %v2167 = vmul.f32 %v2105, %v1960
        %v2168 = vmul.f32 %v2108, %v1963
        %v2169 = vmul.f32 %v2111, %v1968
        %v2170 = vmul.f32 %v2114, %v1971
        %v2171 = vmul.f32 %v2117, %v1976
        %v2172 = vmul.f32 %v2120, %v1979
        %v2173 = vmul.f32 %v2123, %v1984
        %v2174 = vmul.f32 %v2126, %v1987
        %v2175 = vmul.f32 %v2129, %v1992
        %v2176 = vmul.f32 %v2132, %v1995
        %v2177 = vmul.f32 %v2135, %v2000
        %v2178 = vmul.f32 %v2138, %v2003
        %v2179 = vmul.f32 %v2141, %v2008
        %v2180 = vmul.f32 %v2144, %v2011
        %v2181 = vmul.f32 %v2147, %v2016
        %v2182 = vmul.f32 %v2150, %v2019
        %v2183 = vadd.f32 %v1293, %v2151
        %v2184 = vadd.f32 %v1294, %v2152
        %v2185 = vadd.f32 %v1295, %v2153
        %v2186 = vadd.f32 %v1296, %v2154
        %v2187 = vadd.f32 %v1297, %v2155
        %v2188 = vadd.f32 %v1298, %v2156
        %v2189 = vadd.f32 %v1299, %v2157
        %v2190 = vadd.f32 %v1300, %v2158
        %v2191 = vadd.f32 %v1301, %v2159
        %v2192 = vadd.f32 %v1302, %v2160
        %v2193 = vadd.f32 %v1303, %v2161
        %v2194 = vadd.f32 %v1304, %v2162
        %v2195 = vadd.f32 %v1305, %v2163
        %v2196 = vadd.f32 %v1306, %v2164
        %v2197 = vadd.f32 %v1307, %v2165
        %v2198 = vadd.f32 %v1308, %v2166
        %v2199 = vadd.f32 %v1309, %v2167
        %v2200 = vadd.f32 %v1310, %v2168
        %v2201 = vadd.f32 %v1311, %v2169
        %v2202 = vadd.f32 %v1312, %v2170
        %v2203 = vadd.f32 %v1313, %v2171
        %v2204 = vadd.f32 %v1314, %v2172
        %v2205 = vadd.f32 %v1315, %v2173
        %v2206 = vadd.f32 %v1316, %v2174
        %v2207 = vadd.f32 %v1317, %v2175
        %v2208 = vadd.f32 %v1318, %v2176
        %v2209 = vadd.f32 %v1319, %v2177
        %v2210 = vadd.f32 %v1320, %v2178
        %v2211 = vadd.f32 %v1321, %v2179
        %v2212 = vadd.f32 %v1322, %v2180
        %v2213 = vadd.f32 %v1323, %v2181
        %v2214 = vadd.f32 %v1324, %v2182
        %s2215 = scalar_lea.vmem %s2, 256
        %v2216 = vld [vmem:[%s2215] sm:$0xff]
        %v2217 = vld [vmem:[%s2215 + $0x8] sm:$0xff]
        %v2218 = vld [vmem:[%s2215 + $0x10] sm:$0xff]
        %v2219 = vld [vmem:[%s2215 + $0x18] sm:$0xff]
        %v2220 = vld [vmem:[%s2215 + $0x20] sm:$0xff]
        %v2221 = vld [vmem:[%s2215 + $0x28] sm:$0xff]
        %v2222 = vld [vmem:[%s2215 + $0x30] sm:$0xff]
        %v2223 = vld [vmem:[%s2215 + $0x38] sm:$0xff]
        %v2224 = vld [vmem:[%s2215 + $0x40] sm:$0xff]
        %v2225 = vld [vmem:[%s2215 + $0x48] sm:$0xff]
        %v2226 = vld [vmem:[%s2215 + $0x50] sm:$0xff]
        %v2227 = vld [vmem:[%s2215 + $0x58] sm:$0xff]
        %v2228 = vld [vmem:[%s2215 + $0x60] sm:$0xff]
        %v2229 = vld [vmem:[%s2215 + $0x68] sm:$0xff]
        %v2230 = vld [vmem:[%s2215 + $0x70] sm:$0xff]
        %v2231 = vld [vmem:[%s2215 + $0x78] sm:$0xff]
        %s2232 = scalar_lea.vmem %s3, 4
        %v2233 = vld [vmem:[%s2232] sm:$0x3]
        %v2235 = vlaneseq
        %v2236 = vshrl.u32 %v2235, 7
        %v2237 = vsub.s32 0, %v2236
        %v2238 = vrot.slane %v2233, %v2237
        %v2239 = vlaneseq
        %v2240 = vshrl.u32 %v2239, 7
        %v2241 = vsub.s32 1, %v2240
        %v2242 = vrot.slane %v2233, %v2241
        %v2261 = vunpack.c.l.b16 %v2216
        %v2262 = vunpack.c.h.b16 %v2216
        %v2263 = vunpack.c.l.b16 %v2217
        %v2264 = vunpack.c.h.b16 %v2217
        %v2265 = vunpack.c.l.b16 %v2218
        %v2266 = vunpack.c.h.b16 %v2218
        %v2267 = vunpack.c.l.b16 %v2219
        %v2268 = vunpack.c.h.b16 %v2219
        %v2269 = vunpack.c.l.b16 %v2220
        %v2270 = vunpack.c.h.b16 %v2220
        %v2271 = vunpack.c.l.b16 %v2221
        %v2272 = vunpack.c.h.b16 %v2221
        %v2273 = vunpack.c.l.b16 %v2222
        %v2274 = vunpack.c.h.b16 %v2222
        %v2275 = vunpack.c.l.b16 %v2223
        %v2276 = vunpack.c.h.b16 %v2223
        %v2277 = vunpack.c.l.b16 %v2224
        %v2278 = vunpack.c.h.b16 %v2224
        %v2279 = vunpack.c.l.b16 %v2225
        %v2280 = vunpack.c.h.b16 %v2225
        %v2281 = vunpack.c.l.b16 %v2226
        %v2282 = vunpack.c.h.b16 %v2226
        %v2283 = vunpack.c.l.b16 %v2227
        %v2284 = vunpack.c.h.b16 %v2227
        %v2285 = vunpack.c.l.b16 %v2228
        %v2286 = vunpack.c.h.b16 %v2228
        %v2287 = vunpack.c.l.b16 %v2229
        %v2288 = vunpack.c.h.b16 %v2229
        %v2289 = vunpack.c.l.b16 %v2230
        %v2290 = vunpack.c.h.b16 %v2230
        %v2291 = vunpack.c.l.b16 %v2231
        %v2292 = vunpack.c.h.b16 %v2231
        %v2293 = vpack.c.b16 %v2263, %v2261
        %v2294 = vpack.c.b16 %v2264, %v2262
        %v2295 = vpack.c.b16 %v2267, %v2265
        %v2296 = vpack.c.b16 %v2268, %v2266
        %v2297 = vpack.c.b16 %v2271, %v2269
        %v2298 = vpack.c.b16 %v2272, %v2270
        %v2299 = vpack.c.b16 %v2275, %v2273
        %v2300 = vpack.c.b16 %v2276, %v2274
        %v2301 = vpack.c.b16 %v2279, %v2277
        %v2302 = vpack.c.b16 %v2280, %v2278
        %v2303 = vpack.c.b16 %v2283, %v2281
        %v2304 = vpack.c.b16 %v2284, %v2282
        %v2305 = vpack.c.b16 %v2287, %v2285
        %v2306 = vpack.c.b16 %v2288, %v2286
        %v2307 = vpack.c.b16 %v2291, %v2289
        %v2308 = vpack.c.b16 %v2292, %v2290
        %2325 = vmatprep.subr.bf16.mxu0 %v2294
        %2326 = vmatpush1.bf16.msra.mxu0 %v2293
        %2327 = vmatprep.subr.bf16.mxu0 %v2296
        %2328 = vmatpush1.bf16.msra.mxu0 %v2295
        %2329 = vmatprep.subr.bf16.mxu0 %v2298
        %2330 = vmatpush1.bf16.msra.mxu0 %v2297
        %2331 = vmatprep.subr.bf16.mxu0 %v2300
        %2332 = vmatpush1.bf16.msra.mxu0 %v2299
        %2333 = vmatprep.subr.bf16.mxu0 %v2302
        %2334 = vmatpush1.bf16.msra.mxu0 %v2301
        %2335 = vmatprep.subr.bf16.mxu0 %v2304
        %2336 = vmatpush1.bf16.msra.mxu0 %v2303
        %2337 = vmatprep.subr.bf16.mxu0 %v2306
        %2338 = vmatpush1.bf16.msra.mxu0 %v2305
        %2339 = vmatprep.subr.bf16.mxu0 %v2308
        %2340 = vmatpush1.bf16.msra.mxu0 %v2307
        %2341 = vmatprep.subr.bf16.mxu0 0
        %2342 = vmatpush1.bf16.msra.mxu0 0
        %2343 = vmatprep.subr.bf16.mxu0 0
        %2344 = vmatpush1.bf16.msra.mxu0 0
        %2345 = vmatprep.subr.bf16.mxu0 0
        %2346 = vmatpush1.bf16.msra.mxu0 0
        %2347 = vmatprep.subr.bf16.mxu0 0
        %2348 = vmatpush1.bf16.msra.mxu0 0
        %2349 = vmatprep.subr.bf16.mxu0 0
        %2350 = vmatpush1.bf16.msra.mxu0 0
        %2351 = vmatprep.subr.bf16.mxu0 0
        %2352 = vmatpush1.bf16.msra.mxu0 0
        %2353 = vmatprep.subr.bf16.mxu0 0
        %2354 = vmatpush1.bf16.msra.mxu0 0
        %2355 = vmatprep.subr.bf16.mxu0 0
        %2356 = vmatpush1.bf16.msra.mxu0 0
        %2357 = vmatprep.mubr.bf16.mxu0 0
        %2358 = vmatmul.mubr.bf16.gmra.mrb[0].mxu0 %v434
        %v2359 = vpop.f32.mrb[0].mxu0
        %v2360 = vadd.f32 %v2238, %v2359
        %v2361 = vpop.f32.mrb[0].mxu0
        %v2362 = vadd.f32 %v2242, %v2361
        %v2363 = vpop.f32.mrb[0].mxu0
        %v2364 = vadd.f32 %v2238, %v2363
        %v2365 = vpop.f32.mrb[0].mxu0
        %v2366 = vadd.f32 %v2242, %v2365
        %2367 = vmatprep.mubr.bf16.mxu0 0
        %2368 = vmatmul.mubr.bf16.gmra.mrb[0].mxu0 %v435
        %v2369 = vpop.f32.mrb[0].mxu0
        %v2370 = vadd.f32 %v2238, %v2369
        %v2371 = vpop.f32.mrb[0].mxu0
        %v2372 = vadd.f32 %v2242, %v2371
        %v2373 = vpop.f32.mrb[0].mxu0
        %v2374 = vadd.f32 %v2238, %v2373
        %v2375 = vpop.f32.mrb[0].mxu0
        %v2376 = vadd.f32 %v2242, %v2375
        %2377 = vmatprep.mubr.bf16.mxu0 0
        %2378 = vmatmul.mubr.bf16.gmra.mrb[0].mxu0 %v436
        %v2379 = vpop.f32.mrb[0].mxu0
        %v2380 = vadd.f32 %v2238, %v2379
        %v2381 = vpop.f32.mrb[0].mxu0
        %v2382 = vadd.f32 %v2242, %v2381
        %v2383 = vpop.f32.mrb[0].mxu0
        %v2384 = vadd.f32 %v2238, %v2383
        %v2385 = vpop.f32.mrb[0].mxu0
        %v2386 = vadd.f32 %v2242, %v2385
        %2387 = vmatprep.mubr.bf16.mxu0 0
        %2388 = vmatmul.mubr.bf16.gmra.mrb[0].mxu0 %v437
        %v2389 = vpop.f32.mrb[0].mxu0
        %v2390 = vadd.f32 %v2238, %v2389
        %v2391 = vpop.f32.mrb[0].mxu0
        %v2392 = vadd.f32 %v2242, %v2391
        %v2393 = vpop.f32.mrb[0].mxu0
        %v2394 = vadd.f32 %v2238, %v2393
        %v2395 = vpop.f32.mrb[0].mxu0
        %v2396 = vadd.f32 %v2242, %v2395
        %2397 = vmatprep.mubr.bf16.mxu0 0
        %2398 = vmatmul.mubr.bf16.gmra.mrb[0].mxu0 %v438
        %v2399 = vpop.f32.mrb[0].mxu0
        %v2400 = vadd.f32 %v2238, %v2399
        %v2401 = vpop.f32.mrb[0].mxu0
        %v2402 = vadd.f32 %v2242, %v2401
        %v2403 = vpop.f32.mrb[0].mxu0
        %v2404 = vadd.f32 %v2238, %v2403
        %v2405 = vpop.f32.mrb[0].mxu0
        %v2406 = vadd.f32 %v2242, %v2405
        %2407 = vmatprep.mubr.bf16.mxu0 0
        %2408 = vmatmul.mubr.bf16.gmra.mrb[0].mxu0 %v439
        %v2409 = vpop.f32.mrb[0].mxu0
        %v2410 = vadd.f32 %v2238, %v2409
        %v2411 = vpop.f32.mrb[0].mxu0
        %v2412 = vadd.f32 %v2242, %v2411
        %v2413 = vpop.f32.mrb[0].mxu0
        %v2414 = vadd.f32 %v2238, %v2413
        %v2415 = vpop.f32.mrb[0].mxu0
        %v2416 = vadd.f32 %v2242, %v2415
        %2417 = vmatprep.mubr.bf16.mxu0 0
        %2418 = vmatmul.mubr.bf16.gmra.mrb[0].mxu0 %v440
        %v2419 = vpop.f32.mrb[0].mxu0
        %v2420 = vadd.f32 %v2238, %v2419
        %v2421 = vpop.f32.mrb[0].mxu0
        %v2422 = vadd.f32 %v2242, %v2421
        %v2423 = vpop.f32.mrb[0].mxu0
        %v2424 = vadd.f32 %v2238, %v2423
        %v2425 = vpop.f32.mrb[0].mxu0
        %v2426 = vadd.f32 %v2242, %v2425
        %2427 = vmatprep.mubr.bf16.mxu0 0
        %2428 = vmatmul.mubr.bf16.gmra.mrb[0].mxu0 %v441
        %v2429 = vpop.f32.mrb[0].mxu0
        %v2430 = vadd.f32 %v2238, %v2429
        %v2431 = vpop.f32.mrb[0].mxu0
        %v2432 = vadd.f32 %v2242, %v2431
        %v2433 = vpop.f32.mrb[0].mxu0
        %v2434 = vadd.f32 %v2238, %v2433
        %v2435 = vpop.f32.mrb[0].mxu0
        %v2436 = vadd.f32 %v2242, %v2435
        %2437 = vmatprep.mubr.bf16.mxu0 0
        %2438 = vmatmul.mubr.bf16.gmra.mrb[0].mxu0 %v442
        %v2439 = vpop.f32.mrb[0].mxu0
        %v2440 = vadd.f32 %v2238, %v2439
        %v2441 = vpop.f32.mrb[0].mxu0
        %v2442 = vadd.f32 %v2242, %v2441
        %v2443 = vpop.f32.mrb[0].mxu0
        %v2444 = vadd.f32 %v2238, %v2443
        %v2445 = vpop.f32.mrb[0].mxu0
        %v2446 = vadd.f32 %v2242, %v2445
        %2447 = vmatprep.mubr.bf16.mxu0 0
        %2448 = vmatmul.mubr.bf16.gmra.mrb[0].mxu0 %v443
        %v2449 = vpop.f32.mrb[0].mxu0
        %v2450 = vadd.f32 %v2238, %v2449
        %v2451 = vpop.f32.mrb[0].mxu0
        %v2452 = vadd.f32 %v2242, %v2451
        %v2453 = vpop.f32.mrb[0].mxu0
        %v2454 = vadd.f32 %v2238, %v2453
        %v2455 = vpop.f32.mrb[0].mxu0
        %v2456 = vadd.f32 %v2242, %v2455
        %2457 = vmatprep.mubr.bf16.mxu0 0
        %2458 = vmatmul.mubr.bf16.gmra.mrb[0].mxu0 %v444
        %v2459 = vpop.f32.mrb[0].mxu0
        %v2460 = vadd.f32 %v2238, %v2459
        %v2461 = vpop.f32.mrb[0].mxu0
        %v2462 = vadd.f32 %v2242, %v2461
        %v2463 = vpop.f32.mrb[0].mxu0
        %v2464 = vadd.f32 %v2238, %v2463
        %v2465 = vpop.f32.mrb[0].mxu0
        %v2466 = vadd.f32 %v2242, %v2465
        %2467 = vmatprep.mubr.bf16.mxu0 0
        %2468 = vmatmul.mubr.bf16.gmra.mrb[0].mxu0 %v445
        %v2469 = vpop.f32.mrb[0].mxu0
        %v2470 = vadd.f32 %v2238, %v2469
        %v2471 = vpop.f32.mrb[0].mxu0
        %v2472 = vadd.f32 %v2242, %v2471
        %v2473 = vpop.f32.mrb[0].mxu0
        %v2474 = vadd.f32 %v2238, %v2473
        %v2475 = vpop.f32.mrb[0].mxu0
        %v2476 = vadd.f32 %v2242, %v2475
        %2477 = vmatprep.mubr.bf16.mxu0 0
        %2478 = vmatmul.mubr.bf16.gmra.mrb[0].mxu0 %v446
        %v2479 = vpop.f32.mrb[0].mxu0
        %v2480 = vadd.f32 %v2238, %v2479
        %v2481 = vpop.f32.mrb[0].mxu0
        %v2482 = vadd.f32 %v2242, %v2481
        %v2483 = vpop.f32.mrb[0].mxu0
        %v2484 = vadd.f32 %v2238, %v2483
        %v2485 = vpop.f32.mrb[0].mxu0
        %v2486 = vadd.f32 %v2242, %v2485
        %2487 = vmatprep.mubr.bf16.mxu0 0
        %2488 = vmatmul.mubr.bf16.gmra.mrb[0].mxu0 %v447
        %v2489 = vpop.f32.mrb[0].mxu0
        %v2490 = vadd.f32 %v2238, %v2489
        %v2491 = vpop.f32.mrb[0].mxu0
        %v2492 = vadd.f32 %v2242, %v2491
        %v2493 = vpop.f32.mrb[0].mxu0
        %v2494 = vadd.f32 %v2238, %v2493
        %v2495 = vpop.f32.mrb[0].mxu0
        %v2496 = vadd.f32 %v2242, %v2495
        %2497 = vmatprep.mubr.bf16.mxu0 0
        %2498 = vmatmul.mubr.bf16.gmra.mrb[0].mxu0 %v448
        %v2499 = vpop.f32.mrb[0].mxu0
        %v2500 = vadd.f32 %v2238, %v2499
        %v2501 = vpop.f32.mrb[0].mxu0
        %v2502 = vadd.f32 %v2242, %v2501
        %v2503 = vpop.f32.mrb[0].mxu0
        %v2504 = vadd.f32 %v2238, %v2503
        %v2505 = vpop.f32.mrb[0].mxu0
        %v2506 = vadd.f32 %v2242, %v2505
        %2507 = vmatprep.mubr.bf16.mxu0 0
        %2508 = vmatmul.mubr.bf16.gmra.mrb[0].mxu0 %v449
        %v2509 = vpop.f32.mrb[0].mxu0
        %v2510 = vadd.f32 %v2238, %v2509
        %v2511 = vpop.f32.mrb[0].mxu0
        %v2512 = vadd.f32 %v2242, %v2511
        %v2513 = vpop.f32.mrb[0].mxu0
        %v2514 = vadd.f32 %v2238, %v2513
        %v2515 = vpop.f32.mrb[0].mxu0
        %v2516 = vadd.f32 %v2242, %v2515
        %2517 = vdwg.mxu0
        %v2518 = vmax.f32 %v2360, 0.0
        %v2519 = vmax.f32 %v2362, 0.0
        %v2520 = vmax.f32 %v2364, 0.0
        %v2521 = vmax.f32 %v2366, 0.0
        %v2522 = vmax.f32 %v2370, 0.0
        %v2523 = vmax.f32 %v2372, 0.0
        %v2524 = vmax.f32 %v2374, 0.0
        %v2525 = vmax.f32 %v2376, 0.0
        %v2526 = vmax.f32 %v2380, 0.0
        %v2527 = vmax.f32 %v2382, 0.0
        %v2528 = vmax.f32 %v2384, 0.0
        %v2529 = vmax.f32 %v2386, 0.0
        %v2530 = vmax.f32 %v2390, 0.0
        %v2531 = vmax.f32 %v2392, 0.0
        %v2532 = vmax.f32 %v2394, 0.0
        %v2533 = vmax.f32 %v2396, 0.0
        %v2534 = vmax.f32 %v2400, 0.0
        %v2535 = vmax.f32 %v2402, 0.0
        %v2536 = vmax.f32 %v2404, 0.0
        %v2537 = vmax.f32 %v2406, 0.0
        %v2538 = vmax.f32 %v2410, 0.0
        %v2539 = vmax.f32 %v2412, 0.0
        %v2540 = vmax.f32 %v2414, 0.0
        %v2541 = vmax.f32 %v2416, 0.0
        %v2542 = vmax.f32 %v2420, 0.0
        %v2543 = vmax.f32 %v2422, 0.0
        %v2544 = vmax.f32 %v2424, 0.0
        %v2545 = vmax.f32 %v2426, 0.0
        %v2546 = vmax.f32 %v2430, 0.0
        %v2547 = vmax.f32 %v2432, 0.0
        %v2548 = vmax.f32 %v2434, 0.0
        %v2549 = vmax.f32 %v2436, 0.0
        %v2550 = vmax.f32 %v2440, 0.0
        %v2551 = vmax.f32 %v2442, 0.0
        %v2552 = vmax.f32 %v2444, 0.0
        %v2553 = vmax.f32 %v2446, 0.0
        %v2554 = vmax.f32 %v2450, 0.0
        %v2555 = vmax.f32 %v2452, 0.0
        %v2556 = vmax.f32 %v2454, 0.0
        %v2557 = vmax.f32 %v2456, 0.0
        %v2558 = vmax.f32 %v2460, 0.0
        %v2559 = vmax.f32 %v2462, 0.0
        %v2560 = vmax.f32 %v2464, 0.0
        %v2561 = vmax.f32 %v2466, 0.0
        %v2562 = vmax.f32 %v2470, 0.0
        %v2563 = vmax.f32 %v2472, 0.0
        %v2564 = vmax.f32 %v2474, 0.0
        %v2565 = vmax.f32 %v2476, 0.0
        %v2566 = vmax.f32 %v2480, 0.0
        %v2567 = vmax.f32 %v2482, 0.0
        %v2568 = vmax.f32 %v2484, 0.0
        %v2569 = vmax.f32 %v2486, 0.0
        %v2570 = vmax.f32 %v2490, 0.0
        %v2571 = vmax.f32 %v2492, 0.0
        %v2572 = vmax.f32 %v2494, 0.0
        %v2573 = vmax.f32 %v2496, 0.0
        %v2574 = vmax.f32 %v2500, 0.0
        %v2575 = vmax.f32 %v2502, 0.0
        %v2576 = vmax.f32 %v2504, 0.0
        %v2577 = vmax.f32 %v2506, 0.0
        %v2578 = vmax.f32 %v2510, 0.0
        %v2579 = vmax.f32 %v2512, 0.0
        %v2580 = vmax.f32 %v2514, 0.0
        %v2581 = vmax.f32 %v2516, 0.0
        %v2582 = vpack.c.bf16 %v2520, %v2518
        %v2583 = vpack.c.bf16 %v2521, %v2519
        %v2584 = vpack.c.bf16 %v2524, %v2522
        %v2585 = vpack.c.bf16 %v2525, %v2523
        %v2586 = vpack.c.bf16 %v2528, %v2526
        %v2587 = vpack.c.bf16 %v2529, %v2527
        %v2588 = vpack.c.bf16 %v2532, %v2530
        %v2589 = vpack.c.bf16 %v2533, %v2531
        %v2590 = vpack.c.bf16 %v2536, %v2534
        %v2591 = vpack.c.bf16 %v2537, %v2535
        %v2592 = vpack.c.bf16 %v2540, %v2538
        %v2593 = vpack.c.bf16 %v2541, %v2539
        %v2594 = vpack.c.bf16 %v2544, %v2542
        %v2595 = vpack.c.bf16 %v2545, %v2543
        %v2596 = vpack.c.bf16 %v2548, %v2546
        %v2597 = vpack.c.bf16 %v2549, %v2547
        %v2598 = vpack.c.bf16 %v2552, %v2550
        %v2599 = vpack.c.bf16 %v2553, %v2551
        %v2600 = vpack.c.bf16 %v2556, %v2554
        %v2601 = vpack.c.bf16 %v2557, %v2555
        %v2602 = vpack.c.bf16 %v2560, %v2558
        %v2603 = vpack.c.bf16 %v2561, %v2559
        %v2604 = vpack.c.bf16 %v2564, %v2562
        %v2605 = vpack.c.bf16 %v2565, %v2563
        %v2606 = vpack.c.bf16 %v2568, %v2566
        %v2607 = vpack.c.bf16 %v2569, %v2567
        %v2608 = vpack.c.bf16 %v2572, %v2570
        %v2609 = vpack.c.bf16 %v2573, %v2571
        %v2610 = vpack.c.bf16 %v2576, %v2574
        %v2611 = vpack.c.bf16 %v2577, %v2575
        %v2612 = vpack.c.bf16 %v2580, %v2578
        %v2613 = vpack.c.bf16 %v2581, %v2579
        %s2614 = scalar_lea.vmem %s4, 256
        %v2615 = vld [vmem:[%s2614] sm:$0xf]
        %v2616 = vld [vmem:[%s2614 + $0x4] sm:$0xf]
        %v2617 = vld [vmem:[%s2614 + $0x8] sm:$0xf]
        %v2618 = vld [vmem:[%s2614 + $0xc] sm:$0xf]
        %v2619 = vld [vmem:[%s2614 + $0x10] sm:$0xf]
        %v2620 = vld [vmem:[%s2614 + $0x14] sm:$0xf]
        %v2621 = vld [vmem:[%s2614 + $0x18] sm:$0xf]
        %v2622 = vld [vmem:[%s2614 + $0x1c] sm:$0xf]
        %v2623 = vld [vmem:[%s2614 + $0x20] sm:$0xf]
        %v2624 = vld [vmem:[%s2614 + $0x24] sm:$0xf]
        %v2625 = vld [vmem:[%s2614 + $0x28] sm:$0xf]
        %v2626 = vld [vmem:[%s2614 + $0x2c] sm:$0xf]
        %v2627 = vld [vmem:[%s2614 + $0x30] sm:$0xf]
        %v2628 = vld [vmem:[%s2614 + $0x34] sm:$0xf]
        %v2629 = vld [vmem:[%s2614 + $0x38] sm:$0xf]
        %v2630 = vld [vmem:[%s2614 + $0x3c] sm:$0xf]
        %v2631 = vld [vmem:[%s2614 + $0x40] sm:$0xf]
        %v2632 = vld [vmem:[%s2614 + $0x44] sm:$0xf]
        %v2633 = vld [vmem:[%s2614 + $0x48] sm:$0xf]
        %v2634 = vld [vmem:[%s2614 + $0x4c] sm:$0xf]
        %v2635 = vld [vmem:[%s2614 + $0x50] sm:$0xf]
        %v2636 = vld [vmem:[%s2614 + $0x54] sm:$0xf]
        %v2637 = vld [vmem:[%s2614 + $0x58] sm:$0xf]
        %v2638 = vld [vmem:[%s2614 + $0x5c] sm:$0xf]
        %v2639 = vld [vmem:[%s2614 + $0x60] sm:$0xf]
        %v2640 = vld [vmem:[%s2614 + $0x64] sm:$0xf]
        %v2641 = vld [vmem:[%s2614 + $0x68] sm:$0xf]
        %v2642 = vld [vmem:[%s2614 + $0x6c] sm:$0xf]
        %v2643 = vld [vmem:[%s2614 + $0x70] sm:$0xf]
        %v2644 = vld [vmem:[%s2614 + $0x74] sm:$0xf]
        %v2645 = vld [vmem:[%s2614 + $0x78] sm:$0xf]
        %v2646 = vld [vmem:[%s2614 + $0x7c] sm:$0xf]
        %s2647 = scalar_lea.vmem %s5, 2
        %v2648 = vld [vmem:[%s2647] sm:$0x1]
        %v2650 = vlaneseq
        %v2651 = vshrl.u32 %v2650, 7
        %v2652 = vsub.s32 0, %v2651
        %v2653 = vrot.slane %v2648, %v2652
        %v2687 = vunpack.c.l.b16 %v2615
        %v2688 = vunpack.c.l.b16 %v2616
        %v2689 = vunpack.c.l.b16 %v2617
        %v2690 = vunpack.c.l.b16 %v2618
        %v2691 = vunpack.c.l.b16 %v2619
        %v2692 = vunpack.c.l.b16 %v2620
        %v2693 = vunpack.c.l.b16 %v2621
        %v2694 = vunpack.c.l.b16 %v2622
        %v2695 = vunpack.c.l.b16 %v2623
        %v2696 = vunpack.c.l.b16 %v2624
        %v2697 = vunpack.c.l.b16 %v2625
        %v2698 = vunpack.c.l.b16 %v2626
        %v2699 = vunpack.c.l.b16 %v2627
        %v2700 = vunpack.c.l.b16 %v2628
        %v2701 = vunpack.c.l.b16 %v2629
        %v2702 = vunpack.c.l.b16 %v2630
        %v2703 = vunpack.c.l.b16 %v2631
        %v2704 = vunpack.c.l.b16 %v2632
        %v2705 = vunpack.c.l.b16 %v2633
        %v2706 = vunpack.c.l.b16 %v2634
        %v2707 = vunpack.c.l.b16 %v2635
        %v2708 = vunpack.c.l.b16 %v2636
        %v2709 = vunpack.c.l.b16 %v2637
        %v2710 = vunpack.c.l.b16 %v2638
        %v2711 = vunpack.c.l.b16 %v2639
        %v2712 = vunpack.c.l.b16 %v2640
        %v2713 = vunpack.c.l.b16 %v2641
        %v2714 = vunpack.c.l.b16 %v2642
        %v2715 = vunpack.c.l.b16 %v2643
        %v2716 = vunpack.c.l.b16 %v2644
        %v2717 = vunpack.c.l.b16 %v2645
        %v2718 = vunpack.c.l.b16 %v2646
        %v2719 = vpack.c.b16 %v2688, %v2687
        %v2720 = vpack.c.b16 %v2690, %v2689
        %v2721 = vpack.c.b16 %v2692, %v2691
        %v2722 = vpack.c.b16 %v2694, %v2693
        %v2723 = vpack.c.b16 %v2696, %v2695
        %v2724 = vpack.c.b16 %v2698, %v2697
        %v2725 = vpack.c.b16 %v2700, %v2699
        %v2726 = vpack.c.b16 %v2702, %v2701
        %v2727 = vpack.c.b16 %v2704, %v2703
        %v2728 = vpack.c.b16 %v2706, %v2705
        %v2729 = vpack.c.b16 %v2708, %v2707
        %v2730 = vpack.c.b16 %v2710, %v2709
        %v2731 = vpack.c.b16 %v2712, %v2711
        %v2732 = vpack.c.b16 %v2714, %v2713
        %v2733 = vpack.c.b16 %v2716, %v2715
        %v2734 = vpack.c.b16 %v2718, %v2717
        %2751 = vmatprep.subr.bf16.mxu0 0
        %2752 = vmatpush1.bf16.msra.mxu0 %v2719
        %2753 = vmatprep.subr.bf16.mxu0 0
        %2754 = vmatpush1.bf16.msra.mxu0 %v2720
        %2755 = vmatprep.subr.bf16.mxu0 0
        %2756 = vmatpush1.bf16.msra.mxu0 %v2721
        %2757 = vmatprep.subr.bf16.mxu0 0
        %2758 = vmatpush1.bf16.msra.mxu0 %v2722
        %2759 = vmatprep.subr.bf16.mxu0 0
        %2760 = vmatpush1.bf16.msra.mxu0 %v2723
        %2761 = vmatprep.subr.bf16.mxu0 0
        %2762 = vmatpush1.bf16.msra.mxu0 %v2724
        %2763 = vmatprep.subr.bf16.mxu0 0
        %2764 = vmatpush1.bf16.msra.mxu0 %v2725
        %2765 = vmatprep.subr.bf16.mxu0 0
        %2766 = vmatpush1.bf16.msra.mxu0 %v2726
        %2767 = vmatprep.subr.bf16.mxu0 0
        %2768 = vmatpush1.bf16.msra.mxu0 %v2727
        %2769 = vmatprep.subr.bf16.mxu0 0
        %2770 = vmatpush1.bf16.msra.mxu0 %v2728
        %2771 = vmatprep.subr.bf16.mxu0 0
        %2772 = vmatpush1.bf16.msra.mxu0 %v2729
        %2773 = vmatprep.subr.bf16.mxu0 0
        %2774 = vmatpush1.bf16.msra.mxu0 %v2730
        %2775 = vmatprep.subr.bf16.mxu0 0
        %2776 = vmatpush1.bf16.msra.mxu0 %v2731
        %2777 = vmatprep.subr.bf16.mxu0 0
        %2778 = vmatpush1.bf16.msra.mxu0 %v2732
        %2779 = vmatprep.subr.bf16.mxu0 0
        %2780 = vmatpush1.bf16.msra.mxu0 %v2733
        %2781 = vmatprep.subr.bf16.mxu0 0
        %2782 = vmatpush1.bf16.msra.mxu0 %v2734
        %2783 = vmatprep.mubr.bf16.mxu0 %v2583
        %2784 = vmatmul.mubr.bf16.gmra.mrb[0].mxu0 %v2582
        %v2785 = vpop.f32.mrb[0].mxu0
        %v2786 = vadd.f32 %v2653, %v2785
        %v2787 = vpop.f32.mrb[0].mxu0
        %v2788 = vpop.f32.mrb[0].mxu0
        %v2789 = vadd.f32 %v2653, %v2788
        %v2790 = vpop.f32.mrb[0].mxu0
        %2791 = vmatprep.mubr.bf16.mxu0 %v2585
        %2792 = vmatmul.mubr.bf16.gmra.mrb[0].mxu0 %v2584
        %v2793 = vpop.f32.mrb[0].mxu0
        %v2794 = vadd.f32 %v2653, %v2793
        %v2795 = vpop.f32.mrb[0].mxu0
        %v2796 = vpop.f32.mrb[0].mxu0
        %v2797 = vadd.f32 %v2653, %v2796
        %v2798 = vpop.f32.mrb[0].mxu0
        %2799 = vmatprep.mubr.bf16.mxu0 %v2587
        %2800 = vmatmul.mubr.bf16.gmra.mrb[0].mxu0 %v2586
        %v2801 = vpop.f32.mrb[0].mxu0
        %v2802 = vadd.f32 %v2653, %v2801
        %v2803 = vpop.f32.mrb[0].mxu0
        %v2804 = vpop.f32.mrb[0].mxu0
        %v2805 = vadd.f32 %v2653, %v2804
        %v2806 = vpop.f32.mrb[0].mxu0
        %2807 = vmatprep.mubr.bf16.mxu0 %v2589
        %2808 = vmatmul.mubr.bf16.gmra.mrb[0].mxu0 %v2588
        %v2809 = vpop.f32.mrb[0].mxu0
        %v2810 = vadd.f32 %v2653, %v2809
        %v2811 = vpop.f32.mrb[0].mxu0
        %v2812 = vpop.f32.mrb[0].mxu0
        %v2813 = vadd.f32 %v2653, %v2812
        %v2814 = vpop.f32.mrb[0].mxu0
        %2815 = vmatprep.mubr.bf16.mxu0 %v2591
        %2816 = vmatmul.mubr.bf16.gmra.mrb[0].mxu0 %v2590
        %v2817 = vpop.f32.mrb[0].mxu0
        %v2818 = vadd.f32 %v2653, %v2817
        %v2819 = vpop.f32.mrb[0].mxu0
        %v2820 = vpop.f32.mrb[0].mxu0
        %v2821 = vadd.f32 %v2653, %v2820
        %v2822 = vpop.f32.mrb[0].mxu0
        %2823 = vmatprep.mubr.bf16.mxu0 %v2593
        %2824 = vmatmul.mubr.bf16.gmra.mrb[0].mxu0 %v2592
        %v2825 = vpop.f32.mrb[0].mxu0
        %v2826 = vadd.f32 %v2653, %v2825
        %v2827 = vpop.f32.mrb[0].mxu0
        %v2828 = vpop.f32.mrb[0].mxu0
        %v2829 = vadd.f32 %v2653, %v2828
        %v2830 = vpop.f32.mrb[0].mxu0
        %2831 = vmatprep.mubr.bf16.mxu0 %v2595
        %2832 = vmatmul.mubr.bf16.gmra.mrb[0].mxu0 %v2594
        %v2833 = vpop.f32.mrb[0].mxu0
        %v2834 = vadd.f32 %v2653, %v2833
        %v2835 = vpop.f32.mrb[0].mxu0
        %v2836 = vpop.f32.mrb[0].mxu0
        %v2837 = vadd.f32 %v2653, %v2836
        %v2838 = vpop.f32.mrb[0].mxu0
        %2839 = vmatprep.mubr.bf16.mxu0 %v2597
        %2840 = vmatmul.mubr.bf16.gmra.mrb[0].mxu0 %v2596
        %v2841 = vpop.f32.mrb[0].mxu0
        %v2842 = vadd.f32 %v2653, %v2841
        %v2843 = vpop.f32.mrb[0].mxu0
        %v2844 = vpop.f32.mrb[0].mxu0
        %v2845 = vadd.f32 %v2653, %v2844
        %v2846 = vpop.f32.mrb[0].mxu0
        %2847 = vmatprep.mubr.bf16.mxu0 %v2599
        %2848 = vmatmul.mubr.bf16.gmra.mrb[0].mxu0 %v2598
        %v2849 = vpop.f32.mrb[0].mxu0
        %v2850 = vadd.f32 %v2653, %v2849
        %v2851 = vpop.f32.mrb[0].mxu0
        %v2852 = vpop.f32.mrb[0].mxu0
        %v2853 = vadd.f32 %v2653, %v2852
        %v2854 = vpop.f32.mrb[0].mxu0
        %2855 = vmatprep.mubr.bf16.mxu0 %v2601
        %2856 = vmatmul.mubr.bf16.gmra.mrb[0].mxu0 %v2600
        %v2857 = vpop.f32.mrb[0].mxu0
        %v2858 = vadd.f32 %v2653, %v2857
        %v2859 = vpop.f32.mrb[0].mxu0
        %v2860 = vpop.f32.mrb[0].mxu0
        %v2861 = vadd.f32 %v2653, %v2860
        %v2862 = vpop.f32.mrb[0].mxu0
        %2863 = vmatprep.mubr.bf16.mxu0 %v2603
        %2864 = vmatmul.mubr.bf16.gmra.mrb[0].mxu0 %v2602
        %v2865 = vpop.f32.mrb[0].mxu0
        %v2866 = vadd.f32 %v2653, %v2865
        %v2867 = vpop.f32.mrb[0].mxu0
        %v2868 = vpop.f32.mrb[0].mxu0
        %v2869 = vadd.f32 %v2653, %v2868
        %v2870 = vpop.f32.mrb[0].mxu0
        %2871 = vmatprep.mubr.bf16.mxu0 %v2605
        %2872 = vmatmul.mubr.bf16.gmra.mrb[0].mxu0 %v2604
        %v2873 = vpop.f32.mrb[0].mxu0
        %v2874 = vadd.f32 %v2653, %v2873
        %v2875 = vpop.f32.mrb[0].mxu0
        %v2876 = vpop.f32.mrb[0].mxu0
        %v2877 = vadd.f32 %v2653, %v2876
        %v2878 = vpop.f32.mrb[0].mxu0
        %2879 = vmatprep.mubr.bf16.mxu0 %v2607
        %2880 = vmatmul.mubr.bf16.gmra.mrb[0].mxu0 %v2606
        %v2881 = vpop.f32.mrb[0].mxu0
        %v2882 = vadd.f32 %v2653, %v2881
        %v2883 = vpop.f32.mrb[0].mxu0
        %v2884 = vpop.f32.mrb[0].mxu0
        %v2885 = vadd.f32 %v2653, %v2884
        %v2886 = vpop.f32.mrb[0].mxu0
        %2887 = vmatprep.mubr.bf16.mxu0 %v2609
        %2888 = vmatmul.mubr.bf16.gmra.mrb[0].mxu0 %v2608
        %v2889 = vpop.f32.mrb[0].mxu0
        %v2890 = vadd.f32 %v2653, %v2889
        %v2891 = vpop.f32.mrb[0].mxu0
        %v2892 = vpop.f32.mrb[0].mxu0
        %v2893 = vadd.f32 %v2653, %v2892
        %v2894 = vpop.f32.mrb[0].mxu0
        %2895 = vmatprep.mubr.bf16.mxu0 %v2611
        %2896 = vmatmul.mubr.bf16.gmra.mrb[0].mxu0 %v2610
        %v2897 = vpop.f32.mrb[0].mxu0
        %v2898 = vadd.f32 %v2653, %v2897
        %v2899 = vpop.f32.mrb[0].mxu0
        %v2900 = vpop.f32.mrb[0].mxu0
        %v2901 = vadd.f32 %v2653, %v2900
        %v2902 = vpop.f32.mrb[0].mxu0
        %2903 = vmatprep.mubr.bf16.mxu0 %v2613
        %2904 = vmatmul.mubr.bf16.gmra.mrb[0].mxu0 %v2612
        %v2905 = vpop.f32.mrb[0].mxu0
        %v2906 = vadd.f32 %v2653, %v2905
        %v2907 = vpop.f32.mrb[0].mxu0
        %v2908 = vpop.f32.mrb[0].mxu0
        %v2909 = vadd.f32 %v2653, %v2908
        %v2910 = vpop.f32.mrb[0].mxu0
        %2911 = vdwg.mxu0
        %vm2912 = vcmp.eq.s32.totalorder %v341, 2
        %v2913 = vsel %vm2912, %v308, 0.0
        %v2914 = vsel %vm2912, %v309, 0.0
        %v2915 = vsel %vm2912, %v310, 0.0
        %v2916 = vsel %vm2912, %v311, 0.0
        %v2917 = vsel %vm2912, %v312, 0.0
        %v2918 = vsel %vm2912, %v313, 0.0
        %v2919 = vsel %vm2912, %v314, 0.0
        %v2920 = vsel %vm2912, %v315, 0.0
        %v2921 = vsel %vm2912, %v316, 0.0
        %v2922 = vsel %vm2912, %v317, 0.0
        %v2923 = vsel %vm2912, %v318, 0.0
        %v2924 = vsel %vm2912, %v319, 0.0
        %v2925 = vsel %vm2912, %v320, 0.0
        %v2926 = vsel %vm2912, %v321, 0.0
        %v2927 = vsel %vm2912, %v322, 0.0
        %v2928 = vsel %vm2912, %v323, 0.0
        %v2929 = vsel %vm2912, %v324, 0.0
        %v2930 = vsel %vm2912, %v325, 0.0
        %v2931 = vsel %vm2912, %v326, 0.0
        %v2932 = vsel %vm2912, %v327, 0.0
        %v2933 = vsel %vm2912, %v328, 0.0
        %v2934 = vsel %vm2912, %v329, 0.0
        %v2935 = vsel %vm2912, %v330, 0.0
        %v2936 = vsel %vm2912, %v331, 0.0
        %v2937 = vsel %vm2912, %v332, 0.0
        %v2938 = vsel %vm2912, %v333, 0.0
        %v2939 = vsel %vm2912, %v334, 0.0
        %v2940 = vsel %vm2912, %v335, 0.0
        %v2941 = vsel %vm2912, %v336, 0.0
        %v2942 = vsel %vm2912, %v337, 0.0
        %v2943 = vsel %vm2912, %v338, 0.0
        %v2944 = vsel %vm2912, %v339, 0.0
        %v2945 = vsel %vm1164, %v2913, 0.0
        %2946 = vadd.xlane.f32.xlu0 %v2945
        %v2947 = vpop.xlane.xlu0 %2946
        %v2948 = vsel %vm1164, %v2914, 0.0
        %2949 = vadd.xlane.f32.xlu0 %v2948
        %v2950 = vpop.xlane.xlu0 %2949
        %v2951 = vsel %vm1164, %v2915, 0.0
        %2952 = vadd.xlane.f32.xlu0 %v2951
        %v2953 = vpop.xlane.xlu0 %2952
        %v2954 = vsel %vm1164, %v2916, 0.0
        %2955 = vadd.xlane.f32.xlu0 %v2954
        %v2956 = vpop.xlane.xlu0 %2955
        %v2957 = vsel %vm1164, %v2917, 0.0
        %2958 = vadd.xlane.f32.xlu0 %v2957
        %v2959 = vpop.xlane.xlu0 %2958
        %v2960 = vsel %vm1164, %v2918, 0.0
        %2961 = vadd.xlane.f32.xlu0 %v2960
        %v2962 = vpop.xlane.xlu0 %2961
        %v2963 = vsel %vm1164, %v2919, 0.0
        %2964 = vadd.xlane.f32.xlu0 %v2963
        %v2965 = vpop.xlane.xlu0 %2964
        %v2966 = vsel %vm1164, %v2920, 0.0
        %2967 = vadd.xlane.f32.xlu0 %v2966
        %v2968 = vpop.xlane.xlu0 %2967
        %v2969 = vsel %vm1164, %v2921, 0.0
        %2970 = vadd.xlane.f32.xlu0 %v2969
        %v2971 = vpop.xlane.xlu0 %2970
        %v2972 = vsel %vm1164, %v2922, 0.0
        %2973 = vadd.xlane.f32.xlu0 %v2972
        %v2974 = vpop.xlane.xlu0 %2973
        %v2975 = vsel %vm1164, %v2923, 0.0
        %2976 = vadd.xlane.f32.xlu0 %v2975
        %v2977 = vpop.xlane.xlu0 %2976
        %v2978 = vsel %vm1164, %v2924, 0.0
        %2979 = vadd.xlane.f32.xlu0 %v2978
        %v2980 = vpop.xlane.xlu0 %2979
        %v2981 = vsel %vm1164, %v2925, 0.0
        %2982 = vadd.xlane.f32.xlu0 %v2981
        %v2983 = vpop.xlane.xlu0 %2982
        %v2984 = vsel %vm1164, %v2926, 0.0
        %2985 = vadd.xlane.f32.xlu0 %v2984
        %v2986 = vpop.xlane.xlu0 %2985
        %v2987 = vsel %vm1164, %v2927, 0.0
        %2988 = vadd.xlane.f32.xlu0 %v2987
        %v2989 = vpop.xlane.xlu0 %2988
        %v2990 = vsel %vm1164, %v2928, 0.0
        %2991 = vadd.xlane.f32.xlu0 %v2990
        %v2992 = vpop.xlane.xlu0 %2991
        %v2993 = vsel %vm1164, %v2929, 0.0
        %2994 = vadd.xlane.f32.xlu0 %v2993
        %v2995 = vpop.xlane.xlu0 %2994
        %v2996 = vsel %vm1164, %v2930, 0.0
        %2997 = vadd.xlane.f32.xlu0 %v2996
        %v2998 = vpop.xlane.xlu0 %2997
        %v2999 = vsel %vm1164, %v2931, 0.0
        %3000 = vadd.xlane.f32.xlu0 %v2999
        %v3001 = vpop.xlane.xlu0 %3000
        %v3002 = vsel %vm1164, %v2932, 0.0
        %3003 = vadd.xlane.f32.xlu0 %v3002
        %v3004 = vpop.xlane.xlu0 %3003
        %v3005 = vsel %vm1164, %v2933, 0.0
        %3006 = vadd.xlane.f32.xlu0 %v3005
        %v3007 = vpop.xlane.xlu0 %3006
        %v3008 = vsel %vm1164, %v2934, 0.0
        %3009 = vadd.xlane.f32.xlu0 %v3008
        %v3010 = vpop.xlane.xlu0 %3009
        %v3011 = vsel %vm1164, %v2935, 0.0
        %3012 = vadd.xlane.f32.xlu0 %v3011
        %v3013 = vpop.xlane.xlu0 %3012
        %v3014 = vsel %vm1164, %v2936, 0.0
        %3015 = vadd.xlane.f32.xlu0 %v3014
        %v3016 = vpop.xlane.xlu0 %3015
        %v3017 = vsel %vm1164, %v2937, 0.0
        %3018 = vadd.xlane.f32.xlu0 %v3017
        %v3019 = vpop.xlane.xlu0 %3018
        %v3020 = vsel %vm1164, %v2938, 0.0
        %3021 = vadd.xlane.f32.xlu0 %v3020
        %v3022 = vpop.xlane.xlu0 %3021
        %v3023 = vsel %vm1164, %v2939, 0.0
        %3024 = vadd.xlane.f32.xlu0 %v3023
        %v3025 = vpop.xlane.xlu0 %3024
        %v3026 = vsel %vm1164, %v2940, 0.0
        %3027 = vadd.xlane.f32.xlu0 %v3026
        %v3028 = vpop.xlane.xlu0 %3027
        %v3029 = vsel %vm1164, %v2941, 0.0
        %3030 = vadd.xlane.f32.xlu0 %v3029
        %v3031 = vpop.xlane.xlu0 %3030
        %v3032 = vsel %vm1164, %v2942, 0.0
        %3033 = vadd.xlane.f32.xlu0 %v3032
        %v3034 = vpop.xlane.xlu0 %3033
        %v3035 = vsel %vm1164, %v2943, 0.0
        %3036 = vadd.xlane.f32.xlu0 %v3035
        %v3037 = vpop.xlane.xlu0 %3036
        %v3038 = vsel %vm1164, %v2944, 0.0
        %3039 = vadd.xlane.f32.xlu0 %v3038
        %v3040 = vpop.xlane.xlu0 %3039
        %v3041 = vmul.f32 %v2947, %v2786
        %v3042 = vmul.f32 %v2950, %v2789
        %v3043 = vmul.f32 %v2953, %v2794
        %v3044 = vmul.f32 %v2956, %v2797
        %v3045 = vmul.f32 %v2959, %v2802
        %v3046 = vmul.f32 %v2962, %v2805
        %v3047 = vmul.f32 %v2965, %v2810
        %v3048 = vmul.f32 %v2968, %v2813
        %v3049 = vmul.f32 %v2971, %v2818
        %v3050 = vmul.f32 %v2974, %v2821
        %v3051 = vmul.f32 %v2977, %v2826
        %v3052 = vmul.f32 %v2980, %v2829
        %v3053 = vmul.f32 %v2983, %v2834
        %v3054 = vmul.f32 %v2986, %v2837
        %v3055 = vmul.f32 %v2989, %v2842
        %v3056 = vmul.f32 %v2992, %v2845
        %v3057 = vmul.f32 %v2995, %v2850
        %v3058 = vmul.f32 %v2998, %v2853
        %v3059 = vmul.f32 %v3001, %v2858
        %v3060 = vmul.f32 %v3004, %v2861
        %v3061 = vmul.f32 %v3007, %v2866
        %v3062 = vmul.f32 %v3010, %v2869
        %v3063 = vmul.f32 %v3013, %v2874
        %v3064 = vmul.f32 %v3016, %v2877
        %v3065 = vmul.f32 %v3019, %v2882
        %v3066 = vmul.f32 %v3022, %v2885
        %v3067 = vmul.f32 %v3025, %v2890
        %v3068 = vmul.f32 %v3028, %v2893
        %v3069 = vmul.f32 %v3031, %v2898
        %v3070 = vmul.f32 %v3034, %v2901
        %v3071 = vmul.f32 %v3037, %v2906
        %v3072 = vmul.f32 %v3040, %v2909
        %v3073 = vadd.f32 %v2183, %v3041
        %v3074 = vadd.f32 %v2184, %v3042
        %v3075 = vadd.f32 %v2185, %v3043
        %v3076 = vadd.f32 %v2186, %v3044
        %v3077 = vadd.f32 %v2187, %v3045
        %v3078 = vadd.f32 %v2188, %v3046
        %v3079 = vadd.f32 %v2189, %v3047
        %v3080 = vadd.f32 %v2190, %v3048
        %v3081 = vadd.f32 %v2191, %v3049
        %v3082 = vadd.f32 %v2192, %v3050
        %v3083 = vadd.f32 %v2193, %v3051
        %v3084 = vadd.f32 %v2194, %v3052
        %v3085 = vadd.f32 %v2195, %v3053
        %v3086 = vadd.f32 %v2196, %v3054
        %v3087 = vadd.f32 %v2197, %v3055
        %v3088 = vadd.f32 %v2198, %v3056
        %v3089 = vadd.f32 %v2199, %v3057
        %v3090 = vadd.f32 %v2200, %v3058
        %v3091 = vadd.f32 %v2201, %v3059
        %v3092 = vadd.f32 %v2202, %v3060
        %v3093 = vadd.f32 %v2203, %v3061
        %v3094 = vadd.f32 %v2204, %v3062
        %v3095 = vadd.f32 %v2205, %v3063
        %v3096 = vadd.f32 %v2206, %v3064
        %v3097 = vadd.f32 %v2207, %v3065
        %v3098 = vadd.f32 %v2208, %v3066
        %v3099 = vadd.f32 %v2209, %v3067
        %v3100 = vadd.f32 %v2210, %v3068
        %v3101 = vadd.f32 %v2211, %v3069
        %v3102 = vadd.f32 %v2212, %v3070
        %v3103 = vadd.f32 %v2213, %v3071
        %v3104 = vadd.f32 %v2214, %v3072
        %s3105 = scalar_lea.vmem %s2, 384
        %v3106 = vld [vmem:[%s3105] sm:$0xff]
        %v3107 = vld [vmem:[%s3105 + $0x8] sm:$0xff]
        %v3108 = vld [vmem:[%s3105 + $0x10] sm:$0xff]
        %v3109 = vld [vmem:[%s3105 + $0x18] sm:$0xff]
        %v3110 = vld [vmem:[%s3105 + $0x20] sm:$0xff]
        %v3111 = vld [vmem:[%s3105 + $0x28] sm:$0xff]
        %v3112 = vld [vmem:[%s3105 + $0x30] sm:$0xff]
        %v3113 = vld [vmem:[%s3105 + $0x38] sm:$0xff]
        %v3114 = vld [vmem:[%s3105 + $0x40] sm:$0xff]
        %v3115 = vld [vmem:[%s3105 + $0x48] sm:$0xff]
        %v3116 = vld [vmem:[%s3105 + $0x50] sm:$0xff]
        %v3117 = vld [vmem:[%s3105 + $0x58] sm:$0xff]
        %v3118 = vld [vmem:[%s3105 + $0x60] sm:$0xff]
        %v3119 = vld [vmem:[%s3105 + $0x68] sm:$0xff]
        %v3120 = vld [vmem:[%s3105 + $0x70] sm:$0xff]
        %v3121 = vld [vmem:[%s3105 + $0x78] sm:$0xff]
        %s3122 = scalar_lea.vmem %s3, 6
        %v3123 = vld [vmem:[%s3122] sm:$0x3]
        %v3125 = vlaneseq
        %v3126 = vshrl.u32 %v3125, 7
        %v3127 = vsub.s32 0, %v3126
        %v3128 = vrot.slane %v3123, %v3127
        %v3129 = vlaneseq
        %v3130 = vshrl.u32 %v3129, 7
        %v3131 = vsub.s32 1, %v3130
        %v3132 = vrot.slane %v3123, %v3131
        %v3151 = vunpack.c.l.b16 %v3106
        %v3152 = vunpack.c.h.b16 %v3106
        %v3153 = vunpack.c.l.b16 %v3107
        %v3154 = vunpack.c.h.b16 %v3107
        %v3155 = vunpack.c.l.b16 %v3108
        %v3156 = vunpack.c.h.b16 %v3108
        %v3157 = vunpack.c.l.b16 %v3109
        %v3158 = vunpack.c.h.b16 %v3109
        %v3159 = vunpack.c.l.b16 %v3110
        %v3160 = vunpack.c.h.b16 %v3110
        %v3161 = vunpack.c.l.b16 %v3111
        %v3162 = vunpack.c.h.b16 %v3111
        %v3163 = vunpack.c.l.b16 %v3112
        %v3164 = vunpack.c.h.b16 %v3112
        %v3165 = vunpack.c.l.b16 %v3113
        %v3166 = vunpack.c.h.b16 %v3113
        %v3167 = vunpack.c.l.b16 %v3114
        %v3168 = vunpack.c.h.b16 %v3114
        %v3169 = vunpack.c.l.b16 %v3115
        %v3170 = vunpack.c.h.b16 %v3115
        %v3171 = vunpack.c.l.b16 %v3116
        %v3172 = vunpack.c.h.b16 %v3116
        %v3173 = vunpack.c.l.b16 %v3117
        %v3174 = vunpack.c.h.b16 %v3117
        %v3175 = vunpack.c.l.b16 %v3118
        %v3176 = vunpack.c.h.b16 %v3118
        %v3177 = vunpack.c.l.b16 %v3119
        %v3178 = vunpack.c.h.b16 %v3119
        %v3179 = vunpack.c.l.b16 %v3120
        %v3180 = vunpack.c.h.b16 %v3120
        %v3181 = vunpack.c.l.b16 %v3121
        %v3182 = vunpack.c.h.b16 %v3121
        %v3183 = vpack.c.b16 %v3153, %v3151
        %v3184 = vpack.c.b16 %v3154, %v3152
        %v3185 = vpack.c.b16 %v3157, %v3155
        %v3186 = vpack.c.b16 %v3158, %v3156
        %v3187 = vpack.c.b16 %v3161, %v3159
        %v3188 = vpack.c.b16 %v3162, %v3160
        %v3189 = vpack.c.b16 %v3165, %v3163
        %v3190 = vpack.c.b16 %v3166, %v3164
        %v3191 = vpack.c.b16 %v3169, %v3167
        %v3192 = vpack.c.b16 %v3170, %v3168
        %v3193 = vpack.c.b16 %v3173, %v3171
        %v3194 = vpack.c.b16 %v3174, %v3172
        %v3195 = vpack.c.b16 %v3177, %v3175
        %v3196 = vpack.c.b16 %v3178, %v3176
        %v3197 = vpack.c.b16 %v3181, %v3179
        %v3198 = vpack.c.b16 %v3182, %v3180
        %3215 = vmatprep.subr.bf16.mxu0 %v3184
        %3216 = vmatpush1.bf16.msra.mxu0 %v3183
        %3217 = vmatprep.subr.bf16.mxu0 %v3186
        %3218 = vmatpush1.bf16.msra.mxu0 %v3185
        %3219 = vmatprep.subr.bf16.mxu0 %v3188
        %3220 = vmatpush1.bf16.msra.mxu0 %v3187
        %3221 = vmatprep.subr.bf16.mxu0 %v3190
        %3222 = vmatpush1.bf16.msra.mxu0 %v3189
        %3223 = vmatprep.subr.bf16.mxu0 %v3192
        %3224 = vmatpush1.bf16.msra.mxu0 %v3191
        %3225 = vmatprep.subr.bf16.mxu0 %v3194
        %3226 = vmatpush1.bf16.msra.mxu0 %v3193
        %3227 = vmatprep.subr.bf16.mxu0 %v3196
        %3228 = vmatpush1.bf16.msra.mxu0 %v3195
        %3229 = vmatprep.subr.bf16.mxu0 %v3198
        %3230 = vmatpush1.bf16.msra.mxu0 %v3197
        %3231 = vmatprep.subr.bf16.mxu0 0
        %3232 = vmatpush1.bf16.msra.mxu0 0
        %3233 = vmatprep.subr.bf16.mxu0 0
        %3234 = vmatpush1.bf16.msra.mxu0 0
        %3235 = vmatprep.subr.bf16.mxu0 0
        %3236 = vmatpush1.bf16.msra.mxu0 0
        %3237 = vmatprep.subr.bf16.mxu0 0
        %3238 = vmatpush1.bf16.msra.mxu0 0
        %3239 = vmatprep.subr.bf16.mxu0 0
        %3240 = vmatpush1.bf16.msra.mxu0 0
        %3241 = vmatprep.subr.bf16.mxu0 0
        %3242 = vmatpush1.bf16.msra.mxu0 0
        %3243 = vmatprep.subr.bf16.mxu0 0
        %3244 = vmatpush1.bf16.msra.mxu0 0
        %3245 = vmatprep.subr.bf16.mxu0 0
        %3246 = vmatpush1.bf16.msra.mxu0 0
        %3247 = vmatprep.mubr.bf16.mxu0 0
        %3248 = vmatmul.mubr.bf16.gmra.mrb[0].mxu0 %v434
        %v3249 = vpop.f32.mrb[0].mxu0
        %v3250 = vadd.f32 %v3128, %v3249
        %v3251 = vpop.f32.mrb[0].mxu0
        %v3252 = vadd.f32 %v3132, %v3251
        %v3253 = vpop.f32.mrb[0].mxu0
        %v3254 = vadd.f32 %v3128, %v3253
        %v3255 = vpop.f32.mrb[0].mxu0
        %v3256 = vadd.f32 %v3132, %v3255
        %3257 = vmatprep.mubr.bf16.mxu0 0
        %3258 = vmatmul.mubr.bf16.gmra.mrb[0].mxu0 %v435
        %v3259 = vpop.f32.mrb[0].mxu0
        %v3260 = vadd.f32 %v3128, %v3259
        %v3261 = vpop.f32.mrb[0].mxu0
        %v3262 = vadd.f32 %v3132, %v3261
        %v3263 = vpop.f32.mrb[0].mxu0
        %v3264 = vadd.f32 %v3128, %v3263
        %v3265 = vpop.f32.mrb[0].mxu0
        %v3266 = vadd.f32 %v3132, %v3265
        %3267 = vmatprep.mubr.bf16.mxu0 0
        %3268 = vmatmul.mubr.bf16.gmra.mrb[0].mxu0 %v436
        %v3269 = vpop.f32.mrb[0].mxu0
        %v3270 = vadd.f32 %v3128, %v3269
        %v3271 = vpop.f32.mrb[0].mxu0
        %v3272 = vadd.f32 %v3132, %v3271
        %v3273 = vpop.f32.mrb[0].mxu0
        %v3274 = vadd.f32 %v3128, %v3273
        %v3275 = vpop.f32.mrb[0].mxu0
        %v3276 = vadd.f32 %v3132, %v3275
        %3277 = vmatprep.mubr.bf16.mxu0 0
        %3278 = vmatmul.mubr.bf16.gmra.mrb[0].mxu0 %v437
        %v3279 = vpop.f32.mrb[0].mxu0
        %v3280 = vadd.f32 %v3128, %v3279
        %v3281 = vpop.f32.mrb[0].mxu0
        %v3282 = vadd.f32 %v3132, %v3281
        %v3283 = vpop.f32.mrb[0].mxu0
        %v3284 = vadd.f32 %v3128, %v3283
        %v3285 = vpop.f32.mrb[0].mxu0
        %v3286 = vadd.f32 %v3132, %v3285
        %3287 = vmatprep.mubr.bf16.mxu0 0
        %3288 = vmatmul.mubr.bf16.gmra.mrb[0].mxu0 %v438
        %v3289 = vpop.f32.mrb[0].mxu0
        %v3290 = vadd.f32 %v3128, %v3289
        %v3291 = vpop.f32.mrb[0].mxu0
        %v3292 = vadd.f32 %v3132, %v3291
        %v3293 = vpop.f32.mrb[0].mxu0
        %v3294 = vadd.f32 %v3128, %v3293
        %v3295 = vpop.f32.mrb[0].mxu0
        %v3296 = vadd.f32 %v3132, %v3295
        %3297 = vmatprep.mubr.bf16.mxu0 0
        %3298 = vmatmul.mubr.bf16.gmra.mrb[0].mxu0 %v439
        %v3299 = vpop.f32.mrb[0].mxu0
        %v3300 = vadd.f32 %v3128, %v3299
        %v3301 = vpop.f32.mrb[0].mxu0
        %v3302 = vadd.f32 %v3132, %v3301
        %v3303 = vpop.f32.mrb[0].mxu0
        %v3304 = vadd.f32 %v3128, %v3303
        %v3305 = vpop.f32.mrb[0].mxu0
        %v3306 = vadd.f32 %v3132, %v3305
        %3307 = vmatprep.mubr.bf16.mxu0 0
        %3308 = vmatmul.mubr.bf16.gmra.mrb[0].mxu0 %v440
        %v3309 = vpop.f32.mrb[0].mxu0
        %v3310 = vadd.f32 %v3128, %v3309
        %v3311 = vpop.f32.mrb[0].mxu0
        %v3312 = vadd.f32 %v3132, %v3311
        %v3313 = vpop.f32.mrb[0].mxu0
        %v3314 = vadd.f32 %v3128, %v3313
        %v3315 = vpop.f32.mrb[0].mxu0
        %v3316 = vadd.f32 %v3132, %v3315
        %3317 = vmatprep.mubr.bf16.mxu0 0
        %3318 = vmatmul.mubr.bf16.gmra.mrb[0].mxu0 %v441
        %v3319 = vpop.f32.mrb[0].mxu0
        %v3320 = vadd.f32 %v3128, %v3319
        %v3321 = vpop.f32.mrb[0].mxu0
        %v3322 = vadd.f32 %v3132, %v3321
        %v3323 = vpop.f32.mrb[0].mxu0
        %v3324 = vadd.f32 %v3128, %v3323
        %v3325 = vpop.f32.mrb[0].mxu0
        %v3326 = vadd.f32 %v3132, %v3325
        %3327 = vmatprep.mubr.bf16.mxu0 0
        %3328 = vmatmul.mubr.bf16.gmra.mrb[0].mxu0 %v442
        %v3329 = vpop.f32.mrb[0].mxu0
        %v3330 = vadd.f32 %v3128, %v3329
        %v3331 = vpop.f32.mrb[0].mxu0
        %v3332 = vadd.f32 %v3132, %v3331
        %v3333 = vpop.f32.mrb[0].mxu0
        %v3334 = vadd.f32 %v3128, %v3333
        %v3335 = vpop.f32.mrb[0].mxu0
        %v3336 = vadd.f32 %v3132, %v3335
        %3337 = vmatprep.mubr.bf16.mxu0 0
        %3338 = vmatmul.mubr.bf16.gmra.mrb[0].mxu0 %v443
        %v3339 = vpop.f32.mrb[0].mxu0
        %v3340 = vadd.f32 %v3128, %v3339
        %v3341 = vpop.f32.mrb[0].mxu0
        %v3342 = vadd.f32 %v3132, %v3341
        %v3343 = vpop.f32.mrb[0].mxu0
        %v3344 = vadd.f32 %v3128, %v3343
        %v3345 = vpop.f32.mrb[0].mxu0
        %v3346 = vadd.f32 %v3132, %v3345
        %3347 = vmatprep.mubr.bf16.mxu0 0
        %3348 = vmatmul.mubr.bf16.gmra.mrb[0].mxu0 %v444
        %v3349 = vpop.f32.mrb[0].mxu0
        %v3350 = vadd.f32 %v3128, %v3349
        %v3351 = vpop.f32.mrb[0].mxu0
        %v3352 = vadd.f32 %v3132, %v3351
        %v3353 = vpop.f32.mrb[0].mxu0
        %v3354 = vadd.f32 %v3128, %v3353
        %v3355 = vpop.f32.mrb[0].mxu0
        %v3356 = vadd.f32 %v3132, %v3355
        %3357 = vmatprep.mubr.bf16.mxu0 0
        %3358 = vmatmul.mubr.bf16.gmra.mrb[0].mxu0 %v445
        %v3359 = vpop.f32.mrb[0].mxu0
        %v3360 = vadd.f32 %v3128, %v3359
        %v3361 = vpop.f32.mrb[0].mxu0
        %v3362 = vadd.f32 %v3132, %v3361
        %v3363 = vpop.f32.mrb[0].mxu0
        %v3364 = vadd.f32 %v3128, %v3363
        %v3365 = vpop.f32.mrb[0].mxu0
        %v3366 = vadd.f32 %v3132, %v3365
        %3367 = vmatprep.mubr.bf16.mxu0 0
        %3368 = vmatmul.mubr.bf16.gmra.mrb[0].mxu0 %v446
        %v3369 = vpop.f32.mrb[0].mxu0
        %v3370 = vadd.f32 %v3128, %v3369
        %v3371 = vpop.f32.mrb[0].mxu0
        %v3372 = vadd.f32 %v3132, %v3371
        %v3373 = vpop.f32.mrb[0].mxu0
        %v3374 = vadd.f32 %v3128, %v3373
        %v3375 = vpop.f32.mrb[0].mxu0
        %v3376 = vadd.f32 %v3132, %v3375
        %3377 = vmatprep.mubr.bf16.mxu0 0
        %3378 = vmatmul.mubr.bf16.gmra.mrb[0].mxu0 %v447
        %v3379 = vpop.f32.mrb[0].mxu0
        %v3380 = vadd.f32 %v3128, %v3379
        %v3381 = vpop.f32.mrb[0].mxu0
        %v3382 = vadd.f32 %v3132, %v3381
        %v3383 = vpop.f32.mrb[0].mxu0
        %v3384 = vadd.f32 %v3128, %v3383
        %v3385 = vpop.f32.mrb[0].mxu0
        %v3386 = vadd.f32 %v3132, %v3385
        %3387 = vmatprep.mubr.bf16.mxu0 0
        %3388 = vmatmul.mubr.bf16.gmra.mrb[0].mxu0 %v448
        %v3389 = vpop.f32.mrb[0].mxu0
        %v3390 = vadd.f32 %v3128, %v3389
        %v3391 = vpop.f32.mrb[0].mxu0
        %v3392 = vadd.f32 %v3132, %v3391
        %v3393 = vpop.f32.mrb[0].mxu0
        %v3394 = vadd.f32 %v3128, %v3393
        %v3395 = vpop.f32.mrb[0].mxu0
        %v3396 = vadd.f32 %v3132, %v3395
        %3397 = vmatprep.mubr.bf16.mxu0 0
        %3398 = vmatmul.mubr.bf16.gmra.mrb[0].mxu0 %v449
        %v3399 = vpop.f32.mrb[0].mxu0
        %v3400 = vadd.f32 %v3128, %v3399
        %v3401 = vpop.f32.mrb[0].mxu0
        %v3402 = vadd.f32 %v3132, %v3401
        %v3403 = vpop.f32.mrb[0].mxu0
        %v3404 = vadd.f32 %v3128, %v3403
        %v3405 = vpop.f32.mrb[0].mxu0
        %v3406 = vadd.f32 %v3132, %v3405
        %3407 = vdwg.mxu0
        %v3408 = vmax.f32 %v3250, 0.0
        %v3409 = vmax.f32 %v3252, 0.0
        %v3410 = vmax.f32 %v3254, 0.0
        %v3411 = vmax.f32 %v3256, 0.0
        %v3412 = vmax.f32 %v3260, 0.0
        %v3413 = vmax.f32 %v3262, 0.0
        %v3414 = vmax.f32 %v3264, 0.0
        %v3415 = vmax.f32 %v3266, 0.0
        %v3416 = vmax.f32 %v3270, 0.0
        %v3417 = vmax.f32 %v3272, 0.0
        %v3418 = vmax.f32 %v3274, 0.0
        %v3419 = vmax.f32 %v3276, 0.0
        %v3420 = vmax.f32 %v3280, 0.0
        %v3421 = vmax.f32 %v3282, 0.0
        %v3422 = vmax.f32 %v3284, 0.0
        %v3423 = vmax.f32 %v3286, 0.0
        %v3424 = vmax.f32 %v3290, 0.0
        %v3425 = vmax.f32 %v3292, 0.0
        %v3426 = vmax.f32 %v3294, 0.0
        %v3427 = vmax.f32 %v3296, 0.0
        %v3428 = vmax.f32 %v3300, 0.0
        %v3429 = vmax.f32 %v3302, 0.0
        %v3430 = vmax.f32 %v3304, 0.0
        %v3431 = vmax.f32 %v3306, 0.0
        %v3432 = vmax.f32 %v3310, 0.0
        %v3433 = vmax.f32 %v3312, 0.0
        %v3434 = vmax.f32 %v3314, 0.0
        %v3435 = vmax.f32 %v3316, 0.0
        %v3436 = vmax.f32 %v3320, 0.0
        %v3437 = vmax.f32 %v3322, 0.0
        %v3438 = vmax.f32 %v3324, 0.0
        %v3439 = vmax.f32 %v3326, 0.0
        %v3440 = vmax.f32 %v3330, 0.0
        %v3441 = vmax.f32 %v3332, 0.0
        %v3442 = vmax.f32 %v3334, 0.0
        %v3443 = vmax.f32 %v3336, 0.0
        %v3444 = vmax.f32 %v3340, 0.0
        %v3445 = vmax.f32 %v3342, 0.0
        %v3446 = vmax.f32 %v3344, 0.0
        %v3447 = vmax.f32 %v3346, 0.0
        %v3448 = vmax.f32 %v3350, 0.0
        %v3449 = vmax.f32 %v3352, 0.0
        %v3450 = vmax.f32 %v3354, 0.0
        %v3451 = vmax.f32 %v3356, 0.0
        %v3452 = vmax.f32 %v3360, 0.0
        %v3453 = vmax.f32 %v3362, 0.0
        %v3454 = vmax.f32 %v3364, 0.0
        %v3455 = vmax.f32 %v3366, 0.0
        %v3456 = vmax.f32 %v3370, 0.0
        %v3457 = vmax.f32 %v3372, 0.0
        %v3458 = vmax.f32 %v3374, 0.0
        %v3459 = vmax.f32 %v3376, 0.0
        %v3460 = vmax.f32 %v3380, 0.0
        %v3461 = vmax.f32 %v3382, 0.0
        %v3462 = vmax.f32 %v3384, 0.0
        %v3463 = vmax.f32 %v3386, 0.0
        %v3464 = vmax.f32 %v3390, 0.0
        %v3465 = vmax.f32 %v3392, 0.0
        %v3466 = vmax.f32 %v3394, 0.0
        %v3467 = vmax.f32 %v3396, 0.0
        %v3468 = vmax.f32 %v3400, 0.0
        %v3469 = vmax.f32 %v3402, 0.0
        %v3470 = vmax.f32 %v3404, 0.0
        %v3471 = vmax.f32 %v3406, 0.0
        %v3472 = vpack.c.bf16 %v3410, %v3408
        %v3473 = vpack.c.bf16 %v3411, %v3409
        %v3474 = vpack.c.bf16 %v3414, %v3412
        %v3475 = vpack.c.bf16 %v3415, %v3413
        %v3476 = vpack.c.bf16 %v3418, %v3416
        %v3477 = vpack.c.bf16 %v3419, %v3417
        %v3478 = vpack.c.bf16 %v3422, %v3420
        %v3479 = vpack.c.bf16 %v3423, %v3421
        %v3480 = vpack.c.bf16 %v3426, %v3424
        %v3481 = vpack.c.bf16 %v3427, %v3425
        %v3482 = vpack.c.bf16 %v3430, %v3428
        %v3483 = vpack.c.bf16 %v3431, %v3429
        %v3484 = vpack.c.bf16 %v3434, %v3432
        %v3485 = vpack.c.bf16 %v3435, %v3433
        %v3486 = vpack.c.bf16 %v3438, %v3436
        %v3487 = vpack.c.bf16 %v3439, %v3437
        %v3488 = vpack.c.bf16 %v3442, %v3440
        %v3489 = vpack.c.bf16 %v3443, %v3441
        %v3490 = vpack.c.bf16 %v3446, %v3444
        %v3491 = vpack.c.bf16 %v3447, %v3445
        %v3492 = vpack.c.bf16 %v3450, %v3448
        %v3493 = vpack.c.bf16 %v3451, %v3449
        %v3494 = vpack.c.bf16 %v3454, %v3452
        %v3495 = vpack.c.bf16 %v3455, %v3453
        %v3496 = vpack.c.bf16 %v3458, %v3456
        %v3497 = vpack.c.bf16 %v3459, %v3457
        %v3498 = vpack.c.bf16 %v3462, %v3460
        %v3499 = vpack.c.bf16 %v3463, %v3461
        %v3500 = vpack.c.bf16 %v3466, %v3464
        %v3501 = vpack.c.bf16 %v3467, %v3465
        %v3502 = vpack.c.bf16 %v3470, %v3468
        %v3503 = vpack.c.bf16 %v3471, %v3469
        %s3504 = scalar_lea.vmem %s4, 384
        %v3505 = vld [vmem:[%s3504] sm:$0xf]
        %v3506 = vld [vmem:[%s3504 + $0x4] sm:$0xf]
        %v3507 = vld [vmem:[%s3504 + $0x8] sm:$0xf]
        %v3508 = vld [vmem:[%s3504 + $0xc] sm:$0xf]
        %v3509 = vld [vmem:[%s3504 + $0x10] sm:$0xf]
        %v3510 = vld [vmem:[%s3504 + $0x14] sm:$0xf]
        %v3511 = vld [vmem:[%s3504 + $0x18] sm:$0xf]
        %v3512 = vld [vmem:[%s3504 + $0x1c] sm:$0xf]
        %v3513 = vld [vmem:[%s3504 + $0x20] sm:$0xf]
        %v3514 = vld [vmem:[%s3504 + $0x24] sm:$0xf]
        %v3515 = vld [vmem:[%s3504 + $0x28] sm:$0xf]
        %v3516 = vld [vmem:[%s3504 + $0x2c] sm:$0xf]
        %v3517 = vld [vmem:[%s3504 + $0x30] sm:$0xf]
        %v3518 = vld [vmem:[%s3504 + $0x34] sm:$0xf]
        %v3519 = vld [vmem:[%s3504 + $0x38] sm:$0xf]
        %v3520 = vld [vmem:[%s3504 + $0x3c] sm:$0xf]
        %v3521 = vld [vmem:[%s3504 + $0x40] sm:$0xf]
        %v3522 = vld [vmem:[%s3504 + $0x44] sm:$0xf]
        %v3523 = vld [vmem:[%s3504 + $0x48] sm:$0xf]
        %v3524 = vld [vmem:[%s3504 + $0x4c] sm:$0xf]
        %v3525 = vld [vmem:[%s3504 + $0x50] sm:$0xf]
        %v3526 = vld [vmem:[%s3504 + $0x54] sm:$0xf]
        %v3527 = vld [vmem:[%s3504 + $0x58] sm:$0xf]
        %v3528 = vld [vmem:[%s3504 + $0x5c] sm:$0xf]
        %v3529 = vld [vmem:[%s3504 + $0x60] sm:$0xf]
        %v3530 = vld [vmem:[%s3504 + $0x64] sm:$0xf]
        %v3531 = vld [vmem:[%s3504 + $0x68] sm:$0xf]
        %v3532 = vld [vmem:[%s3504 + $0x6c] sm:$0xf]
        %v3533 = vld [vmem:[%s3504 + $0x70] sm:$0xf]
        %v3534 = vld [vmem:[%s3504 + $0x74] sm:$0xf]
        %v3535 = vld [vmem:[%s3504 + $0x78] sm:$0xf]
        %v3536 = vld [vmem:[%s3504 + $0x7c] sm:$0xf]
        %s3537 = scalar_lea.vmem %s5, 3
        %v3538 = vld [vmem:[%s3537] sm:$0x1]
        %v3540 = vlaneseq
        %v3541 = vshrl.u32 %v3540, 7
        %v3542 = vsub.s32 0, %v3541
        %v3543 = vrot.slane %v3538, %v3542
        %v3577 = vunpack.c.l.b16 %v3505
        %v3578 = vunpack.c.l.b16 %v3506
        %v3579 = vunpack.c.l.b16 %v3507
        %v3580 = vunpack.c.l.b16 %v3508
        %v3581 = vunpack.c.l.b16 %v3509
        %v3582 = vunpack.c.l.b16 %v3510
        %v3583 = vunpack.c.l.b16 %v3511
        %v3584 = vunpack.c.l.b16 %v3512
        %v3585 = vunpack.c.l.b16 %v3513
        %v3586 = vunpack.c.l.b16 %v3514
        %v3587 = vunpack.c.l.b16 %v3515
        %v3588 = vunpack.c.l.b16 %v3516
        %v3589 = vunpack.c.l.b16 %v3517
        %v3590 = vunpack.c.l.b16 %v3518
        %v3591 = vunpack.c.l.b16 %v3519
        %v3592 = vunpack.c.l.b16 %v3520
        %v3593 = vunpack.c.l.b16 %v3521
        %v3594 = vunpack.c.l.b16 %v3522
        %v3595 = vunpack.c.l.b16 %v3523
        %v3596 = vunpack.c.l.b16 %v3524
        %v3597 = vunpack.c.l.b16 %v3525
        %v3598 = vunpack.c.l.b16 %v3526
        %v3599 = vunpack.c.l.b16 %v3527
        %v3600 = vunpack.c.l.b16 %v3528
        %v3601 = vunpack.c.l.b16 %v3529
        %v3602 = vunpack.c.l.b16 %v3530
        %v3603 = vunpack.c.l.b16 %v3531
        %v3604 = vunpack.c.l.b16 %v3532
        %v3605 = vunpack.c.l.b16 %v3533
        %v3606 = vunpack.c.l.b16 %v3534
        %v3607 = vunpack.c.l.b16 %v3535
        %v3608 = vunpack.c.l.b16 %v3536
        %v3609 = vpack.c.b16 %v3578, %v3577
        %v3610 = vpack.c.b16 %v3580, %v3579
        %v3611 = vpack.c.b16 %v3582, %v3581
        %v3612 = vpack.c.b16 %v3584, %v3583
        %v3613 = vpack.c.b16 %v3586, %v3585
        %v3614 = vpack.c.b16 %v3588, %v3587
        %v3615 = vpack.c.b16 %v3590, %v3589
        %v3616 = vpack.c.b16 %v3592, %v3591
        %v3617 = vpack.c.b16 %v3594, %v3593
        %v3618 = vpack.c.b16 %v3596, %v3595
        %v3619 = vpack.c.b16 %v3598, %v3597
        %v3620 = vpack.c.b16 %v3600, %v3599
        %v3621 = vpack.c.b16 %v3602, %v3601
        %v3622 = vpack.c.b16 %v3604, %v3603
        %v3623 = vpack.c.b16 %v3606, %v3605
        %v3624 = vpack.c.b16 %v3608, %v3607
        %3641 = vmatprep.subr.bf16.mxu0 0
        %3642 = vmatpush1.bf16.msra.mxu0 %v3609
        %3643 = vmatprep.subr.bf16.mxu0 0
        %3644 = vmatpush1.bf16.msra.mxu0 %v3610
        %3645 = vmatprep.subr.bf16.mxu0 0
        %3646 = vmatpush1.bf16.msra.mxu0 %v3611
        %3647 = vmatprep.subr.bf16.mxu0 0
        %3648 = vmatpush1.bf16.msra.mxu0 %v3612
        %3649 = vmatprep.subr.bf16.mxu0 0
        %3650 = vmatpush1.bf16.msra.mxu0 %v3613
        %3651 = vmatprep.subr.bf16.mxu0 0
        %3652 = vmatpush1.bf16.msra.mxu0 %v3614
        %3653 = vmatprep.subr.bf16.mxu0 0
        %3654 = vmatpush1.bf16.msra.mxu0 %v3615
        %3655 = vmatprep.subr.bf16.mxu0 0
        %3656 = vmatpush1.bf16.msra.mxu0 %v3616
        %3657 = vmatprep.subr.bf16.mxu0 0
        %3658 = vmatpush1.bf16.msra.mxu0 %v3617
        %3659 = vmatprep.subr.bf16.mxu0 0
        %3660 = vmatpush1.bf16.msra.mxu0 %v3618
        %3661 = vmatprep.subr.bf16.mxu0 0
        %3662 = vmatpush1.bf16.msra.mxu0 %v3619
        %3663 = vmatprep.subr.bf16.mxu0 0
        %3664 = vmatpush1.bf16.msra.mxu0 %v3620
        %3665 = vmatprep.subr.bf16.mxu0 0
        %3666 = vmatpush1.bf16.msra.mxu0 %v3621
        %3667 = vmatprep.subr.bf16.mxu0 0
        %3668 = vmatpush1.bf16.msra.mxu0 %v3622
        %3669 = vmatprep.subr.bf16.mxu0 0
        %3670 = vmatpush1.bf16.msra.mxu0 %v3623
        %3671 = vmatprep.subr.bf16.mxu0 0
        %3672 = vmatpush1.bf16.msra.mxu0 %v3624
        %3673 = vmatprep.mubr.bf16.mxu0 %v3473
        %3674 = vmatmul.mubr.bf16.gmra.mrb[0].mxu0 %v3472
        %v3675 = vpop.f32.mrb[0].mxu0
        %v3676 = vadd.f32 %v3543, %v3675
        %v3677 = vpop.f32.mrb[0].mxu0
        %v3678 = vpop.f32.mrb[0].mxu0
        %v3679 = vadd.f32 %v3543, %v3678
        %v3680 = vpop.f32.mrb[0].mxu0
        %3681 = vmatprep.mubr.bf16.mxu0 %v3475
        %3682 = vmatmul.mubr.bf16.gmra.mrb[0].mxu0 %v3474
        %v3683 = vpop.f32.mrb[0].mxu0
        %v3684 = vadd.f32 %v3543, %v3683
        %v3685 = vpop.f32.mrb[0].mxu0
        %v3686 = vpop.f32.mrb[0].mxu0
        %v3687 = vadd.f32 %v3543, %v3686
        %v3688 = vpop.f32.mrb[0].mxu0
        %3689 = vmatprep.mubr.bf16.mxu0 %v3477
        %3690 = vmatmul.mubr.bf16.gmra.mrb[0].mxu0 %v3476
        %v3691 = vpop.f32.mrb[0].mxu0
        %v3692 = vadd.f32 %v3543, %v3691
        %v3693 = vpop.f32.mrb[0].mxu0
        %v3694 = vpop.f32.mrb[0].mxu0
        %v3695 = vadd.f32 %v3543, %v3694
        %v3696 = vpop.f32.mrb[0].mxu0
        %3697 = vmatprep.mubr.bf16.mxu0 %v3479
        %3698 = vmatmul.mubr.bf16.gmra.mrb[0].mxu0 %v3478
        %v3699 = vpop.f32.mrb[0].mxu0
        %v3700 = vadd.f32 %v3543, %v3699
        %v3701 = vpop.f32.mrb[0].mxu0
        %v3702 = vpop.f32.mrb[0].mxu0
        %v3703 = vadd.f32 %v3543, %v3702
        %v3704 = vpop.f32.mrb[0].mxu0
        %3705 = vmatprep.mubr.bf16.mxu0 %v3481
        %3706 = vmatmul.mubr.bf16.gmra.mrb[0].mxu0 %v3480
        %v3707 = vpop.f32.mrb[0].mxu0
        %v3708 = vadd.f32 %v3543, %v3707
        %v3709 = vpop.f32.mrb[0].mxu0
        %v3710 = vpop.f32.mrb[0].mxu0
        %v3711 = vadd.f32 %v3543, %v3710
        %v3712 = vpop.f32.mrb[0].mxu0
        %3713 = vmatprep.mubr.bf16.mxu0 %v3483
        %3714 = vmatmul.mubr.bf16.gmra.mrb[0].mxu0 %v3482
        %v3715 = vpop.f32.mrb[0].mxu0
        %v3716 = vadd.f32 %v3543, %v3715
        %v3717 = vpop.f32.mrb[0].mxu0
        %v3718 = vpop.f32.mrb[0].mxu0
        %v3719 = vadd.f32 %v3543, %v3718
        %v3720 = vpop.f32.mrb[0].mxu0
        %3721 = vmatprep.mubr.bf16.mxu0 %v3485
        %3722 = vmatmul.mubr.bf16.gmra.mrb[0].mxu0 %v3484
        %v3723 = vpop.f32.mrb[0].mxu0
        %v3724 = vadd.f32 %v3543, %v3723
        %v3725 = vpop.f32.mrb[0].mxu0
        %v3726 = vpop.f32.mrb[0].mxu0
        %v3727 = vadd.f32 %v3543, %v3726
        %v3728 = vpop.f32.mrb[0].mxu0
        %3729 = vmatprep.mubr.bf16.mxu0 %v3487
        %3730 = vmatmul.mubr.bf16.gmra.mrb[0].mxu0 %v3486
        %v3731 = vpop.f32.mrb[0].mxu0
        %v3732 = vadd.f32 %v3543, %v3731
        %v3733 = vpop.f32.mrb[0].mxu0
        %v3734 = vpop.f32.mrb[0].mxu0
        %v3735 = vadd.f32 %v3543, %v3734
        %v3736 = vpop.f32.mrb[0].mxu0
        %3737 = vmatprep.mubr.bf16.mxu0 %v3489
        %3738 = vmatmul.mubr.bf16.gmra.mrb[0].mxu0 %v3488
        %v3739 = vpop.f32.mrb[0].mxu0
        %v3740 = vadd.f32 %v3543, %v3739
        %v3741 = vpop.f32.mrb[0].mxu0
        %v3742 = vpop.f32.mrb[0].mxu0
        %v3743 = vadd.f32 %v3543, %v3742
        %v3744 = vpop.f32.mrb[0].mxu0
        %3745 = vmatprep.mubr.bf16.mxu0 %v3491
        %3746 = vmatmul.mubr.bf16.gmra.mrb[0].mxu0 %v3490
        %v3747 = vpop.f32.mrb[0].mxu0
        %v3748 = vadd.f32 %v3543, %v3747
        %v3749 = vpop.f32.mrb[0].mxu0
        %v3750 = vpop.f32.mrb[0].mxu0
        %v3751 = vadd.f32 %v3543, %v3750
        %v3752 = vpop.f32.mrb[0].mxu0
        %3753 = vmatprep.mubr.bf16.mxu0 %v3493
        %3754 = vmatmul.mubr.bf16.gmra.mrb[0].mxu0 %v3492
        %v3755 = vpop.f32.mrb[0].mxu0
        %v3756 = vadd.f32 %v3543, %v3755
        %v3757 = vpop.f32.mrb[0].mxu0
        %v3758 = vpop.f32.mrb[0].mxu0
        %v3759 = vadd.f32 %v3543, %v3758
        %v3760 = vpop.f32.mrb[0].mxu0
        %3761 = vmatprep.mubr.bf16.mxu0 %v3495
        %3762 = vmatmul.mubr.bf16.gmra.mrb[0].mxu0 %v3494
        %v3763 = vpop.f32.mrb[0].mxu0
        %v3764 = vadd.f32 %v3543, %v3763
        %v3765 = vpop.f32.mrb[0].mxu0
        %v3766 = vpop.f32.mrb[0].mxu0
        %v3767 = vadd.f32 %v3543, %v3766
        %v3768 = vpop.f32.mrb[0].mxu0
        %3769 = vmatprep.mubr.bf16.mxu0 %v3497
        %3770 = vmatmul.mubr.bf16.gmra.mrb[0].mxu0 %v3496
        %v3771 = vpop.f32.mrb[0].mxu0
        %v3772 = vadd.f32 %v3543, %v3771
        %v3773 = vpop.f32.mrb[0].mxu0
        %v3774 = vpop.f32.mrb[0].mxu0
        %v3775 = vadd.f32 %v3543, %v3774
        %v3776 = vpop.f32.mrb[0].mxu0
        %3777 = vmatprep.mubr.bf16.mxu0 %v3499
        %3778 = vmatmul.mubr.bf16.gmra.mrb[0].mxu0 %v3498
        %v3779 = vpop.f32.mrb[0].mxu0
        %v3780 = vadd.f32 %v3543, %v3779
        %v3781 = vpop.f32.mrb[0].mxu0
        %v3782 = vpop.f32.mrb[0].mxu0
        %v3783 = vadd.f32 %v3543, %v3782
        %v3784 = vpop.f32.mrb[0].mxu0
        %3785 = vmatprep.mubr.bf16.mxu0 %v3501
        %3786 = vmatmul.mubr.bf16.gmra.mrb[0].mxu0 %v3500
        %v3787 = vpop.f32.mrb[0].mxu0
        %v3788 = vadd.f32 %v3543, %v3787
        %v3789 = vpop.f32.mrb[0].mxu0
        %v3790 = vpop.f32.mrb[0].mxu0
        %v3791 = vadd.f32 %v3543, %v3790
        %v3792 = vpop.f32.mrb[0].mxu0
        %3793 = vmatprep.mubr.bf16.mxu0 %v3503
        %3794 = vmatmul.mubr.bf16.gmra.mrb[0].mxu0 %v3502
        %v3795 = vpop.f32.mrb[0].mxu0
        %v3796 = vadd.f32 %v3543, %v3795
        %v3797 = vpop.f32.mrb[0].mxu0
        %v3798 = vpop.f32.mrb[0].mxu0
        %v3799 = vadd.f32 %v3543, %v3798
        %v3800 = vpop.f32.mrb[0].mxu0
        %3801 = vdwg.mxu0
        %vm3802 = vcmp.eq.s32.totalorder %v341, 3
        %v3803 = vsel %vm3802, %v308, 0.0
        %v3804 = vsel %vm3802, %v309, 0.0
        %v3805 = vsel %vm3802, %v310, 0.0
        %v3806 = vsel %vm3802, %v311, 0.0
        %v3807 = vsel %vm3802, %v312, 0.0
        %v3808 = vsel %vm3802, %v313, 0.0
        %v3809 = vsel %vm3802, %v314, 0.0
        %v3810 = vsel %vm3802, %v315, 0.0
        %v3811 = vsel %vm3802, %v316, 0.0
        %v3812 = vsel %vm3802, %v317, 0.0
        %v3813 = vsel %vm3802, %v318, 0.0
        %v3814 = vsel %vm3802, %v319, 0.0
        %v3815 = vsel %vm3802, %v320, 0.0
        %v3816 = vsel %vm3802, %v321, 0.0
        %v3817 = vsel %vm3802, %v322, 0.0
        %v3818 = vsel %vm3802, %v323, 0.0
        %v3819 = vsel %vm3802, %v324, 0.0
        %v3820 = vsel %vm3802, %v325, 0.0
        %v3821 = vsel %vm3802, %v326, 0.0
        %v3822 = vsel %vm3802, %v327, 0.0
        %v3823 = vsel %vm3802, %v328, 0.0
        %v3824 = vsel %vm3802, %v329, 0.0
        %v3825 = vsel %vm3802, %v330, 0.0
        %v3826 = vsel %vm3802, %v331, 0.0
        %v3827 = vsel %vm3802, %v332, 0.0
        %v3828 = vsel %vm3802, %v333, 0.0
        %v3829 = vsel %vm3802, %v334, 0.0
        %v3830 = vsel %vm3802, %v335, 0.0
        %v3831 = vsel %vm3802, %v336, 0.0
        %v3832 = vsel %vm3802, %v337, 0.0
        %v3833 = vsel %vm3802, %v338, 0.0
        %v3834 = vsel %vm3802, %v339, 0.0
        %v3835 = vsel %vm1164, %v3803, 0.0
        %3836 = vadd.xlane.f32.xlu0 %v3835
        %v3837 = vpop.xlane.xlu0 %3836
        %v3838 = vsel %vm1164, %v3804, 0.0
        %3839 = vadd.xlane.f32.xlu0 %v3838
        %v3840 = vpop.xlane.xlu0 %3839
        %v3841 = vsel %vm1164, %v3805, 0.0
        %3842 = vadd.xlane.f32.xlu0 %v3841
        %v3843 = vpop.xlane.xlu0 %3842
        %v3844 = vsel %vm1164, %v3806, 0.0
        %3845 = vadd.xlane.f32.xlu0 %v3844
        %v3846 = vpop.xlane.xlu0 %3845
        %v3847 = vsel %vm1164, %v3807, 0.0
        %3848 = vadd.xlane.f32.xlu0 %v3847
        %v3849 = vpop.xlane.xlu0 %3848
        %v3850 = vsel %vm1164, %v3808, 0.0
        %3851 = vadd.xlane.f32.xlu0 %v3850
        %v3852 = vpop.xlane.xlu0 %3851
        %v3853 = vsel %vm1164, %v3809, 0.0
        %3854 = vadd.xlane.f32.xlu0 %v3853
        %v3855 = vpop.xlane.xlu0 %3854
        %v3856 = vsel %vm1164, %v3810, 0.0
        %3857 = vadd.xlane.f32.xlu0 %v3856
        %v3858 = vpop.xlane.xlu0 %3857
        %v3859 = vsel %vm1164, %v3811, 0.0
        %3860 = vadd.xlane.f32.xlu0 %v3859
        %v3861 = vpop.xlane.xlu0 %3860
        %v3862 = vsel %vm1164, %v3812, 0.0
        %3863 = vadd.xlane.f32.xlu0 %v3862
        %v3864 = vpop.xlane.xlu0 %3863
        %v3865 = vsel %vm1164, %v3813, 0.0
        %3866 = vadd.xlane.f32.xlu0 %v3865
        %v3867 = vpop.xlane.xlu0 %3866
        %v3868 = vsel %vm1164, %v3814, 0.0
        %3869 = vadd.xlane.f32.xlu0 %v3868
        %v3870 = vpop.xlane.xlu0 %3869
        %v3871 = vsel %vm1164, %v3815, 0.0
        %3872 = vadd.xlane.f32.xlu0 %v3871
        %v3873 = vpop.xlane.xlu0 %3872
        %v3874 = vsel %vm1164, %v3816, 0.0
        %3875 = vadd.xlane.f32.xlu0 %v3874
        %v3876 = vpop.xlane.xlu0 %3875
        %v3877 = vsel %vm1164, %v3817, 0.0
        %3878 = vadd.xlane.f32.xlu0 %v3877
        %v3879 = vpop.xlane.xlu0 %3878
        %v3880 = vsel %vm1164, %v3818, 0.0
        %3881 = vadd.xlane.f32.xlu0 %v3880
        %v3882 = vpop.xlane.xlu0 %3881
        %v3883 = vsel %vm1164, %v3819, 0.0
        %3884 = vadd.xlane.f32.xlu0 %v3883
        %v3885 = vpop.xlane.xlu0 %3884
        %v3886 = vsel %vm1164, %v3820, 0.0
        %3887 = vadd.xlane.f32.xlu0 %v3886
        %v3888 = vpop.xlane.xlu0 %3887
        %v3889 = vsel %vm1164, %v3821, 0.0
        %3890 = vadd.xlane.f32.xlu0 %v3889
        %v3891 = vpop.xlane.xlu0 %3890
        %v3892 = vsel %vm1164, %v3822, 0.0
        %3893 = vadd.xlane.f32.xlu0 %v3892
        %v3894 = vpop.xlane.xlu0 %3893
        %v3895 = vsel %vm1164, %v3823, 0.0
        %3896 = vadd.xlane.f32.xlu0 %v3895
        %v3897 = vpop.xlane.xlu0 %3896
        %v3898 = vsel %vm1164, %v3824, 0.0
        %3899 = vadd.xlane.f32.xlu0 %v3898
        %v3900 = vpop.xlane.xlu0 %3899
        %v3901 = vsel %vm1164, %v3825, 0.0
        %3902 = vadd.xlane.f32.xlu0 %v3901
        %v3903 = vpop.xlane.xlu0 %3902
        %v3904 = vsel %vm1164, %v3826, 0.0
        %3905 = vadd.xlane.f32.xlu0 %v3904
        %v3906 = vpop.xlane.xlu0 %3905
        %v3907 = vsel %vm1164, %v3827, 0.0
        %3908 = vadd.xlane.f32.xlu0 %v3907
        %v3909 = vpop.xlane.xlu0 %3908
        %v3910 = vsel %vm1164, %v3828, 0.0
        %3911 = vadd.xlane.f32.xlu0 %v3910
        %v3912 = vpop.xlane.xlu0 %3911
        %v3913 = vsel %vm1164, %v3829, 0.0
        %3914 = vadd.xlane.f32.xlu0 %v3913
        %v3915 = vpop.xlane.xlu0 %3914
        %v3916 = vsel %vm1164, %v3830, 0.0
        %3917 = vadd.xlane.f32.xlu0 %v3916
        %v3918 = vpop.xlane.xlu0 %3917
        %v3919 = vsel %vm1164, %v3831, 0.0
        %3920 = vadd.xlane.f32.xlu0 %v3919
        %v3921 = vpop.xlane.xlu0 %3920
        %v3922 = vsel %vm1164, %v3832, 0.0
        %3923 = vadd.xlane.f32.xlu0 %v3922
        %v3924 = vpop.xlane.xlu0 %3923
        %v3925 = vsel %vm1164, %v3833, 0.0
        %3926 = vadd.xlane.f32.xlu0 %v3925
        %v3927 = vpop.xlane.xlu0 %3926
        %v3928 = vsel %vm1164, %v3834, 0.0
        %3929 = vadd.xlane.f32.xlu0 %v3928
        %v3930 = vpop.xlane.xlu0 %3929
        %v3931 = vmul.f32 %v3837, %v3676
        %v3932 = vmul.f32 %v3840, %v3679
        %v3933 = vmul.f32 %v3843, %v3684
        %v3934 = vmul.f32 %v3846, %v3687
        %v3935 = vmul.f32 %v3849, %v3692
        %v3936 = vmul.f32 %v3852, %v3695
        %v3937 = vmul.f32 %v3855, %v3700
        %v3938 = vmul.f32 %v3858, %v3703
        %v3939 = vmul.f32 %v3861, %v3708
        %v3940 = vmul.f32 %v3864, %v3711
        %v3941 = vmul.f32 %v3867, %v3716
        %v3942 = vmul.f32 %v3870, %v3719
        %v3943 = vmul.f32 %v3873, %v3724
        %v3944 = vmul.f32 %v3876, %v3727
        %v3945 = vmul.f32 %v3879, %v3732
        %v3946 = vmul.f32 %v3882, %v3735
        %v3947 = vmul.f32 %v3885, %v3740
        %v3948 = vmul.f32 %v3888, %v3743
        %v3949 = vmul.f32 %v3891, %v3748
        %v3950 = vmul.f32 %v3894, %v3751
        %v3951 = vmul.f32 %v3897, %v3756
        %v3952 = vmul.f32 %v3900, %v3759
        %v3953 = vmul.f32 %v3903, %v3764
        %v3954 = vmul.f32 %v3906, %v3767
        %v3955 = vmul.f32 %v3909, %v3772
        %v3956 = vmul.f32 %v3912, %v3775
        %v3957 = vmul.f32 %v3915, %v3780
        %v3958 = vmul.f32 %v3918, %v3783
        %v3959 = vmul.f32 %v3921, %v3788
        %v3960 = vmul.f32 %v3924, %v3791
        %v3961 = vmul.f32 %v3927, %v3796
        %v3962 = vmul.f32 %v3930, %v3799
        %v3963 = vadd.f32 %v3073, %v3931
        %v3964 = vadd.f32 %v3074, %v3932
        %v3965 = vadd.f32 %v3075, %v3933
        %v3966 = vadd.f32 %v3076, %v3934
        %v3967 = vadd.f32 %v3077, %v3935
        %v3968 = vadd.f32 %v3078, %v3936
        %v3969 = vadd.f32 %v3079, %v3937
        %v3970 = vadd.f32 %v3080, %v3938
        %v3971 = vadd.f32 %v3081, %v3939
        %v3972 = vadd.f32 %v3082, %v3940
        %v3973 = vadd.f32 %v3083, %v3941
        %v3974 = vadd.f32 %v3084, %v3942
        %v3975 = vadd.f32 %v3085, %v3943
        %v3976 = vadd.f32 %v3086, %v3944
        %v3977 = vadd.f32 %v3087, %v3945
        %v3978 = vadd.f32 %v3088, %v3946
        %v3979 = vadd.f32 %v3089, %v3947
        %v3980 = vadd.f32 %v3090, %v3948
        %v3981 = vadd.f32 %v3091, %v3949
        %v3982 = vadd.f32 %v3092, %v3950
        %v3983 = vadd.f32 %v3093, %v3951
        %v3984 = vadd.f32 %v3094, %v3952
        %v3985 = vadd.f32 %v3095, %v3953
        %v3986 = vadd.f32 %v3096, %v3954
        %v3987 = vadd.f32 %v3097, %v3955
        %v3988 = vadd.f32 %v3098, %v3956
        %v3989 = vadd.f32 %v3099, %v3957
        %v3990 = vadd.f32 %v3100, %v3958
        %v3991 = vadd.f32 %v3101, %v3959
        %v3992 = vadd.f32 %v3102, %v3960
        %v3993 = vadd.f32 %v3103, %v3961
        %v3994 = vadd.f32 %v3104, %v3962
        %v3995 = vpack.c.bf16 %v3964, %v3963
        %v3996 = vpack.c.bf16 %v3966, %v3965
        %v3997 = vpack.c.bf16 %v3968, %v3967
        %v3998 = vpack.c.bf16 %v3970, %v3969
        %v3999 = vpack.c.bf16 %v3972, %v3971
        %v4000 = vpack.c.bf16 %v3974, %v3973
        %v4001 = vpack.c.bf16 %v3976, %v3975
        %v4002 = vpack.c.bf16 %v3978, %v3977
        %v4003 = vpack.c.bf16 %v3980, %v3979
        %v4004 = vpack.c.bf16 %v3982, %v3981
        %v4005 = vpack.c.bf16 %v3984, %v3983
        %v4006 = vpack.c.bf16 %v3986, %v3985
        %v4007 = vpack.c.bf16 %v3988, %v3987
        %v4008 = vpack.c.bf16 %v3990, %v3989
        %v4009 = vpack.c.bf16 %v3992, %v3991
        %v4010 = vpack.c.bf16 %v3994, %v3993
        %v4027 = vunpack.c.l.b16 %v3995
        %v4028 = vunpack.c.h.b16 %v3995
        %v4029 = vunpack.c.l.b16 %v3996
        %v4030 = vunpack.c.h.b16 %v3996
        %v4031 = vunpack.c.l.b16 %v3997
        %v4032 = vunpack.c.h.b16 %v3997
        %v4033 = vunpack.c.l.b16 %v3998
        %v4034 = vunpack.c.h.b16 %v3998
        %v4035 = vunpack.c.l.b16 %v3999
        %v4036 = vunpack.c.h.b16 %v3999
        %v4037 = vunpack.c.l.b16 %v4000
        %v4038 = vunpack.c.h.b16 %v4000
        %v4039 = vunpack.c.l.b16 %v4001
        %v4040 = vunpack.c.h.b16 %v4001
        %v4041 = vunpack.c.l.b16 %v4002
        %v4042 = vunpack.c.h.b16 %v4002
        %v4043 = vunpack.c.l.b16 %v4003
        %v4044 = vunpack.c.h.b16 %v4003
        %v4045 = vunpack.c.l.b16 %v4004
        %v4046 = vunpack.c.h.b16 %v4004
        %v4047 = vunpack.c.l.b16 %v4005
        %v4048 = vunpack.c.h.b16 %v4005
        %v4049 = vunpack.c.l.b16 %v4006
        %v4050 = vunpack.c.h.b16 %v4006
        %v4051 = vunpack.c.l.b16 %v4007
        %v4052 = vunpack.c.h.b16 %v4007
        %v4053 = vunpack.c.l.b16 %v4008
        %v4054 = vunpack.c.h.b16 %v4008
        %v4055 = vunpack.c.l.b16 %v4009
        %v4056 = vunpack.c.h.b16 %v4009
        %v4057 = vunpack.c.l.b16 %v4010
        %v4058 = vunpack.c.h.b16 %v4010
        %v4059 = vpack.c.b16 %v4027, %v4027
        %v4060 = vpack.c.b16 %v4028, %v4028
        %v4061 = vpack.c.b16 %v4029, %v4029
        %v4062 = vpack.c.b16 %v4030, %v4030
        %v4063 = vpack.c.b16 %v4031, %v4031
        %v4064 = vpack.c.b16 %v4032, %v4032
        %v4065 = vpack.c.b16 %v4033, %v4033
        %v4066 = vpack.c.b16 %v4034, %v4034
        %v4067 = vpack.c.b16 %v4035, %v4035
        %v4068 = vpack.c.b16 %v4036, %v4036
        %v4069 = vpack.c.b16 %v4037, %v4037
        %v4070 = vpack.c.b16 %v4038, %v4038
        %v4071 = vpack.c.b16 %v4039, %v4039
        %v4072 = vpack.c.b16 %v4040, %v4040
        %v4073 = vpack.c.b16 %v4041, %v4041
        %v4074 = vpack.c.b16 %v4042, %v4042
        %v4075 = vpack.c.b16 %v4043, %v4043
        %v4076 = vpack.c.b16 %v4044, %v4044
        %v4077 = vpack.c.b16 %v4045, %v4045
        %v4078 = vpack.c.b16 %v4046, %v4046
        %v4079 = vpack.c.b16 %v4047, %v4047
        %v4080 = vpack.c.b16 %v4048, %v4048
        %v4081 = vpack.c.b16 %v4049, %v4049
        %v4082 = vpack.c.b16 %v4050, %v4050
        %v4083 = vpack.c.b16 %v4051, %v4051
        %v4084 = vpack.c.b16 %v4052, %v4052
        %v4085 = vpack.c.b16 %v4053, %v4053
        %v4086 = vpack.c.b16 %v4054, %v4054
        %v4087 = vpack.c.b16 %v4055, %v4055
        %v4088 = vpack.c.b16 %v4056, %v4056
        %v4089 = vpack.c.b16 %v4057, %v4057
        %v4090 = vpack.c.b16 %v4058, %v4058
        %4123 = vst [vmem:[%s261] sm:$0xf] %v4059
        %4124 = vst [vmem:[%s261 + $0x4] sm:$0xf] %v4060
        %4125 = vst [vmem:[%s261 + $0x8] sm:$0xf] %v4061
        %4126 = vst [vmem:[%s261 + $0xc] sm:$0xf] %v4062
        %4127 = vst [vmem:[%s261 + $0x10] sm:$0xf] %v4063
        %4128 = vst [vmem:[%s261 + $0x14] sm:$0xf] %v4064
        %4129 = vst [vmem:[%s261 + $0x18] sm:$0xf] %v4065
        %4130 = vst [vmem:[%s261 + $0x1c] sm:$0xf] %v4066
        %4131 = vst [vmem:[%s261 + $0x20] sm:$0xf] %v4067
        %4132 = vst [vmem:[%s261 + $0x24] sm:$0xf] %v4068
        %4133 = vst [vmem:[%s261 + $0x28] sm:$0xf] %v4069
        %4134 = vst [vmem:[%s261 + $0x2c] sm:$0xf] %v4070
        %4135 = vst [vmem:[%s261 + $0x30] sm:$0xf] %v4071
        %4136 = vst [vmem:[%s261 + $0x34] sm:$0xf] %v4072
        %4137 = vst [vmem:[%s261 + $0x38] sm:$0xf] %v4073
        %4138 = vst [vmem:[%s261 + $0x3c] sm:$0xf] %v4074
        %4139 = vst [vmem:[%s261 + $0x40] sm:$0xf] %v4075
        %4140 = vst [vmem:[%s261 + $0x44] sm:$0xf] %v4076
        %4141 = vst [vmem:[%s261 + $0x48] sm:$0xf] %v4077
        %4142 = vst [vmem:[%s261 + $0x4c] sm:$0xf] %v4078
        %4143 = vst [vmem:[%s261 + $0x50] sm:$0xf] %v4079
        %4144 = vst [vmem:[%s261 + $0x54] sm:$0xf] %v4080
        %4145 = vst [vmem:[%s261 + $0x58] sm:$0xf] %v4081
        %4146 = vst [vmem:[%s261 + $0x5c] sm:$0xf] %v4082
        %4147 = vst [vmem:[%s261 + $0x60] sm:$0xf] %v4083
        %4148 = vst [vmem:[%s261 + $0x64] sm:$0xf] %v4084
        %4149 = vst [vmem:[%s261 + $0x68] sm:$0xf] %v4085
        %4150 = vst [vmem:[%s261 + $0x6c] sm:$0xf] %v4086
        %4151 = vst [vmem:[%s261 + $0x70] sm:$0xf] %v4087
        %4152 = vst [vmem:[%s261 + $0x74] sm:$0xf] %v4088
        %4153 = vst [vmem:[%s261 + $0x78] sm:$0xf] %v4089
        %4154 = vst [vmem:[%s261 + $0x7c] sm:$0xf] %v4090
        %s4155 = sand.u32 %s164, 1
        %s4156 = scalar_lea.sflag [#allocation3], %s4155
        %s4157 = sand.u32 %s164, 1
        %s4158 = smul.addr %s4157, 128
        %s4159 = scalar_lea.vmem [#allocation2], %s4158
        // Predicated region
        $region45: #{moe_feedforward.1} parent=43 // pred_check
          %p4160 = pneg %p174
        $region46: #{moe_feedforward.1} parent=43 // pred_check_branch
          %4162 = sbr.rel (%p4160) target = $region48
        $region47: #{moe_feedforward.1} parent=43 // pred_region
          %s4163 = smul.u32 32, %s20
          %s4165 = ssub.s32 2048, 2048
          %4166 = vsyncadd %s4156, %s4165
          %s4167 = smul.addr %s4163, 64
          %s4168 = scalar_lea.hbm %s6, %s4167
          %s4169 = sshll.u32 %s4159, 4
          %s4170 = int_to_ptr.vmem [resolvable:$true] %s4169
          %4175 = dma.vmem_to_hbm [thread:$0]  %s4170, 2048, %s4168, %s4156, 64, 64, 4
        $region48: #{moe_feedforward.1} parent=43 // pred_fallthru
          _
      $region44: #{moe_feedforward.1} parent=5 // pred_fallthru
        _
      %p4176 = scmp.le.s32.totalorder 2, %s15
      // Predicated region
      $region49: #{moe_feedforward.1} parent=5 // pred_check
        %p4177 = pneg %p4176
      $region50: #{moe_feedforward.1} parent=5 // pred_check_branch
        %4179 = sbr.rel (%p4177) target = $region52
      $region51: #{moe_feedforward.1} parent=5 // pred_region
        %s4180 = ssub.s32 %s15, 2
        // Predicated region
        $region53: #{moe_feedforward.1} parent=51 // pred_check
          %p4181 = pneg %p180
        $region54: #{moe_feedforward.1} parent=51 // pred_check_branch
          %4183 = sbr.rel (%p4181) target = $region56
        $region55: #{moe_feedforward.1} parent=51 // pred_region
          %s4184 = sand.u32 %s165, 1
          %s4185 = scalar_lea.sflag [#allocation3], %s4184
          %s4186 = sand.u32 %s165, 1
          %s4187 = smul.addr %s4186, 128
          %s4188 = scalar_lea.vmem [#allocation2], %s4187
          %4189 = dma.done %s4185, 2048
        $region56: #{moe_feedforward.1} parent=51 // pred_fallthru
          _
      $region52: #{moe_feedforward.1} parent=5 // pred_fallthru
        _
    $region6: #{moe_feedforward.1} parent=1 // loop_footer
      %s19 = sadd.s32 1, %s15
    $region7: #{moe_feedforward.1} parent=1 // loop_footer_branch
      %14 = sbr.rel target = $region3
    $region8: #{moe_feedforward.1} parent=1 // loop_exit
      _
    %4190 = vsyncpa [#allocation3], 1
    %s4191 = scalar_lea.sflag [#allocation3], 1
    %4192 = vsyncpa %s4191, 1

</llo_original>
